<compile_context>
chip_gen: v7x
topology: tpu7x:2x2x1
jax: 0.10.0
libtpu: 0.0.40
codegen_flags: <defaults>
</compile_context>

<pallas_src>
import jax
import jax.numpy as jnp
import numpy as np
from jax.experimental import pallas as pl
from jax.experimental.pallas import tpu as pltpu

SA_NUM = 8        # self.dimension / sa_num
SAT_SPLIT = 8     # self.sat_split


# --------------------------------------------------------------------------
# Fused kernel: grd SA + one tile of sat patches + fused matching score
# --------------------------------------------------------------------------
def _cvml_kernel(pooled_ref, patch_ref,
                 gw1_ref, gb1_ref, gw2_ref, gb2_ref,
                 sw1_ref, sb1_ref, sw2_ref, sb2_ref,
                 desc_ref, score_ref):
    f32 = jnp.float32
    cdt = patch_ref.dtype                          # MXU input dtype (bf16 in prod)
    num, ghid, gHW = gw2_ref.shape
    _,   shid, pHW = sw2_ref.shape
    npt, C = patch_ref.shape[1], patch_ref.shape[2]

    def _l2n(x):
        # L2-normalize over everything but the leading dim(s): x * rsqrt(sum x^2)
        ssq = jnp.sum(jnp.sum(x * x, axis=-1, keepdims=True), axis=-2, keepdims=True)
        return x * jax.lax.rsqrt(jnp.maximum(ssq, 1e-24))   # == F.normalize eps 1e-12

    # ---- ground branch (tiny; deliberately recomputed per NP tile so both grid
    #      axes can stay "parallel" -- no cross-iteration scratch dependence) ----
    pooled = pooled_ref[0]                                            # [C, gHW]
    gmask = jnp.max(pooled, axis=0, keepdims=True)                    # [1, gHW]
    m1 = jnp.dot(gmask, gw1_ref[...], preferred_element_type=f32) + gb1_ref[...]
    m1 = m1.reshape(1, num, ghid).astype(cdt)                         # [1, num, ghid]
    saw = jnp.einsum('mnh,nhk->mnk', m1, gw2_ref[...],
                     preferred_element_type=f32) + gb2_ref[...][None]
    saw = saw[0].astype(cdt)                                          # [num, gHW] (= sa_w^T)
    # NT matmul ('qd,kd->qk' pattern) -> output lane-dense on C
    gg = jnp.einsum('nh,ch->nc', saw, pooled,
                    preferred_element_type=f32)                       # [num, C]
    gg_n = _l2n(gg)

    # ---- satellite branch: NP_TILE patches per grid step -----------------------
    p = patch_ref[0]                                                  # [npt, C, pHW]
    pmask = jnp.max(p, axis=1)                                        # [npt, pHW]
    m1s = jnp.dot(pmask, sw1_ref[...], preferred_element_type=f32) + sb1_ref[...]
    m1s = m1s.reshape(npt, num, shid).astype(cdt)                     # [npt, num, shid]
    saws = jnp.einsum('mnh,nhk->mnk', m1s, sw2_ref[...],
                      preferred_element_type=f32) + sb2_ref[...][None]
    saws = saws.astype(cdt)                                           # [npt, num, pHW]
    # batched NT matmul (flash-attn 'bqd,bkd->bqk' pattern); each sub-matmul is
    # [num, pHW] x [C, pHW]^T with N = C in lanes -> lane-dense descriptor slab.
    ggs = jnp.einsum('mnh,mch->mnc', saws, p,
                     preferred_element_type=f32)                      # [npt, num, C]
    ggs_n = _l2n(ggs)

    # ---- fused matching score (VPU multiply + reduce; no descriptor reshape) ---
    prod = ggs_n * gg_n[None]                                         # [npt, num, C]
    score = jnp.sum(jnp.sum(prod, axis=2), axis=1)                    # [npt]

    desc_ref[0] = ggs_n.astype(desc_ref.dtype)
    score_ref[0, 0, 0, :] = score.astype(score_ref.dtype)


# --------------------------------------------------------------------------
# Parameter setup (matches SA.__init__) and one-time host-side packing
# --------------------------------------------------------------------------
def init_sa_params(key, in_dim, num=SA_NUM):
    hid = in_dim // 2
    k1, k2 = jax.random.split(key)
    w1 = 0.005 * jax.random.normal(k1, (in_dim, hid, num), jnp.float32)
    b1 = jnp.full((1, hid, num), 0.1, jnp.float32)
    w2 = 0.005 * jax.random.normal(k2, (hid, in_dim, num), jnp.float32)
    b2 = jnp.full((1, in_dim, num), 0.1, jnp.float32)
    return (w1, b1, w2, b2)


def pack_sa_params(params, weight_dtype=jnp.bfloat16):
    """One-time packing (hoisted out of the forward).  NO block-diagonal blow-up.

    w1 [din,hid,num] -> [din, num*hid]   (col = n*hid + j)   weight_dtype
    b1 [1,hid,num]   -> [1,  num*hid]                        float32
    w2 [hid,din,num] -> [num, hid, din]  (dense, batched)    weight_dtype
    b2 [1,din,num]   -> [num, din]                           float32
    """
    w1, b1, w2, b2 = params
    din, hid, num = w1.shape
    w1p = jnp.transpose(w1, (0, 2, 1)).reshape(din, num * hid).astype(weight_dtype)
    b1p = jnp.transpose(b1, (0, 2, 1)).reshape(1, num * hid).astype(jnp.float32)
    w2p = jnp.transpose(w2, (2, 0, 1)).astype(weight_dtype)
    b2p = jnp.transpose(b2, (0, 2, 1)).reshape(num, din).astype(jnp.float32)
    return (w1p, b1p, w2p, b2p)


# --------------------------------------------------------------------------
# Wrapper: layout plumbing + single pallas_call
# --------------------------------------------------------------------------
def cvml_forward(sat_local, grd_local, grd_packed, sat_packed,
                 *, np_tile=16, compute_dtype=jnp.bfloat16):
    """sat_local: [B, C, sH, sW] VGG sat features; grd_local: [B, C, gH2, gW2]
    VGG grd features (pre max-pool).  grd_packed/sat_packed from pack_sa_params."""
    B, C, gH2, gW2 = grd_local.shape
    gH, gW = gH2 // 2, gW2 // 2
    gHW = gH * gW
    _, _, sH, sW = sat_local.shape
    S = SAT_SPLIT
    pH, pW = sH // S, sW // S
    pHW = pH * pW
    NP = S * S
    num = SA_NUM
    f32 = jnp.float32
    np_tile = min(np_tile, NP)
    assert NP % np_tile == 0
    T = NP // np_tile

    # ground 2x2 max-pool: free reshapes + max reductions (no transpose, writes
    # the 4x-smaller pooled map once; the kernel keeps it VMEM-resident across
    # all NP tiles of a batch element instead of re-pooling per tile).
    gl = grd_local.astype(compute_dtype)
    pooled = gl.reshape(B, C, gH2, gW, 2).max(axis=4)
    pooled = pooled.reshape(B, C, gH, 2, gW).max(axis=3).reshape(B, C, gHW)

    # sat 8x8 patches, channel-major per patch (kernel uses an NT matmul so C
    # still lands in the lane dim of the output descriptors).
    # TODO(synk): at production scale fuse this relayout into the VGG producer
    # (or an index_map gather) instead of a standalone XLA transpose.
    sl = sat_local.astype(compute_dtype)
    patches = sl.reshape(B, C, S, pH, S, pW).transpose(0, 2, 4, 1, 3, 5)
    patches = patches.reshape(B, NP, C, pHW)

    def wspec(shape):
        zeros = (0,) * len(shape)
        # constant weights: constant index_map + single buffer (no double-buffer waste)
        return pl.BlockSpec(shape, lambda b, t: zeros, pipeline_mode=pl.Buffered(1))

    weights = (*grd_packed, *sat_packed)

    # explicit VMEM budget: double-buffered feature/output tiles + single-buffered weights
    itemsize = np.dtype(compute_dtype).itemsize
    est = (2 * (np_tile * C * pHW + C * gHW) * itemsize
           + 2 * (np_tile * num * C + np_tile) * 4
           + sum(int(w.size) * np.dtype(w.dtype).itemsize for w in weights))
    vmem_limit = int(min(100 * 2**20, 8 * 2**20 + 4 * est))

    desc, score = pl.pallas_call(
        _cvml_kernel,
        out_shape=(jax.ShapeDtypeStruct((B, NP, num, C), f32),        # descriptors, d-major/c-lane
                   jax.ShapeDtypeStruct((B, T, 1, np_tile), f32)),    # per-tile score rows
        grid=(B, T),
        in_specs=[pl.BlockSpec((1, C, gHW), lambda b, t: (b, 0, 0)),          # pooled grd (resident per b)
                  pl.BlockSpec((1, np_tile, C, pHW), lambda b, t: (b, t, 0, 0))]  # patch tile (pipelined)
                 + [wspec(w.shape) for w in weights],
        out_specs=(pl.BlockSpec((1, np_tile, num, C), lambda b, t: (b, t, 0, 0)),
                   pl.BlockSpec((1, 1, 1, np_tile), lambda b, t: (b, t, 0, 0))),
        # both axes parallel: B*T >= 2 grid steps -> both v7x TensorCores get work
        compiler_params=pltpu.CompilerParams(
            dimension_semantics=("parallel", "parallel"),
            vmem_limit_bytes=vmem_limit),
    )(pooled, patches, *weights)

    # restore PyTorch's c-major / d-minor channel order OUTSIDE the kernel (cheap XLA)
    sat_global = jnp.transpose(desc, (0, 1, 3, 2)).reshape(B, S, S, C * num)
    matching_score = score.reshape(B, S, S, 1)
    cost_map = jnp.concatenate([matching_score, sat_global], axis=3)
    # TODO(synk): logits = Decoder(cost_map.permute(0,3,1,2), ...) not implemented (Decoder not provided).
    return cost_map, jnp.transpose(matching_score, (0, 3, 1, 2))      # (cost_map, score NCHW)


# --------------------------------------------------------------------------
# Pure-JAX reference (mirrors the kernel's bf16 cast points -> tight tolerance)
# --------------------------------------------------------------------------
def reference_forward(sat_local, grd_local, grd_sa, sat_sa, compute_dtype=jnp.bfloat16):
    f32, cd = jnp.float32, compute_dtype
    B, C, gH2, gW2 = grd_local.shape
    gH, gW = gH2 // 2, gW2 // 2
    S = SAT_SPLIT

    def sa(mask, params):                         # PyTorch SA.forward, quantized like the kernel
        w1, b1, w2, b2 = params
        m = jnp.einsum('...i,ijd->...jd', mask, w1.astype(cd),
                       preferred_element_type=f32) + b1
        m = m.astype(cd)
        m = jnp.einsum('...jd,jid->...id', m, w2.astype(cd),
                       preferred_element_type=f32) + b2
        return m.astype(cd)                       # sa_w [..., HW, num]

    def l2n(x, axis):
        ssq = jnp.sum(x * x, axis=axis, keepdims=True)
        return x * jax.lax.rsqrt(jnp.maximum(ssq, 1e-24))

    gl = grd_local.astype(cd)
    pooled = gl.reshape(B, C, gH, 2, gW, 2).max(axis=(3, 5)).reshape(B, C, gH * gW)
    gw = sa(pooled.max(axis=1), grd_sa)                                   # [B, gHW, num]
    gg = jnp.einsum('bch,bhd->bcd', pooled, gw,
                    preferred_element_type=f32).reshape(B, -1)            # c-major, d-minor
    gg = l2n(gg, 1)

    sH, sW = sat_local.shape[2:]
    pH, pW = sH // S, sW // S
    sl = sat_local.astype(cd)
    patches = sl.reshape(B, C, S, pH, S, pW).transpose(0, 2, 4, 1, 3, 5)
    patches = patches.reshape(B, S * S, C, pH * pW)
    sw = sa(patches.max(axis=2), sat_sa)                                  # [B, NP, pHW, num]
    pg = jnp.einsum('bpch,bphd->bpcd', patches, sw,
                    preferred_element_type=f32).reshape(B, S * S, -1)
    pg = l2n(pg, -1)
    score = jnp.sum(pg * gg[:, None, :], axis=-1)
    return gg, pg, score


# --------------------------------------------------------------------------
if __name__ == "__main__":
    key = jax.random.PRNGKey(0)
    k_grd, k_sat, k_gp, k_sp = jax.random.split(key, 4)

    B, C = 2, 4
    grd_local = jax.random.normal(k_grd, (B, C, 8, 16), jnp.float32)   # VGG grd features (pre-pool)
    sat_local = jax.random.normal(k_sat, (B, C, 32, 32), jnp.float32)  # VGG sat features

    in_dim_grd = (8 // 2) * (16 // 2)                    # 32
    in_dim_sat = (32 // SAT_SPLIT) * (32 // SAT_SPLIT)   # 16
    grd_sa = init_sa_params(k_gp, in_dim_grd)
    sat_sa = init_sa_params(k_sp, in_dim_sat)

    # one-time parameter packing (dense, bf16) hoisted out of the per-step forward
    grd_packed = pack_sa_params(grd_sa)
    sat_packed = pack_sa_params(sat_sa)

    fwd = jax.jit(cvml_forward)
    cost_map, matching_nchw = jax.block_until_ready(
        fwd(sat_local, grd_local, grd_packed, sat_packed))

    # sanity check vs pure-JAX reference (same bf16 cast points as the kernel)
    _, pg_ref, score_ref = reference_forward(sat_local, grd_local, grd_sa, sat_sa)
    sat_out = cost_map[..., 1:].reshape(B, SAT_SPLIT ** 2, -1)
    score_out = matching_nchw.reshape(B, SAT_SPLIT ** 2)
    assert cost_map.shape == (B, SAT_SPLIT, SAT_SPLIT, 1 + C * SA_NUM)
    assert matching_nchw.shape == (B, 1, SAT_SPLIT, SAT_SPLIT)
    assert float(jnp.max(jnp.abs(sat_out - pg_ref))) < 5e-3
    assert float(jnp.max(jnp.abs(score_out - score_ref))) < 5e-3

    print("KERNEL_OK")
</pallas_src>

<mosaic_0001>
module attributes {stable_mosaic.version = 11 : i64} {
  func.func @_cvml_kernel(%arg0: i32, %arg1: i32, %arg2: memref<1x4x32xbf16, #tpu.memory_space<vmem>>, %arg3: memref<1x16x4x16xbf16, #tpu.memory_space<vmem>>, %arg4: memref<32x128xbf16, #tpu.memory_space<vmem>>, %arg5: memref<1x128xf32, #tpu.memory_space<vmem>>, %arg6: memref<8x16x32xbf16, #tpu.memory_space<vmem>>, %arg7: memref<8x32xf32, #tpu.memory_space<vmem>>, %arg8: memref<16x64xbf16, #tpu.memory_space<vmem>>, %arg9: memref<1x64xf32, #tpu.memory_space<vmem>>, %arg10: memref<8x8x16xbf16, #tpu.memory_space<vmem>>, %arg11: memref<8x16xf32, #tpu.memory_space<vmem>>, %arg12: memref<1x16x8x4xf32, #tpu.memory_space<vmem>>, %arg13: memref<1x1x1x16xf32, #tpu.memory_space<vmem>>) attributes {dimension_semantics = [#tpu.dimension_semantics<parallel>, #tpu.dimension_semantics<parallel>], iteration_bounds = array<i64: 2, 4>, scalar_prefetch = 0 : i64, scratch_operands = 0 : i64, tpu.core_type = #tpu.core_type<tc>, window_params = [{transform_indices = @transform_0, window_bounds = array<i64: 1, 4, 32>}, {transform_indices = @transform_1, window_bounds = array<i64: 1, 16, 4, 16>}, {pipeline_mode = #tpu.pipeline_mode<synchronous>, transform_indices = @transform_2, window_bounds = array<i64: 32, 128>}, {pipeline_mode = #tpu.pipeline_mode<synchronous>, transform_indices = @transform_3, window_bounds = array<i64: 1, 128>}, {pipeline_mode = #tpu.pipeline_mode<synchronous>, transform_indices = @transform_4, window_bounds = array<i64: 8, 16, 32>}, {pipeline_mode = #tpu.pipeline_mode<synchronous>, transform_indices = @transform_5, window_bounds = array<i64: 8, 32>}, {pipeline_mode = #tpu.pipeline_mode<synchronous>, transform_indices = @transform_6, window_bounds = array<i64: 16, 64>}, {pipeline_mode = #tpu.pipeline_mode<synchronous>, transform_indices = @transform_7, window_bounds = array<i64: 1, 64>}, {pipeline_mode = #tpu.pipeline_mode<synchronous>, transform_indices = @transform_8, window_bounds = array<i64: 8, 8, 16>}, {pipeline_mode = #tpu.pipeline_mode<synchronous>, transform_indices = @transform_9, window_bounds = array<i64: 8, 16>}, {transform_indices = @transform_10, window_bounds = array<i64: 1, 16, 8, 4>}, {transform_indices = @transform_11, window_bounds = array<i64: 1, 1, 1, 16>}]} {
    %c0 = arith.constant 0 : index
    %c0_0 = arith.constant 0 : index
    %c0_1 = arith.constant 0 : index
    %0 = vector.load %arg2[%c0, %c0_0, %c0_1] : memref<1x4x32xbf16, #tpu.memory_space<vmem>>, vector<1x4x32xbf16>
    %1 = vector.shape_cast %0 : vector<1x4x32xbf16> to vector<4x32xbf16>
    %cst = arith.constant dense<0xFF80> : vector<32xbf16>
    %2 = vector.multi_reduction <maximumf>, %1, %cst [0] : vector<4x32xbf16> to vector<32xbf16>
    %3 = vector.shape_cast %2 : vector<32xbf16> to vector<1x32xbf16>
    %c0_2 = arith.constant 0 : index
    %c0_3 = arith.constant 0 : index
    %4 = vector.load %arg4[%c0_2, %c0_3] : memref<32x128xbf16, #tpu.memory_space<vmem>>, vector<32x128xbf16>
    %cst_4 = arith.constant dense<0.000000e+00> : vector<1x128xf32>
    %5 = tpu.matmul %3, %4, %cst_4 {dimension_numbers = #tpu.dot_dimension_numbers<[1], [0], [0], [1], [0, 0, 1, 1], [], []>} : vector<1x32xbf16>, vector<32x128xbf16>, vector<1x128xf32> -> vector<1x128xf32>
    %c0_5 = arith.constant 0 : index
    %c0_6 = arith.constant 0 : index
    %6 = vector.load %arg5[%c0_5, %c0_6] : memref<1x128xf32, #tpu.memory_space<vmem>>, vector<1x128xf32>
    %7 = arith.addf %5, %6 : vector<1x128xf32>
    %8 = vector.shape_cast %7 : vector<1x128xf32> to vector<1x8x16xf32>
    %9 = arith.truncf %8 : vector<1x8x16xf32> to vector<1x8x16xbf16>
    %c0_7 = arith.constant 0 : index
    %c0_8 = arith.constant 0 : index
    %c0_9 = arith.constant 0 : index
    %10 = vector.load %arg6[%c0_7, %c0_8, %c0_9] : memref<8x16x32xbf16, #tpu.memory_space<vmem>>, vector<8x16x32xbf16>
    "tpu.trace_start"() <{level = 10 : i32, message = "mnh,nhk->mnk"}> : () -> ()
    %cst_10 = arith.constant dense<0.000000e+00> : vector<8x32x1xf32>
    %11 = tpu.matmul %10, %9, %cst_10 {dimension_numbers = #tpu.dot_dimension_numbers<[1], [2], [2], [0], [0, 0, 0, 2, 1, 0], [0], [1]>} : vector<8x16x32xbf16>, vector<1x8x16xbf16>, vector<8x32x1xf32> -> vector<8x32x1xf32>
    %12 = tpu.transpose %11, [2, 0, 1] : vector<8x32x1xf32> -> vector<1x8x32xf32>
    "tpu.trace_stop"() : () -> ()
    %c0_11 = arith.constant 0 : index
    %c0_12 = arith.constant 0 : index
    %13 = vector.load %arg7[%c0_11, %c0_12] : memref<8x32xf32, #tpu.memory_space<vmem>>, vector<8x32xf32>
    %14 = vector.shape_cast %13 : vector<8x32xf32> to vector<1x8x32xf32>
    %15 = arith.addf %12, %14 : vector<1x8x32xf32>
    %16 = vector.shape_cast %15 : vector<1x8x32xf32> to vector<8x32xf32>
    %17 = arith.truncf %16 : vector<8x32xf32> to vector<8x32xbf16>
    "tpu.trace_start"() <{level = 10 : i32, message = "nh,ch->nc"}> : () -> ()
    %cst_13 = arith.constant dense<0.000000e+00> : vector<8x4xf32>
    %18 = tpu.matmul %17, %1, %cst_13 {dimension_numbers = #tpu.dot_dimension_numbers<[1], [1], [0], [0], [0, 0, 1, 0], [], []>} : vector<8x32xbf16>, vector<4x32xbf16>, vector<8x4xf32> -> vector<8x4xf32>
    "tpu.trace_stop"() : () -> ()
    %19 = arith.mulf %18, %18 : vector<8x4xf32>
    %cst_14 = arith.constant dense<0.000000e+00> : vector<8xf32>
    %20 = vector.multi_reduction <add>, %19, %cst_14 [1] : vector<8x4xf32> to vector<8xf32>
    %21 = vector.shape_cast %20 : vector<8xf32> to vector<8x1xf32>
    %cst_15 = arith.constant dense<0.000000e+00> : vector<1xf32>
    %22 = vector.multi_reduction <add>, %21, %cst_15 [0] : vector<8x1xf32> to vector<1xf32>
    %23 = vector.shape_cast %22 : vector<1xf32> to vector<1x1xf32>
    %cst_16 = arith.constant 1.000000e-24 : f32
    %24 = vector.broadcast %cst_16 : f32 to vector<1x1xf32>
    %25 = arith.maximumf %23, %24 : vector<1x1xf32>
    %26 = math.rsqrt %25 : vector<1x1xf32>
    %27 = vector.broadcast %26 : vector<1x1xf32> to vector<8x4xf32>
    %28 = arith.mulf %18, %27 : vector<8x4xf32>
    %c0_17 = arith.constant 0 : index
    %c0_18 = arith.constant 0 : index
    %c0_19 = arith.constant 0 : index
    %c0_20 = arith.constant 0 : index
    %29 = vector.load %arg3[%c0_17, %c0_18, %c0_19, %c0_20] : memref<1x16x4x16xbf16, #tpu.memory_space<vmem>>, vector<1x16x4x16xbf16>
    %30 = vector.shape_cast %29 : vector<1x16x4x16xbf16> to vector<16x4x16xbf16>
    %cst_21 = arith.constant dense<0xFF80> : vector<16x16xbf16>
    %31 = vector.multi_reduction <maximumf>, %30, %cst_21 [1] : vector<16x4x16xbf16> to vector<16x16xbf16>
    %c0_22 = arith.constant 0 : index
    %c0_23 = arith.constant 0 : index
    %32 = vector.load %arg8[%c0_22, %c0_23] : memref<16x64xbf16, #tpu.memory_space<vmem>>, vector<16x64xbf16>
    %cst_24 = arith.constant dense<0.000000e+00> : vector<16x64xf32>
    %33 = tpu.matmul %31, %32, %cst_24 {dimension_numbers = #tpu.dot_dimension_numbers<[1], [0], [0], [1], [0, 0, 1, 1], [], []>} : vector<16x16xbf16>, vector<16x64xbf16>, vector<16x64xf32> -> vector<16x64xf32>
    %c0_25 = arith.constant 0 : index
    %c0_26 = arith.constant 0 : index
    %34 = vector.load %arg9[%c0_25, %c0_26] : memref<1x64xf32, #tpu.memory_space<vmem>>, vector<1x64xf32>
    %35 = vector.broadcast %34 : vector<1x64xf32> to vector<16x64xf32>
    %36 = arith.addf %33, %35 : vector<16x64xf32>
    %37 = vector.shape_cast %36 : vector<16x64xf32> to vector<16x8x8xf32>
    %38 = arith.truncf %37 : vector<16x8x8xf32> to vector<16x8x8xbf16>
    %c0_27 = arith.constant 0 : index
    %c0_28 = arith.constant 0 : index
    %c0_29 = arith.constant 0 : index
    %39 = vector.load %arg10[%c0_27, %c0_28, %c0_29] : memref<8x8x16xbf16, #tpu.memory_space<vmem>>, vector<8x8x16xbf16>
    "tpu.trace_start"() <{level = 10 : i32, message = "mnh,nhk->mnk"}> : () -> ()
    %cst_30 = arith.constant dense<0.000000e+00> : vector<8x16x16xf32>
    %40 = tpu.matmul %39, %38, %cst_30 {dimension_numbers = #tpu.dot_dimension_numbers<[1], [2], [2], [0], [0, 0, 0, 2, 1, 0], [0], [1]>} : vector<8x8x16xbf16>, vector<16x8x8xbf16>, vector<8x16x16xf32> -> vector<8x16x16xf32>
    %41 = tpu.transpose %40, [2, 0, 1] : vector<8x16x16xf32> -> vector<16x8x16xf32>
    "tpu.trace_stop"() : () -> ()
    %c0_31 = arith.constant 0 : index
    %c0_32 = arith.constant 0 : index
    %42 = vector.load %arg11[%c0_31, %c0_32] : memref<8x16xf32, #tpu.memory_space<vmem>>, vector<8x16xf32>
    %43 = vector.shape_cast %42 : vector<8x16xf32> to vector<1x8x16xf32>
    %44 = vector.broadcast %43 : vector<1x8x16xf32> to vector<16x8x16xf32>
    %45 = arith.addf %41, %44 : vector<16x8x16xf32>
    %46 = arith.truncf %45 : vector<16x8x16xf32> to vector<16x8x16xbf16>
    "tpu.trace_start"() <{level = 10 : i32, message = "mnh,mch->mnc"}> : () -> ()
    %cst_33 = arith.constant dense<0.000000e+00> : vector<16x8x4xf32>
    %47 = tpu.matmul %46, %30, %cst_33 {dimension_numbers = #tpu.dot_dimension_numbers<[2], [2], [1], [1], [0, 0, 0, 1, 1, 1], [0], [0]>} : vector<16x8x16xbf16>, vector<16x4x16xbf16>, vector<16x8x4xf32> -> vector<16x8x4xf32>
    "tpu.trace_stop"() : () -> ()
    %48 = arith.mulf %47, %47 : vector<16x8x4xf32>
    %cst_34 = arith.constant dense<0.000000e+00> : vector<16x8xf32>
    %49 = vector.multi_reduction <add>, %48, %cst_34 [2] : vector<16x8x4xf32> to vector<16x8xf32>
    %50 = vector.shape_cast %49 : vector<16x8xf32> to vector<16x8x1xf32>
    %cst_35 = arith.constant dense<0.000000e+00> : vector<16x1xf32>
    %51 = vector.multi_reduction <add>, %50, %cst_35 [1] : vector<16x8x1xf32> to vector<16x1xf32>
    %52 = vector.shape_cast %51 : vector<16x1xf32> to vector<16x1x1xf32>
    %cst_36 = arith.constant 1.000000e-24 : f32
    %53 = vector.broadcast %cst_36 : f32 to vector<16x1x1xf32>
    %54 = arith.maximumf %52, %53 : vector<16x1x1xf32>
    %55 = math.rsqrt %54 : vector<16x1x1xf32>
    %56 = vector.broadcast %55 : vector<16x1x1xf32> to vector<16x8x4xf32>
    %57 = arith.mulf %47, %56 : vector<16x8x4xf32>
    %58 = vector.shape_cast %28 : vector<8x4xf32> to vector<1x8x4xf32>
    %59 = vector.broadcast %58 : vector<1x8x4xf32> to vector<16x8x4xf32>
    %60 = arith.mulf %57, %59 : vector<16x8x4xf32>
    %cst_37 = arith.constant dense<0.000000e+00> : vector<16x8xf32>
    %61 = vector.multi_reduction <add>, %60, %cst_37 [2] : vector<16x8x4xf32> to vector<16x8xf32>
    %cst_38 = arith.constant dense<0.000000e+00> : vector<16xf32>
    %62 = vector.multi_reduction <add>, %61, %cst_38 [1] : vector<16x8xf32> to vector<16xf32>
    %c0_39 = arith.constant 0 : index
    %c0_40 = arith.constant 0 : index
    %c0_41 = arith.constant 0 : index
    %c0_42 = arith.constant 0 : index
    %63 = vector.load %arg12[%c0_39, %c0_40, %c0_41, %c0_42] : memref<1x16x8x4xf32, #tpu.memory_space<vmem>>, vector<1x16x8x4xf32>
    %64 = vector.shape_cast %63 : vector<1x16x8x4xf32> to vector<16x8x4xf32>
    %65 = vector.shape_cast %57 : vector<16x8x4xf32> to vector<1x16x8x4xf32>
    tpu.vector_store %arg12[%c0_39, %c0_40, %c0_41, %c0_42], %65 {strides = array<i32>} : memref<1x16x8x4xf32, #tpu.memory_space<vmem>>, vector<1x16x8x4xf32>,
    %c0_43 = arith.constant 0 : index
    %c0_44 = arith.constant 0 : index
    %c0_45 = arith.constant 0 : index
    %c0_46 = arith.constant 0 : index
    %66 = vector.load %arg13[%c0_43, %c0_44, %c0_45, %c0_46] : memref<1x1x1x16xf32, #tpu.memory_space<vmem>>, vector<1x1x1x16xf32>
    %67 = vector.shape_cast %66 : vector<1x1x1x16xf32> to vector<16xf32>
    %68 = vector.shape_cast %62 : vector<16xf32> to vector<1x1x1x16xf32>
    tpu.vector_store %arg13[%c0_43, %c0_44, %c0_45, %c0_46], %68 {strides = array<i32>} : memref<1x1x1x16xf32, #tpu.memory_space<vmem>>, vector<1x1x1x16xf32>,
    return
  }
  func.func @transform_0(%arg0: i32, %arg1: i32) -> (i32, i32, i32) {
    %c0_i32 = arith.constant 0 : i32
    %c0_i32_0 = arith.constant 0 : i32
    %c0_i32_1 = arith.constant 0 : i32
    return %arg0, %c0_i32, %c0_i32_0 : i32, i32, i32
  }
  func.func @transform_1(%arg0: i32, %arg1: i32) -> (i32, i32, i32, i32) {
    %c0_i32 = arith.constant 0 : i32
    %c0_i32_0 = arith.constant 0 : i32
    %c0_i32_1 = arith.constant 0 : i32
    return %arg0, %arg1, %c0_i32, %c0_i32_0 : i32, i32, i32, i32
  }
  func.func @transform_2(%arg0: i32, %arg1: i32) -> (i32, i32) {
    %c0_i32 = arith.constant 0 : i32
    %c0_i32_0 = arith.constant 0 : i32
    %c0_i32_1 = arith.constant 0 : i32
    return %c0_i32, %c0_i32_0 : i32, i32
  }
  func.func @transform_3(%arg0: i32, %arg1: i32) -> (i32, i32) {
    %c0_i32 = arith.constant 0 : i32
    %c0_i32_0 = arith.constant 0 : i32
    %c0_i32_1 = arith.constant 0 : i32
    return %c0_i32, %c0_i32_0 : i32, i32
  }
  func.func @transform_4(%arg0: i32, %arg1: i32) -> (i32, i32, i32) {
    %c0_i32 = arith.constant 0 : i32
    %c0_i32_0 = arith.constant 0 : i32
    %c0_i32_1 = arith.constant 0 : i32
    %c0_i32_2 = arith.constant 0 : i32
    return %c0_i32, %c0_i32_0, %c0_i32_1 : i32, i32, i32
  }
  func.func @transform_5(%arg0: i32, %arg1: i32) -> (i32, i32) {
    %c0_i32 = arith.constant 0 : i32
    %c0_i32_0 = arith.constant 0 : i32
    %c0_i32_1 = arith.constant 0 : i32
    return %c0_i32, %c0_i32_0 : i32, i32
  }
  func.func @transform_6(%arg0: i32, %arg1: i32) -> (i32, i32) {
    %c0_i32 = arith.constant 0 : i32
    %c0_i32_0 = arith.constant 0 : i32
    %c0_i32_1 = arith.constant 0 : i32
    return %c0_i32, %c0_i32_0 : i32, i32
  }
  func.func @transform_7(%arg0: i32, %arg1: i32) -> (i32, i32) {
    %c0_i32 = arith.constant 0 : i32
    %c0_i32_0 = arith.constant 0 : i32
    %c0_i32_1 = arith.constant 0 : i32
    return %c0_i32, %c0_i32_0 : i32, i32
  }
  func.func @transform_8(%arg0: i32, %arg1: i32) -> (i32, i32, i32) {
    %c0_i32 = arith.constant 0 : i32
    %c0_i32_0 = arith.constant 0 : i32
    %c0_i32_1 = arith.constant 0 : i32
    %c0_i32_2 = arith.constant 0 : i32
    return %c0_i32, %c0_i32_0, %c0_i32_1 : i32, i32, i32
  }
  func.func @transform_9(%arg0: i32, %arg1: i32) -> (i32, i32) {
    %c0_i32 = arith.constant 0 : i32
    %c0_i32_0 = arith.constant 0 : i32
    %c0_i32_1 = arith.constant 0 : i32
    return %c0_i32, %c0_i32_0 : i32, i32
  }
  func.func @transform_10(%arg0: i32, %arg1: i32) -> (i32, i32, i32, i32) {
    %c0_i32 = arith.constant 0 : i32
    %c0_i32_0 = arith.constant 0 : i32
    %c0_i32_1 = arith.constant 0 : i32
    return %arg0, %arg1, %c0_i32, %c0_i32_0 : i32, i32, i32, i32
  }
  func.func @transform_11(%arg0: i32, %arg1: i32) -> (i32, i32, i32, i32) {
    %c0_i32 = arith.constant 0 : i32
    %c0_i32_0 = arith.constant 0 : i32
    %c0_i32_1 = arith.constant 0 : i32
    return %arg0, %arg1, %c0_i32, %c0_i32_0 : i32, i32, i32, i32
  }
}

</mosaic_0001>

<llo_original>
// kernel: cvml_forward.1
$region0: #{cvml_forward.1}
  #allocation0 [shape = 'u32[]', space=smem, size = 0x4, offset = 0x4, fixed_abs, tag = 'smem constant byte address 0x4 - core index']
  #allocation1 [shape = 'u32[144,128]{1,0:T(1,128)}', space=vmem, size = 0x12000, scoped, tag = 'internal scratch']
  %s0 = inlined_call_operand.vmem [shape: bf16[2,4,32], index: 0, kind: input, shape index: {}]
  %s1 = inlined_call_operand.vmem [shape: bf16[2,64,4,16], index: 1, kind: input, shape index: {}]
  %s2 = inlined_call_operand.vmem [shape: bf16[32,128], index: 2, kind: input, shape index: {}]
  %s3 = inlined_call_operand.vmem [shape: f32[1,128], index: 3, kind: input, shape index: {}]
  %s4 = inlined_call_operand.vmem [shape: bf16[8,16,32], index: 4, kind: input, shape index: {}]
  %s5 = inlined_call_operand.vmem [shape: f32[8,32], index: 5, kind: input, shape index: {}]
  %s6 = inlined_call_operand.vmem [shape: bf16[16,64], index: 6, kind: input, shape index: {}]
  %s7 = inlined_call_operand.vmem [shape: f32[1,64], index: 7, kind: input, shape index: {}]
  %s8 = inlined_call_operand.vmem [shape: bf16[8,8,16], index: 8, kind: input, shape index: {}]
  %s9 = inlined_call_operand.vmem [shape: f32[8,16], index: 9, kind: input, shape index: {}]
  %s10 = inlined_call_operand.vmem [shape: f32[2,64,8,4], index: 10, kind: output, shape index: {0}]
  %s11 = inlined_call_operand.vmem [shape: f32[2,4,1,16], index: 11, kind: output, shape index: {1}]
  %12 = xla_tuple %s10, %s11
  %s13 = sld [smem:[#allocation0]]
  $region81: #{cvml_forward.1} parent=0
    _
  %s15 = ssub.s32 1, %s13
  %s16 = scalar_select 0, %s15, %s13
  loop: start=0, step=1, limit=10
  $region2: #{cvml_forward.1} parent=0 // loop_pre_header
    _
  $region3: #{cvml_forward.1} parent=0 // loop_header
    %s18 = sphi 0, %s22
    %p19 = scmp.ge.s32.totalorder %s18, 10
    %s25 = sphi 0, %s37
    %s26 = sphi 0, %s33
    %s27 = sphi 0, %s25
    %s28 = sphi 0, %s26
    %s29 = sphi 0, %s27
    %s30 = sphi 0, %s28
    %s40 = sphi 0, %s42
    %s43 = sphi 0, %s40
    %s44 = sphi 0, %s43
    %s60 = sphi 0, %s44
    %s68 = sphi 0, %s70
    %s71 = sphi 0, %s68
    %s72 = sphi 0, %s71
    %s88 = sphi 0, %s72
    %s92 = sphi 0, %s92
    %s94 = sphi 0, %s92
    %s95 = sphi 0, %s94
    %s109 = sphi 0, %s95
    %s113 = sphi 0, %s113
    %s115 = sphi 0, %s113
    %s116 = sphi 0, %s115
    %s130 = sphi 0, %s116
    %s134 = sphi 0, %s134
    %s136 = sphi 0, %s134
    %s137 = sphi 0, %s136
    %s151 = sphi 0, %s137
    %s155 = sphi 0, %s155
    %s157 = sphi 0, %s155
    %s158 = sphi 0, %s157
    %s172 = sphi 0, %s158
    %s176 = sphi 0, %s176
    %s178 = sphi 0, %s176
    %s179 = sphi 0, %s178
    %s193 = sphi 0, %s179
    %s197 = sphi 0, %s197
    %s199 = sphi 0, %s197
    %s200 = sphi 0, %s199
    %s214 = sphi 0, %s200
    %s218 = sphi 0, %s218
    %s220 = sphi 0, %s218
    %s221 = sphi 0, %s220
    %s235 = sphi 0, %s221
    %s239 = sphi 0, %s239
    %s241 = sphi 0, %s239
    %s242 = sphi 0, %s241
    %s256 = sphi 0, %s242
    %s264 = sphi 0, %s266
    %s267 = sphi 0, %s264
    %s268 = sphi 0, %s267
    %s284 = sphi 0, %s268
    %s292 = sphi 0, %s294
    %s295 = sphi 0, %s292
    %s296 = sphi 0, %s295
    %s312 = sphi 0, %s296
  $region4: #{cvml_forward.1} parent=0 // loop_header_branch
    %21 = sbr.rel (%p19) target = $region8
  $region5: #{cvml_forward.1} parent=0 // loop_body
    %s23 = ssub.s32 %s18, 1
    %s24 = ssub.s32 %s18, 2
    %s31 = sadd.s32 1, %s26
    %p32 = scmp.ge.s32.totalorder %s31, 4
    %s33 = scalar_select %p32, 0, %s31
    %s34 = sadd.s32 1, %s25
    %s35 = scalar_select %p32, %s34, %s25
    %p36 = scmp.ge.s32.totalorder %s35, 2
    %s37 = scalar_select %p36, 0, %s35
    %s38 = ssub.s32 %s25, %s37
    %p39 = scmp.eq.s32.totalorder %s38, 0
    %s41 = sadd.s32 %s40, 1
    %s42 = scalar_select %p39, %s40, %s41
    %p45 = pneg %p39
    %p46 = scmp.eq.s32.totalorder %s18, 7
    %p47 = por %p45, %p46
    %p48 = scmp.ne.s32.totalorder %s40, %s43
    %p49 = scmp.eq.s32.totalorder %s18, 0
    %p50 = por %p48, %p49
    %p51 = scmp.ne.s32.totalorder %s40, %s43
    %p52 = scmp.eq.s32.totalorder %s23, 7
    %p53 = por %p51, %p52
    %p54 = scmp.ne.s32.totalorder %s43, %s44
    %p55 = scmp.eq.s32.totalorder %s23, 0
    %p56 = por %p54, %p55
    %p57 = scmp.ne.s32.totalorder %s43, %s44
    %p58 = scmp.eq.s32.totalorder %s24, 7
    %p59 = por %p57, %p58
    %p61 = scmp.ne.s32.totalorder %s44, %s60
    %p62 = scmp.eq.s32.totalorder %s24, 0
    %p63 = por %p61, %p62
    %s64 = ssub.s32 %s25, %s37
    %s65 = ssub.s32 %s26, %s33
    %s66 = sor.u32 %s64, %s65
    %p67 = scmp.eq.s32.totalorder %s66, 0
    %s69 = sadd.s32 %s68, 1
    %s70 = scalar_select %p67, %s68, %s69
    %p73 = pneg %p67
    %p74 = scmp.eq.s32.totalorder %s18, 7
    %p75 = por %p73, %p74
    %p76 = scmp.ne.s32.totalorder %s68, %s71
    %p77 = scmp.eq.s32.totalorder %s18, 0
    %p78 = por %p76, %p77
    %p79 = scmp.ne.s32.totalorder %s68, %s71
    %p80 = scmp.eq.s32.totalorder %s23, 7
    %p81 = por %p79, %p80
    %p82 = scmp.ne.s32.totalorder %s71, %s72
    %p83 = scmp.eq.s32.totalorder %s23, 0
    %p84 = por %p82, %p83
    %p85 = scmp.ne.s32.totalorder %s71, %s72
    %p86 = scmp.eq.s32.totalorder %s24, 7
    %p87 = por %p85, %p86
    %p89 = scmp.ne.s32.totalorder %s72, %s88
    %p90 = scmp.eq.s32.totalorder %s24, 0
    %p91 = por %p89, %p90
    %s93 = sadd.s32 %s92, 1
    %p96 = scmp.eq.s32.totalorder %s18, 7
    %p97 = scmp.ne.s32.totalorder %s92, %s94
    %p98 = scmp.eq.s32.totalorder %s18, 0
    %p99 = por %p97, %p98
    %p100 = scmp.ne.s32.totalorder %s92, %s94
    %p101 = scmp.eq.s32.totalorder %s23, 7
    %p102 = por %p100, %p101
    %p103 = scmp.ne.s32.totalorder %s94, %s95
    %p104 = scmp.eq.s32.totalorder %s23, 0
    %p105 = por %p103, %p104
    %p106 = scmp.ne.s32.totalorder %s94, %s95
    %p107 = scmp.eq.s32.totalorder %s24, 7
    %p108 = por %p106, %p107
    %p110 = scmp.ne.s32.totalorder %s95, %s109
    %p111 = scmp.eq.s32.totalorder %s24, 0
    %p112 = por %p110, %p111
    %s114 = sadd.s32 %s113, 1
    %p117 = scmp.eq.s32.totalorder %s18, 7
    %p118 = scmp.ne.s32.totalorder %s113, %s115
    %p119 = scmp.eq.s32.totalorder %s18, 0
    %p120 = por %p118, %p119
    %p121 = scmp.ne.s32.totalorder %s113, %s115
    %p122 = scmp.eq.s32.totalorder %s23, 7
    %p123 = por %p121, %p122
    %p124 = scmp.ne.s32.totalorder %s115, %s116
    %p125 = scmp.eq.s32.totalorder %s23, 0
    %p126 = por %p124, %p125
    %p127 = scmp.ne.s32.totalorder %s115, %s116
    %p128 = scmp.eq.s32.totalorder %s24, 7
    %p129 = por %p127, %p128
    %p131 = scmp.ne.s32.totalorder %s116, %s130
    %p132 = scmp.eq.s32.totalorder %s24, 0
    %p133 = por %p131, %p132
    %s135 = sadd.s32 %s134, 1
    %p138 = scmp.eq.s32.totalorder %s18, 7
    %p139 = scmp.ne.s32.totalorder %s134, %s136
    %p140 = scmp.eq.s32.totalorder %s18, 0
    %p141 = por %p139, %p140
    %p142 = scmp.ne.s32.totalorder %s134, %s136
    %p143 = scmp.eq.s32.totalorder %s23, 7
    %p144 = por %p142, %p143
    %p145 = scmp.ne.s32.totalorder %s136, %s137
    %p146 = scmp.eq.s32.totalorder %s23, 0
    %p147 = por %p145, %p146
    %p148 = scmp.ne.s32.totalorder %s136, %s137
    %p149 = scmp.eq.s32.totalorder %s24, 7
    %p150 = por %p148, %p149
    %p152 = scmp.ne.s32.totalorder %s137, %s151
    %p153 = scmp.eq.s32.totalorder %s24, 0
    %p154 = por %p152, %p153
    %s156 = sadd.s32 %s155, 1
    %p159 = scmp.eq.s32.totalorder %s18, 7
    %p160 = scmp.ne.s32.totalorder %s155, %s157
    %p161 = scmp.eq.s32.totalorder %s18, 0
    %p162 = por %p160, %p161
    %p163 = scmp.ne.s32.totalorder %s155, %s157
    %p164 = scmp.eq.s32.totalorder %s23, 7
    %p165 = por %p163, %p164
    %p166 = scmp.ne.s32.totalorder %s157, %s158
    %p167 = scmp.eq.s32.totalorder %s23, 0
    %p168 = por %p166, %p167
    %p169 = scmp.ne.s32.totalorder %s157, %s158
    %p170 = scmp.eq.s32.totalorder %s24, 7
    %p171 = por %p169, %p170
    %p173 = scmp.ne.s32.totalorder %s158, %s172
    %p174 = scmp.eq.s32.totalorder %s24, 0
    %p175 = por %p173, %p174
    %s177 = sadd.s32 %s176, 1
    %p180 = scmp.eq.s32.totalorder %s18, 7
    %p181 = scmp.ne.s32.totalorder %s176, %s178
    %p182 = scmp.eq.s32.totalorder %s18, 0
    %p183 = por %p181, %p182
    %p184 = scmp.ne.s32.totalorder %s176, %s178
    %p185 = scmp.eq.s32.totalorder %s23, 7
    %p186 = por %p184, %p185
    %p187 = scmp.ne.s32.totalorder %s178, %s179
    %p188 = scmp.eq.s32.totalorder %s23, 0
    %p189 = por %p187, %p188
    %p190 = scmp.ne.s32.totalorder %s178, %s179
    %p191 = scmp.eq.s32.totalorder %s24, 7
    %p192 = por %p190, %p191
    %p194 = scmp.ne.s32.totalorder %s179, %s193
    %p195 = scmp.eq.s32.totalorder %s24, 0
    %p196 = por %p194, %p195
    %s198 = sadd.s32 %s197, 1
    %p201 = scmp.eq.s32.totalorder %s18, 7
    %p202 = scmp.ne.s32.totalorder %s197, %s199
    %p203 = scmp.eq.s32.totalorder %s18, 0
    %p204 = por %p202, %p203
    %p205 = scmp.ne.s32.totalorder %s197, %s199
    %p206 = scmp.eq.s32.totalorder %s23, 7
    %p207 = por %p205, %p206
    %p208 = scmp.ne.s32.totalorder %s199, %s200
    %p209 = scmp.eq.s32.totalorder %s23, 0
    %p210 = por %p208, %p209
    %p211 = scmp.ne.s32.totalorder %s199, %s200
    %p212 = scmp.eq.s32.totalorder %s24, 7
    %p213 = por %p211, %p212
    %p215 = scmp.ne.s32.totalorder %s200, %s214
    %p216 = scmp.eq.s32.totalorder %s24, 0
    %p217 = por %p215, %p216
    %s219 = sadd.s32 %s218, 1
    %p222 = scmp.eq.s32.totalorder %s18, 7
    %p223 = scmp.ne.s32.totalorder %s218, %s220
    %p224 = scmp.eq.s32.totalorder %s18, 0
    %p225 = por %p223, %p224
    %p226 = scmp.ne.s32.totalorder %s218, %s220
    %p227 = scmp.eq.s32.totalorder %s23, 7
    %p228 = por %p226, %p227
    %p229 = scmp.ne.s32.totalorder %s220, %s221
    %p230 = scmp.eq.s32.totalorder %s23, 0
    %p231 = por %p229, %p230
    %p232 = scmp.ne.s32.totalorder %s220, %s221
    %p233 = scmp.eq.s32.totalorder %s24, 7
    %p234 = por %p232, %p233
    %p236 = scmp.ne.s32.totalorder %s221, %s235
    %p237 = scmp.eq.s32.totalorder %s24, 0
    %p238 = por %p236, %p237
    %s240 = sadd.s32 %s239, 1
    %p243 = scmp.eq.s32.totalorder %s18, 7
    %p244 = scmp.ne.s32.totalorder %s239, %s241
    %p245 = scmp.eq.s32.totalorder %s18, 0
    %p246 = por %p244, %p245
    %p247 = scmp.ne.s32.totalorder %s239, %s241
    %p248 = scmp.eq.s32.totalorder %s23, 7
    %p249 = por %p247, %p248
    %p250 = scmp.ne.s32.totalorder %s241, %s242
    %p251 = scmp.eq.s32.totalorder %s23, 0
    %p252 = por %p250, %p251
    %p253 = scmp.ne.s32.totalorder %s241, %s242
    %p254 = scmp.eq.s32.totalorder %s24, 7
    %p255 = por %p253, %p254
    %p257 = scmp.ne.s32.totalorder %s242, %s256
    %p258 = scmp.eq.s32.totalorder %s24, 0
    %p259 = por %p257, %p258
    %s260 = ssub.s32 %s25, %s37
    %s261 = ssub.s32 %s26, %s33
    %s262 = sor.u32 %s260, %s261
    %p263 = scmp.eq.s32.totalorder %s262, 0
    %s265 = sadd.s32 %s264, 1
    %s266 = scalar_select %p263, %s264, %s265
    %p269 = pneg %p263
    %p270 = scmp.eq.s32.totalorder %s18, 7
    %p271 = por %p269, %p270
    %p272 = scmp.ne.s32.totalorder %s264, %s267
    %p273 = scmp.eq.s32.totalorder %s18, 0
    %p274 = por %p272, %p273
    %p275 = scmp.ne.s32.totalorder %s264, %s267
    %p276 = scmp.eq.s32.totalorder %s23, 7
    %p277 = por %p275, %p276
    %p278 = scmp.ne.s32.totalorder %s267, %s268
    %p279 = scmp.eq.s32.totalorder %s23, 0
    %p280 = por %p278, %p279
    %p281 = scmp.ne.s32.totalorder %s267, %s268
    %p282 = scmp.eq.s32.totalorder %s24, 7
    %p283 = por %p281, %p282
    %p285 = scmp.ne.s32.totalorder %s268, %s284
    %p286 = scmp.eq.s32.totalorder %s24, 0
    %p287 = por %p285, %p286
    %s288 = ssub.s32 %s25, %s37
    %s289 = ssub.s32 %s26, %s33
    %s290 = sor.u32 %s288, %s289
    %p291 = scmp.eq.s32.totalorder %s290, 0
    %s293 = sadd.s32 %s292, 1
    %s294 = scalar_select %p291, %s292, %s293
    %p297 = pneg %p291
    %p298 = scmp.eq.s32.totalorder %s18, 7
    %p299 = por %p297, %p298
    %p300 = scmp.ne.s32.totalorder %s292, %s295
    %p301 = scmp.eq.s32.totalorder %s18, 0
    %p302 = por %p300, %p301
    %p303 = scmp.ne.s32.totalorder %s292, %s295
    %p304 = scmp.eq.s32.totalorder %s23, 7
    %p305 = por %p303, %p304
    %p306 = scmp.ne.s32.totalorder %s295, %s296
    %p307 = scmp.eq.s32.totalorder %s23, 0
    %p308 = por %p306, %p307
    %p309 = scmp.ne.s32.totalorder %s295, %s296
    %p310 = scmp.eq.s32.totalorder %s24, 7
    %p311 = por %p309, %p310
    %p313 = scmp.ne.s32.totalorder %s296, %s312
    %p314 = scmp.eq.s32.totalorder %s24, 0
    %p315 = por %p313, %p314
    %p316 = scmp.le.s32.totalorder 1, %s18
    %p317 = scmp.lt.s32.totalorder %s18, 9
    %p318 = pnand %p316, %p317
    %p319 = pneg %p318
    // Predicated region
    $region9: #{cvml_forward.1} parent=5 // pred_check
      _
    $region10: #{cvml_forward.1} parent=5 // pred_check_branch
      %321 = sbr.rel (%p318) target = $region12
    $region11: #{cvml_forward.1} parent=5 // pred_region
      %s322 = ssub.s32 %s18, 1
      // Predicated region
      $region13: #{cvml_forward.1} parent=11 // pred_check
        %p323 = pneg %p105
      $region14: #{cvml_forward.1} parent=11 // pred_check_branch
        %325 = sbr.rel (%p323) target = $region16
      $region15: #{cvml_forward.1} parent=11 // pred_region
        _
      $region16: #{cvml_forward.1} parent=11 // pred_fallthru
        _
      // Predicated region
      $region17: #{cvml_forward.1} parent=11 // pred_check
        %p326 = pneg %p126
      $region18: #{cvml_forward.1} parent=11 // pred_check_branch
        %328 = sbr.rel (%p326) target = $region20
      $region19: #{cvml_forward.1} parent=11 // pred_region
        _
      $region20: #{cvml_forward.1} parent=11 // pred_fallthru
        _
      // Predicated region
      $region21: #{cvml_forward.1} parent=11 // pred_check
        %p329 = pneg %p147
      $region22: #{cvml_forward.1} parent=11 // pred_check_branch
        %331 = sbr.rel (%p329) target = $region24
      $region23: #{cvml_forward.1} parent=11 // pred_region
        _
      $region24: #{cvml_forward.1} parent=11 // pred_fallthru
        _
      // Predicated region
      $region25: #{cvml_forward.1} parent=11 // pred_check
        %p332 = pneg %p168
      $region26: #{cvml_forward.1} parent=11 // pred_check_branch
        %334 = sbr.rel (%p332) target = $region28
      $region27: #{cvml_forward.1} parent=11 // pred_region
        _
      $region28: #{cvml_forward.1} parent=11 // pred_fallthru
        _
      // Predicated region
      $region29: #{cvml_forward.1} parent=11 // pred_check
        %p335 = pneg %p189
      $region30: #{cvml_forward.1} parent=11 // pred_check_branch
        %337 = sbr.rel (%p335) target = $region32
      $region31: #{cvml_forward.1} parent=11 // pred_region
        _
      $region32: #{cvml_forward.1} parent=11 // pred_fallthru
        _
      // Predicated region
      $region33: #{cvml_forward.1} parent=11 // pred_check
        %p338 = pneg %p210
      $region34: #{cvml_forward.1} parent=11 // pred_check_branch
        %340 = sbr.rel (%p338) target = $region36
      $region35: #{cvml_forward.1} parent=11 // pred_region
        _
      $region36: #{cvml_forward.1} parent=11 // pred_fallthru
        _
      // Predicated region
      $region37: #{cvml_forward.1} parent=11 // pred_check
        %p341 = pneg %p231
      $region38: #{cvml_forward.1} parent=11 // pred_check_branch
        %343 = sbr.rel (%p341) target = $region40
      $region39: #{cvml_forward.1} parent=11 // pred_region
        _
      $region40: #{cvml_forward.1} parent=11 // pred_fallthru
        _
      // Predicated region
      $region41: #{cvml_forward.1} parent=11 // pred_check
        %p344 = pneg %p252
      $region42: #{cvml_forward.1} parent=11 // pred_check_branch
        %346 = sbr.rel (%p344) target = $region44
      $region43: #{cvml_forward.1} parent=11 // pred_region
        _
      $region44: #{cvml_forward.1} parent=11 // pred_fallthru
        _
    $region12: #{cvml_forward.1} parent=5 // pred_fallthru
      _
    %p347 = scmp.lt.s32.totalorder %s18, 8
    // Predicated region
    $region45: #{cvml_forward.1} parent=5 // pred_check
      %p348 = pneg %p347
    $region46: #{cvml_forward.1} parent=5 // pred_check_branch
      %350 = sbr.rel (%p348) target = $region48
    $region47: #{cvml_forward.1} parent=5 // pred_region
      // Predicated region
      $region49: #{cvml_forward.1} parent=47 // pred_check
        %p351 = pneg %p50
      $region50: #{cvml_forward.1} parent=47 // pred_check_branch
        %353 = sbr.rel (%p351) target = $region52
      $region51: #{cvml_forward.1} parent=47 // pred_region
        %p354 = scmp.lt.s32.totalorder %s25, 1
        %s355 = scalar_select %p354, %s25, 1
        %s356 = smul.addr %s355, 2
        %s357 = scalar_lea.vmem %s0, %s356
      $region52: #{cvml_forward.1} parent=47 // pred_fallthru
        _
      // Predicated region
      $region53: #{cvml_forward.1} parent=47 // pred_check
        %p358 = pneg %p78
      $region54: #{cvml_forward.1} parent=47 // pred_check_branch
        %360 = sbr.rel (%p358) target = $region56
      $region55: #{cvml_forward.1} parent=47 // pred_region
        %s361 = smul.u32 16, %s26
        %p362 = scmp.lt.s32.totalorder %s25, 1
        %s363 = scalar_select %p362, %s25, 1
        %p364 = scmp.lt.s32.totalorder %s361, 63
        %s365 = scalar_select %p364, %s361, 63
        %s366 = smul.addr %s363, 64
        %s367 = sadd.s32 %s365, %s366
        %s368 = smul.addr %s367, 2
        %s369 = scalar_lea.vmem %s1, %s368
        %s370 = smul.u32 16, %s26
      $region56: #{cvml_forward.1} parent=47 // pred_fallthru
        _
    $region48: #{cvml_forward.1} parent=5 // pred_fallthru
      _
    %p371 = scmp.le.s32.totalorder 1, %s18
    %p372 = scmp.lt.s32.totalorder %s18, 9
    %p373 = pnand %p371, %p372
    %p374 = pneg %p373
    // Predicated region
    $region57: #{cvml_forward.1} parent=5 // pred_check
      _
    $region58: #{cvml_forward.1} parent=5 // pred_check_branch
      %376 = sbr.rel (%p373) target = $region60
    $region59: #{cvml_forward.1} parent=5 // pred_region
      %s377 = ssub.s32 %s18, 1
      %p378 = scmp.lt.s32.totalorder %s27, 1
      %s379 = scalar_select %p378, %s27, 1
      %s380 = smul.addr %s379, 2
      %s381 = scalar_lea.vmem %s0, %s380
      %p382 = pneg %p56
      %p383 = pneg %p53
      %s384 = smul.u32 16, %s28
      %p385 = scmp.lt.s32.totalorder %s27, 1
      %s386 = scalar_select %p385, %s27, 1
      %p387 = scmp.lt.s32.totalorder %s384, 63
      %s388 = scalar_select %p387, %s384, 63
      %s389 = smul.addr %s386, 64
      %s390 = sadd.s32 %s388, %s389
      %s391 = smul.addr %s390, 2
      %s392 = scalar_lea.vmem %s1, %s391
      %p393 = pneg %p84
      %p394 = pneg %p81
      %p395 = pneg %p105
      %p396 = pneg %p102
      %p397 = pneg %p126
      %p398 = pneg %p123
      %p399 = pneg %p147
      %p400 = pneg %p144
      %p401 = pneg %p168
      %p402 = pneg %p165
      %p403 = pneg %p189
      %p404 = pneg %p186
      %p405 = pneg %p210
      %p406 = pneg %p207
      %p407 = pneg %p231
      %p408 = pneg %p228
      %p409 = pneg %p252
      %p410 = pneg %p249
      %p411 = pneg %p280
      %p412 = pneg %p277
      %s413 = smul.u32 16, %s28
      %p414 = scmp.lt.s32.totalorder %s27, 1
      %s415 = scalar_select %p414, %s27, 1
      %p416 = scmp.lt.s32.totalorder %s413, 63
      %s417 = scalar_select %p416, %s413, 63
      %s418 = smul.addr %s415, 64
      %s419 = sadd.s32 %s417, %s418
      %s420 = smul.addr %s419, 8
      %s421 = scalar_lea.vmem %s10, %s420
      %p422 = pneg %p308
      %p423 = pneg %p305
      %p424 = scmp.lt.s32.totalorder %s27, 1
      %s425 = scalar_select %p424, %s27, 1
      %p426 = scmp.lt.s32.totalorder %s28, 3
      %s427 = scalar_select %p426, %s28, 3
      %s428 = smul.addr %s425, 4
      %s429 = sadd.s32 %s427, %s428
      %s430 = scalar_lea.vmem %s11, %s429
      %p431 = scmp.lt.s32.totalorder %s27, 1
      %s432 = scalar_select %p431, %s27, 1
      %s433 = smul.addr %s432, 2
      %s434 = scalar_lea.vmem %s0, %s433
      %s435 = smul.u32 16, %s28
      %p436 = scmp.lt.s32.totalorder %s27, 1
      %s437 = scalar_select %p436, %s27, 1
      %p438 = scmp.lt.s32.totalorder %s435, 63
      %s439 = scalar_select %p438, %s435, 63
      %s440 = smul.addr %s437, 64
      %s441 = sadd.s32 %s439, %s440
      %s442 = smul.addr %s441, 2
      %s443 = scalar_lea.vmem %s1, %s442
      %s444 = smul.u32 16, %s28
      %s445 = smul.u32 16, %s28
      %p446 = scmp.lt.s32.totalorder %s27, 1
      %s447 = scalar_select %p446, %s27, 1
      %p448 = scmp.lt.s32.totalorder %s445, 63
      %s449 = scalar_select %p448, %s445, 63
      %s450 = smul.addr %s447, 64
      %s451 = sadd.s32 %s449, %s450
      %s452 = smul.addr %s451, 8
      %s453 = scalar_lea.vmem %s10, %s452
      %s454 = smul.u32 16, %s28
      %p455 = scmp.lt.s32.totalorder %s27, 1
      %s456 = scalar_select %p455, %s27, 1
      %p457 = scmp.lt.s32.totalorder %s28, 3
      %s458 = scalar_select %p457, %s28, 3
      %s459 = smul.addr %s456, 4
      %s460 = sadd.s32 %s458, %s459
      %s461 = scalar_lea.vmem %s11, %s460
      %v464 = vld [vmem:[%s434] sm:$0x3]
      %vm465 = vcmask 254976
      %v468 = vsel %vm465, %v464, 4286644096
      %v470 = vunpack.i.l.bf16 %v468
      %v471 = vunpack.i.h.bf16 %v468
      %v472 = vmax.f32 %v470, %v471
      %v473 = vrot.slane %v472, 4
      %v474 = vmax.f32 %v472, %v473
      %v475 = vrot.slane %v474, 2
      %v476 = vmax.f32 %v474, %v475
      %v477 = vrot.slane %v476, 1
      %v478 = vmax.f32 %v476, %v477
      %v479 = vpack.i.bf16 %v478, %v478
      %v480 = vld [vmem:[%s2] sm:$0xf]
      %v481 = vld [vmem:[%s2 + $0x4] sm:$0xf]
      %v482 = vld [vmem:[%s2 + $0x8] sm:$0xf]
      %v483 = vld [vmem:[%s2 + $0xc] sm:$0xf]
      %v484 = vld [vmem:[%s3] sm:$0x1]
      %v489 = vunpack.c.l.b16 %v480
      %v490 = vunpack.c.l.b16 %v481
      %v491 = vunpack.c.l.b16 %v482
      %v492 = vunpack.c.l.b16 %v483
      %v493 = vpack.c.b16 %v490, %v489
      %v494 = vpack.c.b16 %v492, %v491
      %vm497 = vcmask 261120
      %v499 = vsel %vm497, %v479, 0
      %501 = vmatprep.subr.bf16.mxu0 0
      %502 = vmatpush1.bf16.msra.mxu0 %v493
      %503 = vmatprep.subr.bf16.mxu0 0
      %504 = vmatpush1.bf16.msra.mxu0 %v494
      %505 = vmatprep.subr.bf16.mxu0 0
      %506 = vmatpush1.bf16.msra.mxu0 0
      %507 = vmatprep.subr.bf16.mxu0 0
      %508 = vmatpush1.bf16.msra.mxu0 0
      %509 = vmatprep.subr.bf16.mxu0 0
      %510 = vmatpush1.bf16.msra.mxu0 0
      %511 = vmatprep.subr.bf16.mxu0 0
      %512 = vmatpush1.bf16.msra.mxu0 0
      %513 = vmatprep.subr.bf16.mxu0 0
      %514 = vmatpush1.bf16.msra.mxu0 0
      %515 = vmatprep.subr.bf16.mxu0 0
      %516 = vmatpush1.bf16.msra.mxu0 0
      %517 = vmatprep.subr.bf16.mxu0 0
      %518 = vmatpush1.bf16.msra.mxu0 0
      %519 = vmatprep.subr.bf16.mxu0 0
      %520 = vmatpush1.bf16.msra.mxu0 0
      %521 = vmatprep.subr.bf16.mxu0 0
      %522 = vmatpush1.bf16.msra.mxu0 0
      %523 = vmatprep.subr.bf16.mxu0 0
      %524 = vmatpush1.bf16.msra.mxu0 0
      %525 = vmatprep.subr.bf16.mxu0 0
      %526 = vmatpush1.bf16.msra.mxu0 0
      %527 = vmatprep.subr.bf16.mxu0 0
      %528 = vmatpush1.bf16.msra.mxu0 0
      %529 = vmatprep.subr.bf16.mxu0 0
      %530 = vmatpush1.bf16.msra.mxu0 0
      %531 = vmatprep.subr.bf16.mxu0 0
      %532 = vmatpush1.bf16.msra.mxu0 0
      %533 = vmatprep.mubr.bf16.mxu0 0
      %534 = vmatmul.mubr.bf16.gmra.mrb[0].mxu0 %v499
      %v535 = vpop.f32.mrb[0].mxu0
      %v536 = vadd.f32 %v484, %v535
      %v537 = vpop.f32.mrb[0].mxu0
      %v538 = vpop.f32.mrb[0].mxu0
      %v539 = vpop.f32.mrb[0].mxu0
      %540 = vdwg.mxu0
      %542 = vrot.lane.b32.xlu0 %v536, 112
      %v543 = vpop.permute.xlu0 %542
      %545 = vrot.lane.b32.xlu0 %v536, 96
      %v546 = vpop.permute.xlu0 %545
      %548 = vrot.lane.b32.xlu0 %v536, 80
      %v549 = vpop.permute.xlu0 %548
      %551 = vrot.lane.b32.xlu0 %v536, 64
      %v552 = vpop.permute.xlu0 %551
      %554 = vrot.lane.b32.xlu0 %v536, 48
      %v555 = vpop.permute.xlu0 %554
      %557 = vrot.lane.b32.xlu0 %v536, 32
      %v558 = vpop.permute.xlu0 %557
      %560 = vrot.lane.b32.xlu0 %v536, 16
      %v561 = vpop.permute.xlu0 %560
      %v563 = vcombine.low %v536, %v546
      %v565 = vunpack.c.l.s4 1983009808
      %v566 = vunpack.c.0.s8 %v565
      %v567 = vlaneseq
      %v568 = vshrl.u32 %v567, 7
      %v569 = vsub.s32 %v566, %v568
      %v570 = vrot.slane %v563, %v569
      %v571 = vcombine.low %v543, %v549
      %v573 = vunpack.c.l.s4 1983009808
      %v574 = vunpack.c.0.s8 %v573
      %v575 = vlaneseq
      %v576 = vshrl.u32 %v575, 7
      %v577 = vsub.s32 %v574, %v576
      %v578 = vrot.slane %v571, %v577
      %v579 = vcombine.low %v552, %v558
      %v581 = vunpack.c.l.s4 1983009808
      %v582 = vunpack.c.0.s8 %v581
      %v583 = vlaneseq
      %v584 = vshrl.u32 %v583, 7
      %v585 = vsub.s32 %v582, %v584
      %v586 = vrot.slane %v579, %v585
      %v587 = vcombine.low %v555, %v561
      %v589 = vunpack.c.l.s4 1983009808
      %v590 = vunpack.c.0.s8 %v589
      %v591 = vlaneseq
      %v592 = vshrl.u32 %v591, 7
      %v593 = vsub.s32 %v590, %v592
      %v594 = vrot.slane %v587, %v593
      %v595 = vcombine.low %v570, %v578
      %v597 = vunpack.c.l.s4 1934713408
      %v598 = vunpack.c.0.s8 %v597
      %v599 = vlaneseq
      %v600 = vshrl.u32 %v599, 7
      %v601 = vsub.s32 %v598, %v600
      %v602 = vrot.slane %v595, %v601
      %v603 = vcombine.low %v586, %v594
      %v605 = vunpack.c.l.s4 1934713408
      %v606 = vunpack.c.0.s8 %v605
      %v607 = vlaneseq
      %v608 = vshrl.u32 %v607, 7
      %v609 = vsub.s32 %v606, %v608
      %v610 = vrot.slane %v603, %v609
      %v611 = vcombine.low %v602, %v610
      %v612 = vpack.c.bf16 %v611, %v611
      %v613 = vld [vmem:[%s4] sm:$0xf]
      %v614 = vld [vmem:[%s4 + $0x4] sm:$0xf]
      %v615 = vld [vmem:[%s4 + $0x8] sm:$0xf]
      %v616 = vld [vmem:[%s4 + $0xc] sm:$0xf]
      %v617 = vld [vmem:[%s4 + $0x10] sm:$0xf]
      %v618 = vld [vmem:[%s4 + $0x14] sm:$0xf]
      %v619 = vld [vmem:[%s4 + $0x18] sm:$0xf]
      %v620 = vld [vmem:[%s4 + $0x1c] sm:$0xf]
      %v621 = vld [vmem:[%s4 + $0x20] sm:$0xf]
      %v622 = vld [vmem:[%s4 + $0x24] sm:$0xf]
      %v623 = vld [vmem:[%s4 + $0x28] sm:$0xf]
      %v624 = vld [vmem:[%s4 + $0x2c] sm:$0xf]
      %v625 = vld [vmem:[%s4 + $0x30] sm:$0xf]
      %v626 = vld [vmem:[%s4 + $0x34] sm:$0xf]
      %v627 = vld [vmem:[%s4 + $0x38] sm:$0xf]
      %v628 = vld [vmem:[%s4 + $0x3c] sm:$0xf]
      %629 = vxpose.xlu0.c.b16.start [1/8] %v612, 128
      %630 = vxpose.xlu0.c.b16.cont [2/8] 0, 128
      %631 = vxpose.xlu0.c.b16.cont [3/8] 0, 128
      %632 = vxpose.xlu0.c.b16.cont [4/8] 0, 128
      %633 = vxpose.xlu0.c.b16.cont [5/8] 0, 128
      %634 = vxpose.xlu0.c.b16.cont [6/8] 0, 128
      %635 = vxpose.xlu0.c.b16.cont [7/8] 0, 128
      %636 = vxpose.xlu0.c.b16.end [8/8] 0, 128
      %v637 = vpop.trf.xlu0
      %v638 = vpop.trf.xlu0
      %v639 = vpop.trf.xlu0
      %v640 = vpop.trf.xlu0
      %v641 = vpop.trf.xlu0
      %v642 = vpop.trf.xlu0
      %v643 = vpop.trf.xlu0
      %v644 = vpop.trf.xlu0
      %v647 = vpack.i.b16 0, %v637
      %v649 = vshrl.u32 %v637, 16
      %v650 = vshrl.u32 0, 16
      %v651 = vpack.i.b16 %v650, %v649
      %v653 = vpack.i.b16 0, 0
      %v655 = vpack.i.b16 %v650, %v650
      %v657 = vcombine.high %v647, %v653
      %v659 = vunpack.c.l.s4 1983009808
      %v660 = vunpack.c.0.s8 %v659
      %v661 = vlaneseq
      %v662 = vshrl.u32 %v661, 7
      %v663 = vsub.s32 %v660, %v662
      %v664 = vrot.slane %v647, %v663
      %v666 = vunpack.c.l.s4 1983009808
      %v667 = vunpack.c.0.s8 %v666
      %v668 = vlaneseq
      %v669 = vshrl.u32 %v668, 7
      %v670 = vsub.s32 %v667, %v669
      %v671 = vrot.slane %v657, %v670
      %v672 = vcombine.high %v664, 0
      %v674 = vunpack.c.l.s4 1934713408
      %v675 = vunpack.c.0.s8 %v674
      %v676 = vlaneseq
      %v677 = vshrl.u32 %v676, 7
      %v678 = vsub.s32 %v675, %v677
      %v679 = vrot.slane %v664, %v678
      %v681 = vunpack.c.l.s4 1934713408
      %v682 = vunpack.c.0.s8 %v681
      %v683 = vlaneseq
      %v684 = vshrl.u32 %v683, 7
      %v685 = vsub.s32 %v682, %v684
      %v686 = vrot.slane %v672, %v685
      %v687 = vcombine.high %v671, 0
      %v689 = vunpack.c.l.s4 1934713408
      %v690 = vunpack.c.0.s8 %v689
      %v691 = vlaneseq
      %v692 = vshrl.u32 %v691, 7
      %v693 = vsub.s32 %v690, %v692
      %v694 = vrot.slane %v671, %v693
      %v696 = vunpack.c.l.s4 1934713408
      %v697 = vunpack.c.0.s8 %v696
      %v698 = vlaneseq
      %v699 = vshrl.u32 %v698, 7
      %v700 = vsub.s32 %v697, %v699
      %v701 = vrot.slane %v687, %v700
      %v702 = vcombine.high %v679, 0
      %v703 = vcombine.high %v686, 0
      %v704 = vcombine.high %v694, 0
      %v705 = vcombine.high %v701, 0
      %v706 = vcombine.high %v651, %v655
      %v708 = vunpack.c.l.s4 1983009808
      %v709 = vunpack.c.0.s8 %v708
      %v710 = vlaneseq
      %v711 = vshrl.u32 %v710, 7
      %v712 = vsub.s32 %v709, %v711
      %v713 = vrot.slane %v651, %v712
      %v715 = vunpack.c.l.s4 1983009808
      %v716 = vunpack.c.0.s8 %v715
      %v717 = vlaneseq
      %v718 = vshrl.u32 %v717, 7
      %v719 = vsub.s32 %v716, %v718
      %v720 = vrot.slane %v706, %v719
      %v721 = vcombine.high %v713, 0
      %v723 = vunpack.c.l.s4 1934713408
      %v724 = vunpack.c.0.s8 %v723
      %v725 = vlaneseq
      %v726 = vshrl.u32 %v725, 7
      %v727 = vsub.s32 %v724, %v726
      %v728 = vrot.slane %v713, %v727
      %v730 = vunpack.c.l.s4 1934713408
      %v731 = vunpack.c.0.s8 %v730
      %v732 = vlaneseq
      %v733 = vshrl.u32 %v732, 7
      %v734 = vsub.s32 %v731, %v733
      %v735 = vrot.slane %v721, %v734
      %v736 = vcombine.high %v720, 0
      %v738 = vunpack.c.l.s4 1934713408
      %v739 = vunpack.c.0.s8 %v738
      %v740 = vlaneseq
      %v741 = vshrl.u32 %v740, 7
      %v742 = vsub.s32 %v739, %v741
      %v743 = vrot.slane %v720, %v742
      %v745 = vunpack.c.l.s4 1934713408
      %v746 = vunpack.c.0.s8 %v745
      %v747 = vlaneseq
      %v748 = vshrl.u32 %v747, 7
      %v749 = vsub.s32 %v746, %v748
      %v750 = vrot.slane %v736, %v749
      %v751 = vcombine.high %v728, 0
      %v752 = vcombine.high %v735, 0
      %v753 = vcombine.high %v743, 0
      %v754 = vcombine.high %v750, 0
      %755 = vxpose.xlu0.c.b16.start [1/8] %v679, 128
      %756 = vxpose.xlu0.c.b16.cont [2/8] 0, 128
      %757 = vxpose.xlu0.c.b16.cont [3/8] 0, 128
      %758 = vxpose.xlu0.c.b16.cont [4/8] 0, 128
      %759 = vxpose.xlu0.c.b16.cont [5/8] 0, 128
      %760 = vxpose.xlu0.c.b16.cont [6/8] 0, 128
      %761 = vxpose.xlu0.c.b16.cont [7/8] 0, 128
      %762 = vxpose.xlu0.c.b16.end [8/8] 0, 128
      %v763 = vpop.trf.xlu0
      %v764 = vpop.trf.xlu0
      %v765 = vpop.trf.xlu0
      %v766 = vpop.trf.xlu0
      %v767 = vpop.trf.xlu0
      %v768 = vpop.trf.xlu0
      %v769 = vpop.trf.xlu0
      %v770 = vpop.trf.xlu0
      %771 = vxpose.xlu0.c.b16.start [1/8] %v728, 128
      %772 = vxpose.xlu0.c.b16.cont [2/8] 0, 128
      %773 = vxpose.xlu0.c.b16.cont [3/8] 0, 128
      %774 = vxpose.xlu0.c.b16.cont [4/8] 0, 128
      %775 = vxpose.xlu0.c.b16.cont [5/8] 0, 128
      %776 = vxpose.xlu0.c.b16.cont [6/8] 0, 128
      %777 = vxpose.xlu0.c.b16.cont [7/8] 0, 128
      %778 = vxpose.xlu0.c.b16.end [8/8] 0, 128
      %v779 = vpop.trf.xlu0
      %v780 = vpop.trf.xlu0
      %v781 = vpop.trf.xlu0
      %v782 = vpop.trf.xlu0
      %v783 = vpop.trf.xlu0
      %v784 = vpop.trf.xlu0
      %v785 = vpop.trf.xlu0
      %v786 = vpop.trf.xlu0
      %787 = vxpose.xlu0.c.b16.start [1/8] %v702, 128
      %788 = vxpose.xlu0.c.b16.cont [2/8] 0, 128
      %789 = vxpose.xlu0.c.b16.cont [3/8] 0, 128
      %790 = vxpose.xlu0.c.b16.cont [4/8] 0, 128
      %791 = vxpose.xlu0.c.b16.cont [5/8] 0, 128
      %792 = vxpose.xlu0.c.b16.cont [6/8] 0, 128
      %793 = vxpose.xlu0.c.b16.cont [7/8] 0, 128
      %794 = vxpose.xlu0.c.b16.end [8/8] 0, 128
      %v795 = vpop.trf.xlu0
      %v796 = vpop.trf.xlu0
      %v797 = vpop.trf.xlu0
      %v798 = vpop.trf.xlu0
      %v799 = vpop.trf.xlu0
      %v800 = vpop.trf.xlu0
      %v801 = vpop.trf.xlu0
      %v802 = vpop.trf.xlu0
      %803 = vxpose.xlu0.c.b16.start [1/8] %v751, 128
      %804 = vxpose.xlu0.c.b16.cont [2/8] 0, 128
      %805 = vxpose.xlu0.c.b16.cont [3/8] 0, 128
      %806 = vxpose.xlu0.c.b16.cont [4/8] 0, 128
      %807 = vxpose.xlu0.c.b16.cont [5/8] 0, 128
      %808 = vxpose.xlu0.c.b16.cont [6/8] 0, 128
      %809 = vxpose.xlu0.c.b16.cont [7/8] 0, 128
      %810 = vxpose.xlu0.c.b16.end [8/8] 0, 128
      %v811 = vpop.trf.xlu0
      %v812 = vpop.trf.xlu0
      %v813 = vpop.trf.xlu0
      %v814 = vpop.trf.xlu0
      %v815 = vpop.trf.xlu0
      %v816 = vpop.trf.xlu0
      %v817 = vpop.trf.xlu0
      %v818 = vpop.trf.xlu0
      %819 = vxpose.xlu0.c.b16.start [1/8] %v686, 128
      %820 = vxpose.xlu0.c.b16.cont [2/8] 0, 128
      %821 = vxpose.xlu0.c.b16.cont [3/8] 0, 128
      %822 = vxpose.xlu0.c.b16.cont [4/8] 0, 128
      %823 = vxpose.xlu0.c.b16.cont [5/8] 0, 128
      %824 = vxpose.xlu0.c.b16.cont [6/8] 0, 128
      %825 = vxpose.xlu0.c.b16.cont [7/8] 0, 128
      %826 = vxpose.xlu0.c.b16.end [8/8] 0, 128
      %v827 = vpop.trf.xlu0
      %v828 = vpop.trf.xlu0
      %v829 = vpop.trf.xlu0
      %v830 = vpop.trf.xlu0
      %v831 = vpop.trf.xlu0
      %v832 = vpop.trf.xlu0
      %v833 = vpop.trf.xlu0
      %v834 = vpop.trf.xlu0
      %835 = vxpose.xlu0.c.b16.start [1/8] %v735, 128
      %836 = vxpose.xlu0.c.b16.cont [2/8] 0, 128
      %837 = vxpose.xlu0.c.b16.cont [3/8] 0, 128
      %838 = vxpose.xlu0.c.b16.cont [4/8] 0, 128
      %839 = vxpose.xlu0.c.b16.cont [5/8] 0, 128
      %840 = vxpose.xlu0.c.b16.cont [6/8] 0, 128
      %841 = vxpose.xlu0.c.b16.cont [7/8] 0, 128
      %842 = vxpose.xlu0.c.b16.end [8/8] 0, 128
      %v843 = vpop.trf.xlu0
      %v844 = vpop.trf.xlu0
      %v845 = vpop.trf.xlu0
      %v846 = vpop.trf.xlu0
      %v847 = vpop.trf.xlu0
      %v848 = vpop.trf.xlu0
      %v849 = vpop.trf.xlu0
      %v850 = vpop.trf.xlu0
      %851 = vxpose.xlu0.c.b16.start [1/8] %v703, 128
      %852 = vxpose.xlu0.c.b16.cont [2/8] 0, 128
      %853 = vxpose.xlu0.c.b16.cont [3/8] 0, 128
      %854 = vxpose.xlu0.c.b16.cont [4/8] 0, 128
      %855 = vxpose.xlu0.c.b16.cont [5/8] 0, 128
      %856 = vxpose.xlu0.c.b16.cont [6/8] 0, 128
      %857 = vxpose.xlu0.c.b16.cont [7/8] 0, 128
      %858 = vxpose.xlu0.c.b16.end [8/8] 0, 128
      %v859 = vpop.trf.xlu0
      %v860 = vpop.trf.xlu0
      %v861 = vpop.trf.xlu0
      %v862 = vpop.trf.xlu0
      %v863 = vpop.trf.xlu0
      %v864 = vpop.trf.xlu0
      %v865 = vpop.trf.xlu0
      %v866 = vpop.trf.xlu0
      %867 = vxpose.xlu0.c.b16.start [1/8] %v752, 128
      %868 = vxpose.xlu0.c.b16.cont [2/8] 0, 128
      %869 = vxpose.xlu0.c.b16.cont [3/8] 0, 128
      %870 = vxpose.xlu0.c.b16.cont [4/8] 0, 128
      %871 = vxpose.xlu0.c.b16.cont [5/8] 0, 128
      %872 = vxpose.xlu0.c.b16.cont [6/8] 0, 128
      %873 = vxpose.xlu0.c.b16.cont [7/8] 0, 128
      %874 = vxpose.xlu0.c.b16.end [8/8] 0, 128
      %v875 = vpop.trf.xlu0
      %v876 = vpop.trf.xlu0
      %v877 = vpop.trf.xlu0
      %v878 = vpop.trf.xlu0
      %v879 = vpop.trf.xlu0
      %v880 = vpop.trf.xlu0
      %v881 = vpop.trf.xlu0
      %v882 = vpop.trf.xlu0
      %883 = vxpose.xlu0.c.b16.start [1/8] %v694, 128
      %884 = vxpose.xlu0.c.b16.cont [2/8] 0, 128
      %885 = vxpose.xlu0.c.b16.cont [3/8] 0, 128
      %886 = vxpose.xlu0.c.b16.cont [4/8] 0, 128
      %887 = vxpose.xlu0.c.b16.cont [5/8] 0, 128
      %888 = vxpose.xlu0.c.b16.cont [6/8] 0, 128
      %889 = vxpose.xlu0.c.b16.cont [7/8] 0, 128
      %890 = vxpose.xlu0.c.b16.end [8/8] 0, 128
      %v891 = vpop.trf.xlu0
      %v892 = vpop.trf.xlu0
      %v893 = vpop.trf.xlu0
      %v894 = vpop.trf.xlu0
      %v895 = vpop.trf.xlu0
      %v896 = vpop.trf.xlu0
      %v897 = vpop.trf.xlu0
      %v898 = vpop.trf.xlu0
      %899 = vxpose.xlu0.c.b16.start [1/8] %v743, 128
      %900 = vxpose.xlu0.c.b16.cont [2/8] 0, 128
      %901 = vxpose.xlu0.c.b16.cont [3/8] 0, 128
      %902 = vxpose.xlu0.c.b16.cont [4/8] 0, 128
      %903 = vxpose.xlu0.c.b16.cont [5/8] 0, 128
      %904 = vxpose.xlu0.c.b16.cont [6/8] 0, 128
      %905 = vxpose.xlu0.c.b16.cont [7/8] 0, 128
      %906 = vxpose.xlu0.c.b16.end [8/8] 0, 128
      %v907 = vpop.trf.xlu0
      %v908 = vpop.trf.xlu0
      %v909 = vpop.trf.xlu0
      %v910 = vpop.trf.xlu0
      %v911 = vpop.trf.xlu0
      %v912 = vpop.trf.xlu0
      %v913 = vpop.trf.xlu0
      %v914 = vpop.trf.xlu0
      %915 = vxpose.xlu0.c.b16.start [1/8] %v704, 128
      %916 = vxpose.xlu0.c.b16.cont [2/8] 0, 128
      %917 = vxpose.xlu0.c.b16.cont [3/8] 0, 128
      %918 = vxpose.xlu0.c.b16.cont [4/8] 0, 128
      %919 = vxpose.xlu0.c.b16.cont [5/8] 0, 128
      %920 = vxpose.xlu0.c.b16.cont [6/8] 0, 128
      %921 = vxpose.xlu0.c.b16.cont [7/8] 0, 128
      %922 = vxpose.xlu0.c.b16.end [8/8] 0, 128
      %v923 = vpop.trf.xlu0
      %v924 = vpop.trf.xlu0
      %v925 = vpop.trf.xlu0
      %v926 = vpop.trf.xlu0
      %v927 = vpop.trf.xlu0
      %v928 = vpop.trf.xlu0
      %v929 = vpop.trf.xlu0
      %v930 = vpop.trf.xlu0
      %931 = vxpose.xlu0.c.b16.start [1/8] %v753, 128
      %932 = vxpose.xlu0.c.b16.cont [2/8] 0, 128
      %933 = vxpose.xlu0.c.b16.cont [3/8] 0, 128
      %934 = vxpose.xlu0.c.b16.cont [4/8] 0, 128
      %935 = vxpose.xlu0.c.b16.cont [5/8] 0, 128
      %936 = vxpose.xlu0.c.b16.cont [6/8] 0, 128
      %937 = vxpose.xlu0.c.b16.cont [7/8] 0, 128
      %938 = vxpose.xlu0.c.b16.end [8/8] 0, 128
      %v939 = vpop.trf.xlu0
      %v940 = vpop.trf.xlu0
      %v941 = vpop.trf.xlu0
      %v942 = vpop.trf.xlu0
      %v943 = vpop.trf.xlu0
      %v944 = vpop.trf.xlu0
      %v945 = vpop.trf.xlu0
      %v946 = vpop.trf.xlu0
      %947 = vxpose.xlu0.c.b16.start [1/8] %v701, 128
      %948 = vxpose.xlu0.c.b16.cont [2/8] 0, 128
      %949 = vxpose.xlu0.c.b16.cont [3/8] 0, 128
      %950 = vxpose.xlu0.c.b16.cont [4/8] 0, 128
      %951 = vxpose.xlu0.c.b16.cont [5/8] 0, 128
      %952 = vxpose.xlu0.c.b16.cont [6/8] 0, 128
      %953 = vxpose.xlu0.c.b16.cont [7/8] 0, 128
      %954 = vxpose.xlu0.c.b16.end [8/8] 0, 128
      %v955 = vpop.trf.xlu0
      %v956 = vpop.trf.xlu0
      %v957 = vpop.trf.xlu0
      %v958 = vpop.trf.xlu0
      %v959 = vpop.trf.xlu0
      %v960 = vpop.trf.xlu0
      %v961 = vpop.trf.xlu0
      %v962 = vpop.trf.xlu0
      %963 = vxpose.xlu0.c.b16.start [1/8] %v750, 128
      %964 = vxpose.xlu0.c.b16.cont [2/8] 0, 128
      %965 = vxpose.xlu0.c.b16.cont [3/8] 0, 128
      %966 = vxpose.xlu0.c.b16.cont [4/8] 0, 128
      %967 = vxpose.xlu0.c.b16.cont [5/8] 0, 128
      %968 = vxpose.xlu0.c.b16.cont [6/8] 0, 128
      %969 = vxpose.xlu0.c.b16.cont [7/8] 0, 128
      %970 = vxpose.xlu0.c.b16.end [8/8] 0, 128
      %v971 = vpop.trf.xlu0
      %v972 = vpop.trf.xlu0
      %v973 = vpop.trf.xlu0
      %v974 = vpop.trf.xlu0
      %v975 = vpop.trf.xlu0
      %v976 = vpop.trf.xlu0
      %v977 = vpop.trf.xlu0
      %v978 = vpop.trf.xlu0
      %979 = vxpose.xlu0.c.b16.start [1/8] %v705, 128
      %980 = vxpose.xlu0.c.b16.cont [2/8] 0, 128
      %981 = vxpose.xlu0.c.b16.cont [3/8] 0, 128
      %982 = vxpose.xlu0.c.b16.cont [4/8] 0, 128
      %983 = vxpose.xlu0.c.b16.cont [5/8] 0, 128
      %984 = vxpose.xlu0.c.b16.cont [6/8] 0, 128
      %985 = vxpose.xlu0.c.b16.cont [7/8] 0, 128
      %986 = vxpose.xlu0.c.b16.end [8/8] 0, 128
      %v987 = vpop.trf.xlu0
      %v988 = vpop.trf.xlu0
      %v989 = vpop.trf.xlu0
      %v990 = vpop.trf.xlu0
      %v991 = vpop.trf.xlu0
      %v992 = vpop.trf.xlu0
      %v993 = vpop.trf.xlu0
      %v994 = vpop.trf.xlu0
      %995 = vxpose.xlu0.c.b16.start [1/8] %v754, 128
      %996 = vxpose.xlu0.c.b16.cont [2/8] 0, 128
      %997 = vxpose.xlu0.c.b16.cont [3/8] 0, 128
      %998 = vxpose.xlu0.c.b16.cont [4/8] 0, 128
      %999 = vxpose.xlu0.c.b16.cont [5/8] 0, 128
      %1000 = vxpose.xlu0.c.b16.cont [6/8] 0, 128
      %1001 = vxpose.xlu0.c.b16.cont [7/8] 0, 128
      %1002 = vxpose.xlu0.c.b16.end [8/8] 0, 128
      %v1003 = vpop.trf.xlu0
      %v1004 = vpop.trf.xlu0
      %v1005 = vpop.trf.xlu0
      %v1006 = vpop.trf.xlu0
      %v1007 = vpop.trf.xlu0
      %v1008 = vpop.trf.xlu0
      %v1009 = vpop.trf.xlu0
      %v1010 = vpop.trf.xlu0
      %v1011 = vcombine.low %v763, %v827
      %v1013 = vunpack.c.l.s4 1983009808
      %v1014 = vunpack.c.0.s8 %v1013
      %v1015 = vlaneseq
      %v1016 = vshrl.u32 %v1015, 7
      %v1017 = vsub.s32 %v1014, %v1016
      %v1018 = vrot.slane %v1011, %v1017
      %v1019 = vcombine.low %v795, %v859
      %v1021 = vunpack.c.l.s4 1983009808
      %v1022 = vunpack.c.0.s8 %v1021
      %v1023 = vlaneseq
      %v1024 = vshrl.u32 %v1023, 7
      %v1025 = vsub.s32 %v1022, %v1024
      %v1026 = vrot.slane %v1019, %v1025
      %v1027 = vcombine.low %v891, %v955
      %v1029 = vunpack.c.l.s4 1983009808
      %v1030 = vunpack.c.0.s8 %v1029
      %v1031 = vlaneseq
      %v1032 = vshrl.u32 %v1031, 7
      %v1033 = vsub.s32 %v1030, %v1032
      %v1034 = vrot.slane %v1027, %v1033
      %v1035 = vcombine.low %v923, %v987
      %v1037 = vunpack.c.l.s4 1983009808
      %v1038 = vunpack.c.0.s8 %v1037
      %v1039 = vlaneseq
      %v1040 = vshrl.u32 %v1039, 7
      %v1041 = vsub.s32 %v1038, %v1040
      %v1042 = vrot.slane %v1035, %v1041
      %v1043 = vcombine.low %v1018, %v1026
      %v1044 = vcombine.high %v1018, %v1026
      %v1046 = vunpack.c.l.s4 1934713408
      %v1047 = vunpack.c.0.s8 %v1046
      %v1048 = vlaneseq
      %v1049 = vshrl.u32 %v1048, 7
      %v1050 = vsub.s32 %v1047, %v1049
      %v1051 = vrot.slane %v1043, %v1050
      %v1053 = vunpack.c.l.s4 1934713408
      %v1054 = vunpack.c.0.s8 %v1053
      %v1055 = vlaneseq
      %v1056 = vshrl.u32 %v1055, 7
      %v1057 = vsub.s32 %v1054, %v1056
      %v1058 = vrot.slane %v1044, %v1057
      %v1059 = vcombine.low %v1034, %v1042
      %v1060 = vcombine.high %v1034, %v1042
      %v1062 = vunpack.c.l.s4 1934713408
      %v1063 = vunpack.c.0.s8 %v1062
      %v1064 = vlaneseq
      %v1065 = vshrl.u32 %v1064, 7
      %v1066 = vsub.s32 %v1063, %v1065
      %v1067 = vrot.slane %v1059, %v1066
      %v1069 = vunpack.c.l.s4 1934713408
      %v1070 = vunpack.c.0.s8 %v1069
      %v1071 = vlaneseq
      %v1072 = vshrl.u32 %v1071, 7
      %v1073 = vsub.s32 %v1070, %v1072
      %v1074 = vrot.slane %v1060, %v1073
      %v1075 = vcombine.low %v1051, %v1067
      %v1076 = vcombine.high %v1051, %v1067
      %v1077 = vcombine.low %v1058, %v1074
      %v1078 = vcombine.high %v1058, %v1074
      %v1079 = vcombine.low %v779, %v843
      %v1081 = vunpack.c.l.s4 1983009808
      %v1082 = vunpack.c.0.s8 %v1081
      %v1083 = vlaneseq
      %v1084 = vshrl.u32 %v1083, 7
      %v1085 = vsub.s32 %v1082, %v1084
      %v1086 = vrot.slane %v1079, %v1085
      %v1087 = vcombine.low %v811, %v875
      %v1089 = vunpack.c.l.s4 1983009808
      %v1090 = vunpack.c.0.s8 %v1089
      %v1091 = vlaneseq
      %v1092 = vshrl.u32 %v1091, 7
      %v1093 = vsub.s32 %v1090, %v1092
      %v1094 = vrot.slane %v1087, %v1093
      %v1095 = vcombine.low %v907, %v971
      %v1097 = vunpack.c.l.s4 1983009808
      %v1098 = vunpack.c.0.s8 %v1097
      %v1099 = vlaneseq
      %v1100 = vshrl.u32 %v1099, 7
      %v1101 = vsub.s32 %v1098, %v1100
      %v1102 = vrot.slane %v1095, %v1101
      %v1103 = vcombine.low %v939, %v1003
      %v1105 = vunpack.c.l.s4 1983009808
      %v1106 = vunpack.c.0.s8 %v1105
      %v1107 = vlaneseq
      %v1108 = vshrl.u32 %v1107, 7
      %v1109 = vsub.s32 %v1106, %v1108
      %v1110 = vrot.slane %v1103, %v1109
      %v1111 = vcombine.low %v1086, %v1094
      %v1112 = vcombine.high %v1086, %v1094
      %v1114 = vunpack.c.l.s4 1934713408
      %v1115 = vunpack.c.0.s8 %v1114
      %v1116 = vlaneseq
      %v1117 = vshrl.u32 %v1116, 7
      %v1118 = vsub.s32 %v1115, %v1117
      %v1119 = vrot.slane %v1111, %v1118
      %v1121 = vunpack.c.l.s4 1934713408
      %v1122 = vunpack.c.0.s8 %v1121
      %v1123 = vlaneseq
      %v1124 = vshrl.u32 %v1123, 7
      %v1125 = vsub.s32 %v1122, %v1124
      %v1126 = vrot.slane %v1112, %v1125
      %v1127 = vcombine.low %v1102, %v1110
      %v1128 = vcombine.high %v1102, %v1110
      %v1130 = vunpack.c.l.s4 1934713408
      %v1131 = vunpack.c.0.s8 %v1130
      %v1132 = vlaneseq
      %v1133 = vshrl.u32 %v1132, 7
      %v1134 = vsub.s32 %v1131, %v1133
      %v1135 = vrot.slane %v1127, %v1134
      %v1137 = vunpack.c.l.s4 1934713408
      %v1138 = vunpack.c.0.s8 %v1137
      %v1139 = vlaneseq
      %v1140 = vshrl.u32 %v1139, 7
      %v1141 = vsub.s32 %v1138, %v1140
      %v1142 = vrot.slane %v1128, %v1141
      %v1143 = vcombine.low %v1119, %v1135
      %v1144 = vcombine.high %v1119, %v1135
      %v1145 = vcombine.low %v1126, %v1142
      %v1146 = vcombine.high %v1126, %v1142
      %v1149 = vpack.i.b16 %v1143, %v1075
      %v1151 = vshrl.u32 %v1075, 16
      %v1152 = vshrl.u32 %v1143, 16
      %v1153 = vpack.i.b16 %v1152, %v1151
      %v1157 = vpack.i.b16 %v1144, %v1076
      %v1159 = vshrl.u32 %v1076, 16
      %v1160 = vshrl.u32 %v1144, 16
      %v1161 = vpack.i.b16 %v1160, %v1159
      %v1165 = vpack.i.b16 %v1145, %v1077
      %v1167 = vshrl.u32 %v1077, 16
      %v1168 = vshrl.u32 %v1145, 16
      %v1169 = vpack.i.b16 %v1168, %v1167
      %v1173 = vpack.i.b16 %v1146, %v1078
      %v1175 = vshrl.u32 %v1078, 16
      %v1176 = vshrl.u32 %v1146, 16
      %v1177 = vpack.i.b16 %v1176, %v1175
      %v1181 = vunpack.c.l.b16 %v613
      %v1182 = vunpack.c.l.b16 %v614
      %v1183 = vpack.c.b16 %v1182, %v1181
      %1185 = vxpose.xlu0.c.b16.start [1/8] %v1183, 128
      %1186 = vxpose.xlu0.c.b16.cont [2/8] 0, 128
      %1187 = vxpose.xlu0.c.b16.cont [3/8] 0, 128
      %1188 = vxpose.xlu0.c.b16.cont [4/8] 0, 128
      %1189 = vxpose.xlu0.c.b16.cont [5/8] 0, 128
      %1190 = vxpose.xlu0.c.b16.cont [6/8] 0, 128
      %1191 = vxpose.xlu0.c.b16.cont [7/8] 0, 128
      %1192 = vxpose.xlu0.c.b16.end [8/8] 0, 128
      %v1193 = vpop.trf.xlu0
      %v1194 = vpop.trf.xlu0
      %v1195 = vpop.trf.xlu0
      %v1196 = vpop.trf.xlu0
      %v1197 = vpop.trf.xlu0
      %v1198 = vpop.trf.xlu0
      %v1199 = vpop.trf.xlu0
      %v1200 = vpop.trf.xlu0
      %vm1201 = vcmask 130048
      %v1203 = vsel %vm1201, %v1193, 0
      %v1206 = vsel %vm1201, %v1194, 0
      %1208 = vmatprep.subr.bf16.mxu0 0
      %1209 = vmatpush1.bf16.msra.mxu0 %v1149
      %1210 = vmatprep.subr.bf16.mxu0 0
      %1211 = vmatpush1.bf16.msra.mxu0 0
      %1212 = vmatprep.subr.bf16.mxu0 0
      %1213 = vmatpush1.bf16.msra.mxu0 0
      %1214 = vmatprep.subr.bf16.mxu0 0
      %1215 = vmatpush1.bf16.msra.mxu0 0
      %1216 = vmatprep.subr.bf16.mxu0 0
      %1217 = vmatpush1.bf16.msra.mxu0 0
      %1218 = vmatprep.subr.bf16.mxu0 0
      %1219 = vmatpush1.bf16.msra.mxu0 0
      %1220 = vmatprep.subr.bf16.mxu0 0
      %1221 = vmatpush1.bf16.msra.mxu0 0
      %1222 = vmatprep.subr.bf16.mxu0 0
      %1223 = vmatpush1.bf16.msra.mxu0 0
      %1224 = vmatprep.subr.bf16.mxu0 0
      %1225 = vmatpush1.bf16.msra.mxu0 0
      %1226 = vmatprep.subr.bf16.mxu0 0
      %1227 = vmatpush1.bf16.msra.mxu0 0
      %1228 = vmatprep.subr.bf16.mxu0 0
      %1229 = vmatpush1.bf16.msra.mxu0 0
      %1230 = vmatprep.subr.bf16.mxu0 0
      %1231 = vmatpush1.bf16.msra.mxu0 0
      %1232 = vmatprep.subr.bf16.mxu0 0
      %1233 = vmatpush1.bf16.msra.mxu0 0
      %1234 = vmatprep.subr.bf16.mxu0 0
      %1235 = vmatpush1.bf16.msra.mxu0 0
      %1236 = vmatprep.subr.bf16.mxu0 0
      %1237 = vmatpush1.bf16.msra.mxu0 0
      %1238 = vmatprep.subr.bf16.mxu0 0
      %1239 = vmatpush1.bf16.msra.mxu0 0
      %1240 = vmatprep.mubr.bf16.mxu0 0
      %1241 = vmatmul.mubr.bf16.gmra.mrb[0].mxu0 %v1203
      %v1242 = vpop.f32.mrb[0].mxu0
      %v1243 = vadd.f32 0.0, %v1242
      %v1244 = vpop.f32.mrb[0].mxu0
      %v1245 = vpop.f32.mrb[0].mxu0
      %v1246 = vadd.f32 0.0, %v1245
      %v1247 = vpop.f32.mrb[0].mxu0
      %1248 = vmatprep.mubr.bf16.mxu0 0
      %1249 = vmatmul.mubr.bf16.gmra.mrb[0].mxu0 %v1206
      %v1250 = vpop.f32.mrb[0].mxu0
      %v1251 = vadd.f32 0.0, %v1250
      %v1252 = vpop.f32.mrb[0].mxu0
      %v1253 = vpop.f32.mrb[0].mxu0
      %v1254 = vadd.f32 0.0, %v1253
      %v1255 = vpop.f32.mrb[0].mxu0
      %1256 = vdwg.mxu0
      %v1259 = vunpack.c.l.b16 %v615
      %v1260 = vunpack.c.l.b16 %v616
      %v1261 = vpack.c.b16 %v1260, %v1259
      %1263 = vxpose.xlu0.c.b16.start [1/8] %v1261, 128
      %1264 = vxpose.xlu0.c.b16.cont [2/8] 0, 128
      %1265 = vxpose.xlu0.c.b16.cont [3/8] 0, 128
      %1266 = vxpose.xlu0.c.b16.cont [4/8] 0, 128
      %1267 = vxpose.xlu0.c.b16.cont [5/8] 0, 128
      %1268 = vxpose.xlu0.c.b16.cont [6/8] 0, 128
      %1269 = vxpose.xlu0.c.b16.cont [7/8] 0, 128
      %1270 = vxpose.xlu0.c.b16.end [8/8] 0, 128
      %v1271 = vpop.trf.xlu0
      %v1272 = vpop.trf.xlu0
      %v1273 = vpop.trf.xlu0
      %v1274 = vpop.trf.xlu0
      %v1275 = vpop.trf.xlu0
      %v1276 = vpop.trf.xlu0
      %v1277 = vpop.trf.xlu0
      %v1278 = vpop.trf.xlu0
      %v1280 = vsel %vm1201, %v1271, 0
      %v1283 = vsel %vm1201, %v1272, 0
      %1285 = vmatprep.subr.bf16.mxu0 0
      %1286 = vmatpush1.bf16.msra.mxu0 %v1153
      %1287 = vmatprep.subr.bf16.mxu0 0
      %1288 = vmatpush1.bf16.msra.mxu0 0
      %1289 = vmatprep.subr.bf16.mxu0 0
      %1290 = vmatpush1.bf16.msra.mxu0 0
      %1291 = vmatprep.subr.bf16.mxu0 0
      %1292 = vmatpush1.bf16.msra.mxu0 0
      %1293 = vmatprep.subr.bf16.mxu0 0
      %1294 = vmatpush1.bf16.msra.mxu0 0
      %1295 = vmatprep.subr.bf16.mxu0 0
      %1296 = vmatpush1.bf16.msra.mxu0 0
      %1297 = vmatprep.subr.bf16.mxu0 0
      %1298 = vmatpush1.bf16.msra.mxu0 0
      %1299 = vmatprep.subr.bf16.mxu0 0
      %1300 = vmatpush1.bf16.msra.mxu0 0
      %1301 = vmatprep.subr.bf16.mxu0 0
      %1302 = vmatpush1.bf16.msra.mxu0 0
      %1303 = vmatprep.subr.bf16.mxu0 0
      %1304 = vmatpush1.bf16.msra.mxu0 0
      %1305 = vmatprep.subr.bf16.mxu0 0
      %1306 = vmatpush1.bf16.msra.mxu0 0
      %1307 = vmatprep.subr.bf16.mxu0 0
      %1308 = vmatpush1.bf16.msra.mxu0 0
      %1309 = vmatprep.subr.bf16.mxu0 0
      %1310 = vmatpush1.bf16.msra.mxu0 0
      %1311 = vmatprep.subr.bf16.mxu0 0
      %1312 = vmatpush1.bf16.msra.mxu0 0
      %1313 = vmatprep.subr.bf16.mxu0 0
      %1314 = vmatpush1.bf16.msra.mxu0 0
      %1315 = vmatprep.subr.bf16.mxu0 0
      %1316 = vmatpush1.bf16.msra.mxu0 0
      %1317 = vmatprep.mubr.bf16.mxu0 0
      %1318 = vmatmul.mubr.bf16.gmra.mrb[0].mxu0 %v1280
      %v1319 = vpop.f32.mrb[0].mxu0
      %v1320 = vadd.f32 0.0, %v1319
      %v1321 = vpop.f32.mrb[0].mxu0
      %v1322 = vpop.f32.mrb[0].mxu0
      %v1323 = vadd.f32 0.0, %v1322
      %v1324 = vpop.f32.mrb[0].mxu0
      %1325 = vmatprep.mubr.bf16.mxu0 0
      %1326 = vmatmul.mubr.bf16.gmra.mrb[0].mxu0 %v1283
      %v1327 = vpop.f32.mrb[0].mxu0
      %v1328 = vadd.f32 0.0, %v1327
      %v1329 = vpop.f32.mrb[0].mxu0
      %v1330 = vpop.f32.mrb[0].mxu0
      %v1331 = vadd.f32 0.0, %v1330
      %v1332 = vpop.f32.mrb[0].mxu0
      %1333 = vdwg.mxu0
      %v1336 = vunpack.c.l.b16 %v617
      %v1337 = vunpack.c.l.b16 %v618
      %v1338 = vpack.c.b16 %v1337, %v1336
      %1340 = vxpose.xlu0.c.b16.start [1/8] %v1338, 128
      %1341 = vxpose.xlu0.c.b16.cont [2/8] 0, 128
      %1342 = vxpose.xlu0.c.b16.cont [3/8] 0, 128
      %1343 = vxpose.xlu0.c.b16.cont [4/8] 0, 128
      %1344 = vxpose.xlu0.c.b16.cont [5/8] 0, 128
      %1345 = vxpose.xlu0.c.b16.cont [6/8] 0, 128
      %1346 = vxpose.xlu0.c.b16.cont [7/8] 0, 128
      %1347 = vxpose.xlu0.c.b16.end [8/8] 0, 128
      %v1348 = vpop.trf.xlu0
      %v1349 = vpop.trf.xlu0
      %v1350 = vpop.trf.xlu0
      %v1351 = vpop.trf.xlu0
      %v1352 = vpop.trf.xlu0
      %v1353 = vpop.trf.xlu0
      %v1354 = vpop.trf.xlu0
      %v1355 = vpop.trf.xlu0
      %v1357 = vsel %vm1201, %v1348, 0
      %v1360 = vsel %vm1201, %v1349, 0
      %1362 = vmatprep.subr.bf16.mxu0 0
      %1363 = vmatpush1.bf16.msra.mxu0 %v1157
      %1364 = vmatprep.subr.bf16.mxu0 0
      %1365 = vmatpush1.bf16.msra.mxu0 0
      %1366 = vmatprep.subr.bf16.mxu0 0
      %1367 = vmatpush1.bf16.msra.mxu0 0
      %1368 = vmatprep.subr.bf16.mxu0 0
      %1369 = vmatpush1.bf16.msra.mxu0 0
      %1370 = vmatprep.subr.bf16.mxu0 0
      %1371 = vmatpush1.bf16.msra.mxu0 0
      %1372 = vmatprep.subr.bf16.mxu0 0
      %1373 = vmatpush1.bf16.msra.mxu0 0
      %1374 = vmatprep.subr.bf16.mxu0 0
      %1375 = vmatpush1.bf16.msra.mxu0 0
      %1376 = vmatprep.subr.bf16.mxu0 0
      %1377 = vmatpush1.bf16.msra.mxu0 0
      %1378 = vmatprep.subr.bf16.mxu0 0
      %1379 = vmatpush1.bf16.msra.mxu0 0
      %1380 = vmatprep.subr.bf16.mxu0 0
      %1381 = vmatpush1.bf16.msra.mxu0 0
      %1382 = vmatprep.subr.bf16.mxu0 0
      %1383 = vmatpush1.bf16.msra.mxu0 0
      %1384 = vmatprep.subr.bf16.mxu0 0
      %1385 = vmatpush1.bf16.msra.mxu0 0
      %1386 = vmatprep.subr.bf16.mxu0 0
      %1387 = vmatpush1.bf16.msra.mxu0 0
      %1388 = vmatprep.subr.bf16.mxu0 0
      %1389 = vmatpush1.bf16.msra.mxu0 0
      %1390 = vmatprep.subr.bf16.mxu0 0
      %1391 = vmatpush1.bf16.msra.mxu0 0
      %1392 = vmatprep.subr.bf16.mxu0 0
      %1393 = vmatpush1.bf16.msra.mxu0 0
      %1394 = vmatprep.mubr.bf16.mxu0 0
      %1395 = vmatmul.mubr.bf16.gmra.mrb[0].mxu0 %v1357
      %v1396 = vpop.f32.mrb[0].mxu0
      %v1397 = vadd.f32 0.0, %v1396
      %v1398 = vpop.f32.mrb[0].mxu0
      %v1399 = vpop.f32.mrb[0].mxu0
      %v1400 = vadd.f32 0.0, %v1399
      %v1401 = vpop.f32.mrb[0].mxu0
      %1402 = vmatprep.mubr.bf16.mxu0 0
      %1403 = vmatmul.mubr.bf16.gmra.mrb[0].mxu0 %v1360
      %v1404 = vpop.f32.mrb[0].mxu0
      %v1405 = vadd.f32 0.0, %v1404
      %v1406 = vpop.f32.mrb[0].mxu0
      %v1407 = vpop.f32.mrb[0].mxu0
      %v1408 = vadd.f32 0.0, %v1407
      %v1409 = vpop.f32.mrb[0].mxu0
      %1410 = vdwg.mxu0
      %v1413 = vunpack.c.l.b16 %v619
      %v1414 = vunpack.c.l.b16 %v620
      %v1415 = vpack.c.b16 %v1414, %v1413
      %1417 = vxpose.xlu0.c.b16.start [1/8] %v1415, 128
      %1418 = vxpose.xlu0.c.b16.cont [2/8] 0, 128
      %1419 = vxpose.xlu0.c.b16.cont [3/8] 0, 128
      %1420 = vxpose.xlu0.c.b16.cont [4/8] 0, 128
      %1421 = vxpose.xlu0.c.b16.cont [5/8] 0, 128
      %1422 = vxpose.xlu0.c.b16.cont [6/8] 0, 128
      %1423 = vxpose.xlu0.c.b16.cont [7/8] 0, 128
      %1424 = vxpose.xlu0.c.b16.end [8/8] 0, 128
      %v1425 = vpop.trf.xlu0
      %v1426 = vpop.trf.xlu0
      %v1427 = vpop.trf.xlu0
      %v1428 = vpop.trf.xlu0
      %v1429 = vpop.trf.xlu0
      %v1430 = vpop.trf.xlu0
      %v1431 = vpop.trf.xlu0
      %v1432 = vpop.trf.xlu0
      %v1434 = vsel %vm1201, %v1425, 0
      %v1437 = vsel %vm1201, %v1426, 0
      %1439 = vmatprep.subr.bf16.mxu0 0
      %1440 = vmatpush1.bf16.msra.mxu0 %v1161
      %1441 = vmatprep.subr.bf16.mxu0 0
      %1442 = vmatpush1.bf16.msra.mxu0 0
      %1443 = vmatprep.subr.bf16.mxu0 0
      %1444 = vmatpush1.bf16.msra.mxu0 0
      %1445 = vmatprep.subr.bf16.mxu0 0
      %1446 = vmatpush1.bf16.msra.mxu0 0
      %1447 = vmatprep.subr.bf16.mxu0 0
      %1448 = vmatpush1.bf16.msra.mxu0 0
      %1449 = vmatprep.subr.bf16.mxu0 0
      %1450 = vmatpush1.bf16.msra.mxu0 0
      %1451 = vmatprep.subr.bf16.mxu0 0
      %1452 = vmatpush1.bf16.msra.mxu0 0
      %1453 = vmatprep.subr.bf16.mxu0 0
      %1454 = vmatpush1.bf16.msra.mxu0 0
      %1455 = vmatprep.subr.bf16.mxu0 0
      %1456 = vmatpush1.bf16.msra.mxu0 0
      %1457 = vmatprep.subr.bf16.mxu0 0
      %1458 = vmatpush1.bf16.msra.mxu0 0
      %1459 = vmatprep.subr.bf16.mxu0 0
      %1460 = vmatpush1.bf16.msra.mxu0 0
      %1461 = vmatprep.subr.bf16.mxu0 0
      %1462 = vmatpush1.bf16.msra.mxu0 0
      %1463 = vmatprep.subr.bf16.mxu0 0
      %1464 = vmatpush1.bf16.msra.mxu0 0
      %1465 = vmatprep.subr.bf16.mxu0 0
      %1466 = vmatpush1.bf16.msra.mxu0 0
      %1467 = vmatprep.subr.bf16.mxu0 0
      %1468 = vmatpush1.bf16.msra.mxu0 0
      %1469 = vmatprep.subr.bf16.mxu0 0
      %1470 = vmatpush1.bf16.msra.mxu0 0
      %1471 = vmatprep.mubr.bf16.mxu0 0
      %1472 = vmatmul.mubr.bf16.gmra.mrb[0].mxu0 %v1434
      %v1473 = vpop.f32.mrb[0].mxu0
      %v1474 = vadd.f32 0.0, %v1473
      %v1475 = vpop.f32.mrb[0].mxu0
      %v1476 = vpop.f32.mrb[0].mxu0
      %v1477 = vadd.f32 0.0, %v1476
      %v1478 = vpop.f32.mrb[0].mxu0
      %1479 = vmatprep.mubr.bf16.mxu0 0
      %1480 = vmatmul.mubr.bf16.gmra.mrb[0].mxu0 %v1437
      %v1481 = vpop.f32.mrb[0].mxu0
      %v1482 = vadd.f32 0.0, %v1481
      %v1483 = vpop.f32.mrb[0].mxu0
      %v1484 = vpop.f32.mrb[0].mxu0
      %v1485 = vadd.f32 0.0, %v1484
      %v1486 = vpop.f32.mrb[0].mxu0
      %1487 = vdwg.mxu0
      %v1490 = vunpack.c.l.b16 %v621
      %v1491 = vunpack.c.l.b16 %v622
      %v1492 = vpack.c.b16 %v1491, %v1490
      %1494 = vxpose.xlu0.c.b16.start [1/8] %v1492, 128
      %1495 = vxpose.xlu0.c.b16.cont [2/8] 0, 128
      %1496 = vxpose.xlu0.c.b16.cont [3/8] 0, 128
      %1497 = vxpose.xlu0.c.b16.cont [4/8] 0, 128
      %1498 = vxpose.xlu0.c.b16.cont [5/8] 0, 128
      %1499 = vxpose.xlu0.c.b16.cont [6/8] 0, 128
      %1500 = vxpose.xlu0.c.b16.cont [7/8] 0, 128
      %1501 = vxpose.xlu0.c.b16.end [8/8] 0, 128
      %v1502 = vpop.trf.xlu0
      %v1503 = vpop.trf.xlu0
      %v1504 = vpop.trf.xlu0
      %v1505 = vpop.trf.xlu0
      %v1506 = vpop.trf.xlu0
      %v1507 = vpop.trf.xlu0
      %v1508 = vpop.trf.xlu0
      %v1509 = vpop.trf.xlu0
      %v1511 = vsel %vm1201, %v1502, 0
      %v1514 = vsel %vm1201, %v1503, 0
      %1516 = vmatprep.subr.bf16.mxu0 0
      %1517 = vmatpush1.bf16.msra.mxu0 %v1165
      %1518 = vmatprep.subr.bf16.mxu0 0
      %1519 = vmatpush1.bf16.msra.mxu0 0
      %1520 = vmatprep.subr.bf16.mxu0 0
      %1521 = vmatpush1.bf16.msra.mxu0 0
      %1522 = vmatprep.subr.bf16.mxu0 0
      %1523 = vmatpush1.bf16.msra.mxu0 0
      %1524 = vmatprep.subr.bf16.mxu0 0
      %1525 = vmatpush1.bf16.msra.mxu0 0
      %1526 = vmatprep.subr.bf16.mxu0 0
      %1527 = vmatpush1.bf16.msra.mxu0 0
      %1528 = vmatprep.subr.bf16.mxu0 0
      %1529 = vmatpush1.bf16.msra.mxu0 0
      %1530 = vmatprep.subr.bf16.mxu0 0
      %1531 = vmatpush1.bf16.msra.mxu0 0
      %1532 = vmatprep.subr.bf16.mxu0 0
      %1533 = vmatpush1.bf16.msra.mxu0 0
      %1534 = vmatprep.subr.bf16.mxu0 0
      %1535 = vmatpush1.bf16.msra.mxu0 0
      %1536 = vmatprep.subr.bf16.mxu0 0
      %1537 = vmatpush1.bf16.msra.mxu0 0
      %1538 = vmatprep.subr.bf16.mxu0 0
      %1539 = vmatpush1.bf16.msra.mxu0 0
      %1540 = vmatprep.subr.bf16.mxu0 0
      %1541 = vmatpush1.bf16.msra.mxu0 0
      %1542 = vmatprep.subr.bf16.mxu0 0
      %1543 = vmatpush1.bf16.msra.mxu0 0
      %1544 = vmatprep.subr.bf16.mxu0 0
      %1545 = vmatpush1.bf16.msra.mxu0 0
      %1546 = vmatprep.subr.bf16.mxu0 0
      %1547 = vmatpush1.bf16.msra.mxu0 0
      %1548 = vmatprep.mubr.bf16.mxu0 0
      %1549 = vmatmul.mubr.bf16.gmra.mrb[0].mxu0 %v1511
      %v1550 = vpop.f32.mrb[0].mxu0
      %v1551 = vadd.f32 0.0, %v1550
      %v1552 = vpop.f32.mrb[0].mxu0
      %v1553 = vpop.f32.mrb[0].mxu0
      %v1554 = vadd.f32 0.0, %v1553
      %v1555 = vpop.f32.mrb[0].mxu0
      %1556 = vmatprep.mubr.bf16.mxu0 0
      %1557 = vmatmul.mubr.bf16.gmra.mrb[0].mxu0 %v1514
      %v1558 = vpop.f32.mrb[0].mxu0
      %v1559 = vadd.f32 0.0, %v1558
      %v1560 = vpop.f32.mrb[0].mxu0
      %v1561 = vpop.f32.mrb[0].mxu0
      %v1562 = vadd.f32 0.0, %v1561
      %v1563 = vpop.f32.mrb[0].mxu0
      %1564 = vdwg.mxu0
      %v1567 = vunpack.c.l.b16 %v623
      %v1568 = vunpack.c.l.b16 %v624
      %v1569 = vpack.c.b16 %v1568, %v1567
      %1571 = vxpose.xlu0.c.b16.start [1/8] %v1569, 128
      %1572 = vxpose.xlu0.c.b16.cont [2/8] 0, 128
      %1573 = vxpose.xlu0.c.b16.cont [3/8] 0, 128
      %1574 = vxpose.xlu0.c.b16.cont [4/8] 0, 128
      %1575 = vxpose.xlu0.c.b16.cont [5/8] 0, 128
      %1576 = vxpose.xlu0.c.b16.cont [6/8] 0, 128
      %1577 = vxpose.xlu0.c.b16.cont [7/8] 0, 128
      %1578 = vxpose.xlu0.c.b16.end [8/8] 0, 128
      %v1579 = vpop.trf.xlu0
      %v1580 = vpop.trf.xlu0
      %v1581 = vpop.trf.xlu0
      %v1582 = vpop.trf.xlu0
      %v1583 = vpop.trf.xlu0
      %v1584 = vpop.trf.xlu0
      %v1585 = vpop.trf.xlu0
      %v1586 = vpop.trf.xlu0
      %v1588 = vsel %vm1201, %v1579, 0
      %v1591 = vsel %vm1201, %v1580, 0
      %1593 = vmatprep.subr.bf16.mxu0 0
      %1594 = vmatpush1.bf16.msra.mxu0 %v1169
      %1595 = vmatprep.subr.bf16.mxu0 0
      %1596 = vmatpush1.bf16.msra.mxu0 0
      %1597 = vmatprep.subr.bf16.mxu0 0
      %1598 = vmatpush1.bf16.msra.mxu0 0
      %1599 = vmatprep.subr.bf16.mxu0 0
      %1600 = vmatpush1.bf16.msra.mxu0 0
      %1601 = vmatprep.subr.bf16.mxu0 0
      %1602 = vmatpush1.bf16.msra.mxu0 0
      %1603 = vmatprep.subr.bf16.mxu0 0
      %1604 = vmatpush1.bf16.msra.mxu0 0
      %1605 = vmatprep.subr.bf16.mxu0 0
      %1606 = vmatpush1.bf16.msra.mxu0 0
      %1607 = vmatprep.subr.bf16.mxu0 0
      %1608 = vmatpush1.bf16.msra.mxu0 0
      %1609 = vmatprep.subr.bf16.mxu0 0
      %1610 = vmatpush1.bf16.msra.mxu0 0
      %1611 = vmatprep.subr.bf16.mxu0 0
      %1612 = vmatpush1.bf16.msra.mxu0 0
      %1613 = vmatprep.subr.bf16.mxu0 0
      %1614 = vmatpush1.bf16.msra.mxu0 0
      %1615 = vmatprep.subr.bf16.mxu0 0
      %1616 = vmatpush1.bf16.msra.mxu0 0
      %1617 = vmatprep.subr.bf16.mxu0 0
      %1618 = vmatpush1.bf16.msra.mxu0 0
      %1619 = vmatprep.subr.bf16.mxu0 0
      %1620 = vmatpush1.bf16.msra.mxu0 0
      %1621 = vmatprep.subr.bf16.mxu0 0
      %1622 = vmatpush1.bf16.msra.mxu0 0
      %1623 = vmatprep.subr.bf16.mxu0 0
      %1624 = vmatpush1.bf16.msra.mxu0 0
      %1625 = vmatprep.mubr.bf16.mxu0 0
      %1626 = vmatmul.mubr.bf16.gmra.mrb[0].mxu0 %v1588
      %v1627 = vpop.f32.mrb[0].mxu0
      %v1628 = vadd.f32 0.0, %v1627
      %v1629 = vpop.f32.mrb[0].mxu0
      %v1630 = vpop.f32.mrb[0].mxu0
      %v1631 = vadd.f32 0.0, %v1630
      %v1632 = vpop.f32.mrb[0].mxu0
      %1633 = vmatprep.mubr.bf16.mxu0 0
      %1634 = vmatmul.mubr.bf16.gmra.mrb[0].mxu0 %v1591
      %v1635 = vpop.f32.mrb[0].mxu0
      %v1636 = vadd.f32 0.0, %v1635
      %v1637 = vpop.f32.mrb[0].mxu0
      %v1638 = vpop.f32.mrb[0].mxu0
      %v1639 = vadd.f32 0.0, %v1638
      %v1640 = vpop.f32.mrb[0].mxu0
      %1641 = vdwg.mxu0
      %v1644 = vunpack.c.l.b16 %v625
      %v1645 = vunpack.c.l.b16 %v626
      %v1646 = vpack.c.b16 %v1645, %v1644
      %1648 = vxpose.xlu0.c.b16.start [1/8] %v1646, 128
      %1649 = vxpose.xlu0.c.b16.cont [2/8] 0, 128
      %1650 = vxpose.xlu0.c.b16.cont [3/8] 0, 128
      %1651 = vxpose.xlu0.c.b16.cont [4/8] 0, 128
      %1652 = vxpose.xlu0.c.b16.cont [5/8] 0, 128
      %1653 = vxpose.xlu0.c.b16.cont [6/8] 0, 128
      %1654 = vxpose.xlu0.c.b16.cont [7/8] 0, 128
      %1655 = vxpose.xlu0.c.b16.end [8/8] 0, 128
      %v1656 = vpop.trf.xlu0
      %v1657 = vpop.trf.xlu0
      %v1658 = vpop.trf.xlu0
      %v1659 = vpop.trf.xlu0
      %v1660 = vpop.trf.xlu0
      %v1661 = vpop.trf.xlu0
      %v1662 = vpop.trf.xlu0
      %v1663 = vpop.trf.xlu0
      %v1665 = vsel %vm1201, %v1656, 0
      %v1668 = vsel %vm1201, %v1657, 0
      %1670 = vmatprep.subr.bf16.mxu0 0
      %1671 = vmatpush1.bf16.msra.mxu0 %v1173
      %1672 = vmatprep.subr.bf16.mxu0 0
      %1673 = vmatpush1.bf16.msra.mxu0 0
      %1674 = vmatprep.subr.bf16.mxu0 0
      %1675 = vmatpush1.bf16.msra.mxu0 0
      %1676 = vmatprep.subr.bf16.mxu0 0
      %1677 = vmatpush1.bf16.msra.mxu0 0
      %1678 = vmatprep.subr.bf16.mxu0 0
      %1679 = vmatpush1.bf16.msra.mxu0 0
      %1680 = vmatprep.subr.bf16.mxu0 0
      %1681 = vmatpush1.bf16.msra.mxu0 0
      %1682 = vmatprep.subr.bf16.mxu0 0
      %1683 = vmatpush1.bf16.msra.mxu0 0
      %1684 = vmatprep.subr.bf16.mxu0 0
      %1685 = vmatpush1.bf16.msra.mxu0 0
      %1686 = vmatprep.subr.bf16.mxu0 0
      %1687 = vmatpush1.bf16.msra.mxu0 0
      %1688 = vmatprep.subr.bf16.mxu0 0
      %1689 = vmatpush1.bf16.msra.mxu0 0
      %1690 = vmatprep.subr.bf16.mxu0 0
      %1691 = vmatpush1.bf16.msra.mxu0 0
      %1692 = vmatprep.subr.bf16.mxu0 0
      %1693 = vmatpush1.bf16.msra.mxu0 0
      %1694 = vmatprep.subr.bf16.mxu0 0
      %1695 = vmatpush1.bf16.msra.mxu0 0
      %1696 = vmatprep.subr.bf16.mxu0 0
      %1697 = vmatpush1.bf16.msra.mxu0 0
      %1698 = vmatprep.subr.bf16.mxu0 0
      %1699 = vmatpush1.bf16.msra.mxu0 0
      %1700 = vmatprep.subr.bf16.mxu0 0
      %1701 = vmatpush1.bf16.msra.mxu0 0
      %1702 = vmatprep.mubr.bf16.mxu0 0
      %1703 = vmatmul.mubr.bf16.gmra.mrb[0].mxu0 %v1665
      %v1704 = vpop.f32.mrb[0].mxu0
      %v1705 = vadd.f32 0.0, %v1704
      %v1706 = vpop.f32.mrb[0].mxu0
      %v1707 = vpop.f32.mrb[0].mxu0
      %v1708 = vadd.f32 0.0, %v1707
      %v1709 = vpop.f32.mrb[0].mxu0
      %1710 = vmatprep.mubr.bf16.mxu0 0
      %1711 = vmatmul.mubr.bf16.gmra.mrb[0].mxu0 %v1668
      %v1712 = vpop.f32.mrb[0].mxu0
      %v1713 = vadd.f32 0.0, %v1712
      %v1714 = vpop.f32.mrb[0].mxu0
      %v1715 = vpop.f32.mrb[0].mxu0
      %v1716 = vadd.f32 0.0, %v1715
      %v1717 = vpop.f32.mrb[0].mxu0
      %1718 = vdwg.mxu0
      %v1721 = vunpack.c.l.b16 %v627
      %v1722 = vunpack.c.l.b16 %v628
      %v1723 = vpack.c.b16 %v1722, %v1721
      %1725 = vxpose.xlu0.c.b16.start [1/8] %v1723, 128
      %1726 = vxpose.xlu0.c.b16.cont [2/8] 0, 128
      %1727 = vxpose.xlu0.c.b16.cont [3/8] 0, 128
      %1728 = vxpose.xlu0.c.b16.cont [4/8] 0, 128
      %1729 = vxpose.xlu0.c.b16.cont [5/8] 0, 128
      %1730 = vxpose.xlu0.c.b16.cont [6/8] 0, 128
      %1731 = vxpose.xlu0.c.b16.cont [7/8] 0, 128
      %1732 = vxpose.xlu0.c.b16.end [8/8] 0, 128
      %v1733 = vpop.trf.xlu0
      %v1734 = vpop.trf.xlu0
      %v1735 = vpop.trf.xlu0
      %v1736 = vpop.trf.xlu0
      %v1737 = vpop.trf.xlu0
      %v1738 = vpop.trf.xlu0
      %v1739 = vpop.trf.xlu0
      %v1740 = vpop.trf.xlu0
      %v1742 = vsel %vm1201, %v1733, 0
      %v1745 = vsel %vm1201, %v1734, 0
      %1747 = vmatprep.subr.bf16.mxu0 0
      %1748 = vmatpush1.bf16.msra.mxu0 %v1177
      %1749 = vmatprep.subr.bf16.mxu0 0
      %1750 = vmatpush1.bf16.msra.mxu0 0
      %1751 = vmatprep.subr.bf16.mxu0 0
      %1752 = vmatpush1.bf16.msra.mxu0 0
      %1753 = vmatprep.subr.bf16.mxu0 0
      %1754 = vmatpush1.bf16.msra.mxu0 0
      %1755 = vmatprep.subr.bf16.mxu0 0
      %1756 = vmatpush1.bf16.msra.mxu0 0
      %1757 = vmatprep.subr.bf16.mxu0 0
      %1758 = vmatpush1.bf16.msra.mxu0 0
      %1759 = vmatprep.subr.bf16.mxu0 0
      %1760 = vmatpush1.bf16.msra.mxu0 0
      %1761 = vmatprep.subr.bf16.mxu0 0
      %1762 = vmatpush1.bf16.msra.mxu0 0
      %1763 = vmatprep.subr.bf16.mxu0 0
      %1764 = vmatpush1.bf16.msra.mxu0 0
      %1765 = vmatprep.subr.bf16.mxu0 0
      %1766 = vmatpush1.bf16.msra.mxu0 0
      %1767 = vmatprep.subr.bf16.mxu0 0
      %1768 = vmatpush1.bf16.msra.mxu0 0
      %1769 = vmatprep.subr.bf16.mxu0 0
      %1770 = vmatpush1.bf16.msra.mxu0 0
      %1771 = vmatprep.subr.bf16.mxu0 0
      %1772 = vmatpush1.bf16.msra.mxu0 0
      %1773 = vmatprep.subr.bf16.mxu0 0
      %1774 = vmatpush1.bf16.msra.mxu0 0
      %1775 = vmatprep.subr.bf16.mxu0 0
      %1776 = vmatpush1.bf16.msra.mxu0 0
      %1777 = vmatprep.subr.bf16.mxu0 0
      %1778 = vmatpush1.bf16.msra.mxu0 0
      %1779 = vmatprep.mubr.bf16.mxu0 0
      %1780 = vmatmul.mubr.bf16.gmra.mrb[0].mxu0 %v1742
      %v1781 = vpop.f32.mrb[0].mxu0
      %v1782 = vadd.f32 0.0, %v1781
      %v1783 = vpop.f32.mrb[0].mxu0
      %v1784 = vpop.f32.mrb[0].mxu0
      %v1785 = vadd.f32 0.0, %v1784
      %v1786 = vpop.f32.mrb[0].mxu0
      %1787 = vmatprep.mubr.bf16.mxu0 0
      %1788 = vmatmul.mubr.bf16.gmra.mrb[0].mxu0 %v1745
      %v1789 = vpop.f32.mrb[0].mxu0
      %v1790 = vadd.f32 0.0, %v1789
      %v1791 = vpop.f32.mrb[0].mxu0
      %v1792 = vpop.f32.mrb[0].mxu0
      %v1793 = vadd.f32 0.0, %v1792
      %v1794 = vpop.f32.mrb[0].mxu0
      %1795 = vdwg.mxu0
      %1796 = vxpose.xlu0.b32.start [1/16] %v1243, 128
      %1797 = vxpose.xlu0.b32.cont [2/16] %v1246, 128
      %1798 = vxpose.xlu0.b32.cont [3/16] %v1251, 128
      %1799 = vxpose.xlu0.b32.cont [4/16] %v1254, 128
      %1800 = vxpose.xlu0.b32.cont [5/16] 0.0, 128
      %1801 = vxpose.xlu0.b32.cont [6/16] 0.0, 128
      %1802 = vxpose.xlu0.b32.cont [7/16] 0.0, 128
      %1803 = vxpose.xlu0.b32.cont [8/16] 0.0, 128
      %1804 = vxpose.xlu0.b32.cont [9/16] 0.0, 128
      %1805 = vxpose.xlu0.b32.cont [10/16] 0.0, 128
      %1806 = vxpose.xlu0.b32.cont [11/16] 0.0, 128
      %1807 = vxpose.xlu0.b32.cont [12/16] 0.0, 128
      %1808 = vxpose.xlu0.b32.cont [13/16] 0.0, 128
      %1809 = vxpose.xlu0.b32.cont [14/16] 0.0, 128
      %1810 = vxpose.xlu0.b32.cont [15/16] 0.0, 128
      %1811 = vxpose.xlu0.b32.end [16/16] 0.0, 128
      %v1812 = vpop.trf.xlu0
      %v1813 = vpop.trf.xlu0
      %v1814 = vpop.trf.xlu0
      %v1815 = vpop.trf.xlu0
      %v1816 = vpop.trf.xlu0
      %v1817 = vpop.trf.xlu0
      %v1818 = vpop.trf.xlu0
      %v1819 = vpop.trf.xlu0
      %v1820 = vpop.trf.xlu0
      %v1821 = vpop.trf.xlu0
      %v1822 = vpop.trf.xlu0
      %v1823 = vpop.trf.xlu0
      %v1824 = vpop.trf.xlu0
      %v1825 = vpop.trf.xlu0
      %v1826 = vpop.trf.xlu0
      %v1827 = vpop.trf.xlu0
      %1828 = vxpose.xlu0.b32.start [1/16] %v1320, 128
      %1829 = vxpose.xlu0.b32.cont [2/16] %v1323, 128
      %1830 = vxpose.xlu0.b32.cont [3/16] %v1328, 128
      %1831 = vxpose.xlu0.b32.cont [4/16] %v1331, 128
      %1832 = vxpose.xlu0.b32.cont [5/16] 0.0, 128
      %1833 = vxpose.xlu0.b32.cont [6/16] 0.0, 128
      %1834 = vxpose.xlu0.b32.cont [7/16] 0.0, 128
      %1835 = vxpose.xlu0.b32.cont [8/16] 0.0, 128
      %1836 = vxpose.xlu0.b32.cont [9/16] 0.0, 128
      %1837 = vxpose.xlu0.b32.cont [10/16] 0.0, 128
      %1838 = vxpose.xlu0.b32.cont [11/16] 0.0, 128
      %1839 = vxpose.xlu0.b32.cont [12/16] 0.0, 128
      %1840 = vxpose.xlu0.b32.cont [13/16] 0.0, 128
      %1841 = vxpose.xlu0.b32.cont [14/16] 0.0, 128
      %1842 = vxpose.xlu0.b32.cont [15/16] 0.0, 128
      %1843 = vxpose.xlu0.b32.end [16/16] 0.0, 128
      %v1844 = vpop.trf.xlu0
      %v1845 = vpop.trf.xlu0
      %v1846 = vpop.trf.xlu0
      %v1847 = vpop.trf.xlu0
      %v1848 = vpop.trf.xlu0
      %v1849 = vpop.trf.xlu0
      %v1850 = vpop.trf.xlu0
      %v1851 = vpop.trf.xlu0
      %v1852 = vpop.trf.xlu0
      %v1853 = vpop.trf.xlu0
      %v1854 = vpop.trf.xlu0
      %v1855 = vpop.trf.xlu0
      %v1856 = vpop.trf.xlu0
      %v1857 = vpop.trf.xlu0
      %v1858 = vpop.trf.xlu0
      %v1859 = vpop.trf.xlu0
      %1860 = vxpose.xlu0.b32.start [1/16] %v1397, 128
      %1861 = vxpose.xlu0.b32.cont [2/16] %v1400, 128
      %1862 = vxpose.xlu0.b32.cont [3/16] %v1405, 128
      %1863 = vxpose.xlu0.b32.cont [4/16] %v1408, 128
      %1864 = vxpose.xlu0.b32.cont [5/16] 0.0, 128
      %1865 = vxpose.xlu0.b32.cont [6/16] 0.0, 128
      %1866 = vxpose.xlu0.b32.cont [7/16] 0.0, 128
      %1867 = vxpose.xlu0.b32.cont [8/16] 0.0, 128
      %1868 = vxpose.xlu0.b32.cont [9/16] 0.0, 128
      %1869 = vxpose.xlu0.b32.cont [10/16] 0.0, 128
      %1870 = vxpose.xlu0.b32.cont [11/16] 0.0, 128
      %1871 = vxpose.xlu0.b32.cont [12/16] 0.0, 128
      %1872 = vxpose.xlu0.b32.cont [13/16] 0.0, 128
      %1873 = vxpose.xlu0.b32.cont [14/16] 0.0, 128
      %1874 = vxpose.xlu0.b32.cont [15/16] 0.0, 128
      %1875 = vxpose.xlu0.b32.end [16/16] 0.0, 128
      %v1876 = vpop.trf.xlu0
      %v1877 = vpop.trf.xlu0
      %v1878 = vpop.trf.xlu0
      %v1879 = vpop.trf.xlu0
      %v1880 = vpop.trf.xlu0
      %v1881 = vpop.trf.xlu0
      %v1882 = vpop.trf.xlu0
      %v1883 = vpop.trf.xlu0
      %v1884 = vpop.trf.xlu0
      %v1885 = vpop.trf.xlu0
      %v1886 = vpop.trf.xlu0
      %v1887 = vpop.trf.xlu0
      %v1888 = vpop.trf.xlu0
      %v1889 = vpop.trf.xlu0
      %v1890 = vpop.trf.xlu0
      %v1891 = vpop.trf.xlu0
      %1892 = vxpose.xlu0.b32.start [1/16] %v1474, 128
      %1893 = vxpose.xlu0.b32.cont [2/16] %v1477, 128
      %1894 = vxpose.xlu0.b32.cont [3/16] %v1482, 128
      %1895 = vxpose.xlu0.b32.cont [4/16] %v1485, 128
      %1896 = vxpose.xlu0.b32.cont [5/16] 0.0, 128
      %1897 = vxpose.xlu0.b32.cont [6/16] 0.0, 128
      %1898 = vxpose.xlu0.b32.cont [7/16] 0.0, 128
      %1899 = vxpose.xlu0.b32.cont [8/16] 0.0, 128
      %1900 = vxpose.xlu0.b32.cont [9/16] 0.0, 128
      %1901 = vxpose.xlu0.b32.cont [10/16] 0.0, 128
      %1902 = vxpose.xlu0.b32.cont [11/16] 0.0, 128
      %1903 = vxpose.xlu0.b32.cont [12/16] 0.0, 128
      %1904 = vxpose.xlu0.b32.cont [13/16] 0.0, 128
      %1905 = vxpose.xlu0.b32.cont [14/16] 0.0, 128
      %1906 = vxpose.xlu0.b32.cont [15/16] 0.0, 128
      %1907 = vxpose.xlu0.b32.end [16/16] 0.0, 128
      %v1908 = vpop.trf.xlu0
      %v1909 = vpop.trf.xlu0
      %v1910 = vpop.trf.xlu0
      %v1911 = vpop.trf.xlu0
      %v1912 = vpop.trf.xlu0
      %v1913 = vpop.trf.xlu0
      %v1914 = vpop.trf.xlu0
      %v1915 = vpop.trf.xlu0
      %v1916 = vpop.trf.xlu0
      %v1917 = vpop.trf.xlu0
      %v1918 = vpop.trf.xlu0
      %v1919 = vpop.trf.xlu0
      %v1920 = vpop.trf.xlu0
      %v1921 = vpop.trf.xlu0
      %v1922 = vpop.trf.xlu0
      %v1923 = vpop.trf.xlu0
      %1924 = vxpose.xlu0.b32.start [1/16] %v1551, 128
      %1925 = vxpose.xlu0.b32.cont [2/16] %v1554, 128
      %1926 = vxpose.xlu0.b32.cont [3/16] %v1559, 128
      %1927 = vxpose.xlu0.b32.cont [4/16] %v1562, 128
      %1928 = vxpose.xlu0.b32.cont [5/16] 0.0, 128
      %1929 = vxpose.xlu0.b32.cont [6/16] 0.0, 128
      %1930 = vxpose.xlu0.b32.cont [7/16] 0.0, 128
      %1931 = vxpose.xlu0.b32.cont [8/16] 0.0, 128
      %1932 = vxpose.xlu0.b32.cont [9/16] 0.0, 128
      %1933 = vxpose.xlu0.b32.cont [10/16] 0.0, 128
      %1934 = vxpose.xlu0.b32.cont [11/16] 0.0, 128
      %1935 = vxpose.xlu0.b32.cont [12/16] 0.0, 128
      %1936 = vxpose.xlu0.b32.cont [13/16] 0.0, 128
      %1937 = vxpose.xlu0.b32.cont [14/16] 0.0, 128
      %1938 = vxpose.xlu0.b32.cont [15/16] 0.0, 128
      %1939 = vxpose.xlu0.b32.end [16/16] 0.0, 128
      %v1940 = vpop.trf.xlu0
      %v1941 = vpop.trf.xlu0
      %v1942 = vpop.trf.xlu0
      %v1943 = vpop.trf.xlu0
      %v1944 = vpop.trf.xlu0
      %v1945 = vpop.trf.xlu0
      %v1946 = vpop.trf.xlu0
      %v1947 = vpop.trf.xlu0
      %v1948 = vpop.trf.xlu0
      %v1949 = vpop.trf.xlu0
      %v1950 = vpop.trf.xlu0
      %v1951 = vpop.trf.xlu0
      %v1952 = vpop.trf.xlu0
      %v1953 = vpop.trf.xlu0
      %v1954 = vpop.trf.xlu0
      %v1955 = vpop.trf.xlu0
      %1956 = vxpose.xlu0.b32.start [1/16] %v1628, 128
      %1957 = vxpose.xlu0.b32.cont [2/16] %v1631, 128
      %1958 = vxpose.xlu0.b32.cont [3/16] %v1636, 128
      %1959 = vxpose.xlu0.b32.cont [4/16] %v1639, 128
      %1960 = vxpose.xlu0.b32.cont [5/16] 0.0, 128
      %1961 = vxpose.xlu0.b32.cont [6/16] 0.0, 128
      %1962 = vxpose.xlu0.b32.cont [7/16] 0.0, 128
      %1963 = vxpose.xlu0.b32.cont [8/16] 0.0, 128
      %1964 = vxpose.xlu0.b32.cont [9/16] 0.0, 128
      %1965 = vxpose.xlu0.b32.cont [10/16] 0.0, 128
      %1966 = vxpose.xlu0.b32.cont [11/16] 0.0, 128
      %1967 = vxpose.xlu0.b32.cont [12/16] 0.0, 128
      %1968 = vxpose.xlu0.b32.cont [13/16] 0.0, 128
      %1969 = vxpose.xlu0.b32.cont [14/16] 0.0, 128
      %1970 = vxpose.xlu0.b32.cont [15/16] 0.0, 128
      %1971 = vxpose.xlu0.b32.end [16/16] 0.0, 128
      %v1972 = vpop.trf.xlu0
      %v1973 = vpop.trf.xlu0
      %v1974 = vpop.trf.xlu0
      %v1975 = vpop.trf.xlu0
      %v1976 = vpop.trf.xlu0
      %v1977 = vpop.trf.xlu0
      %v1978 = vpop.trf.xlu0
      %v1979 = vpop.trf.xlu0
      %v1980 = vpop.trf.xlu0
      %v1981 = vpop.trf.xlu0
      %v1982 = vpop.trf.xlu0
      %v1983 = vpop.trf.xlu0
      %v1984 = vpop.trf.xlu0
      %v1985 = vpop.trf.xlu0
      %v1986 = vpop.trf.xlu0
      %v1987 = vpop.trf.xlu0
      %1988 = vxpose.xlu0.b32.start [1/16] %v1705, 128
      %1989 = vxpose.xlu0.b32.cont [2/16] %v1708, 128
      %1990 = vxpose.xlu0.b32.cont [3/16] %v1713, 128
      %1991 = vxpose.xlu0.b32.cont [4/16] %v1716, 128
      %1992 = vxpose.xlu0.b32.cont [5/16] 0.0, 128
      %1993 = vxpose.xlu0.b32.cont [6/16] 0.0, 128
      %1994 = vxpose.xlu0.b32.cont [7/16] 0.0, 128
      %1995 = vxpose.xlu0.b32.cont [8/16] 0.0, 128
      %1996 = vxpose.xlu0.b32.cont [9/16] 0.0, 128
      %1997 = vxpose.xlu0.b32.cont [10/16] 0.0, 128
      %1998 = vxpose.xlu0.b32.cont [11/16] 0.0, 128
      %1999 = vxpose.xlu0.b32.cont [12/16] 0.0, 128
      %2000 = vxpose.xlu0.b32.cont [13/16] 0.0, 128
      %2001 = vxpose.xlu0.b32.cont [14/16] 0.0, 128
      %2002 = vxpose.xlu0.b32.cont [15/16] 0.0, 128
      %2003 = vxpose.xlu0.b32.end [16/16] 0.0, 128
      %v2004 = vpop.trf.xlu0
      %v2005 = vpop.trf.xlu0
      %v2006 = vpop.trf.xlu0
      %v2007 = vpop.trf.xlu0
      %v2008 = vpop.trf.xlu0
      %v2009 = vpop.trf.xlu0
      %v2010 = vpop.trf.xlu0
      %v2011 = vpop.trf.xlu0
      %v2012 = vpop.trf.xlu0
      %v2013 = vpop.trf.xlu0
      %v2014 = vpop.trf.xlu0
      %v2015 = vpop.trf.xlu0
      %v2016 = vpop.trf.xlu0
      %v2017 = vpop.trf.xlu0
      %v2018 = vpop.trf.xlu0
      %v2019 = vpop.trf.xlu0
      %2020 = vxpose.xlu0.b32.start [1/16] %v1782, 128
      %2021 = vxpose.xlu0.b32.cont [2/16] %v1785, 128
      %2022 = vxpose.xlu0.b32.cont [3/16] %v1790, 128
      %2023 = vxpose.xlu0.b32.cont [4/16] %v1793, 128
      %2024 = vxpose.xlu0.b32.cont [5/16] 0.0, 128
      %2025 = vxpose.xlu0.b32.cont [6/16] 0.0, 128
      %2026 = vxpose.xlu0.b32.cont [7/16] 0.0, 128
      %2027 = vxpose.xlu0.b32.cont [8/16] 0.0, 128
      %2028 = vxpose.xlu0.b32.cont [9/16] 0.0, 128
      %2029 = vxpose.xlu0.b32.cont [10/16] 0.0, 128
      %2030 = vxpose.xlu0.b32.cont [11/16] 0.0, 128
      %2031 = vxpose.xlu0.b32.cont [12/16] 0.0, 128
      %2032 = vxpose.xlu0.b32.cont [13/16] 0.0, 128
      %2033 = vxpose.xlu0.b32.cont [14/16] 0.0, 128
      %2034 = vxpose.xlu0.b32.cont [15/16] 0.0, 128
      %2035 = vxpose.xlu0.b32.end [16/16] 0.0, 128
      %v2036 = vpop.trf.xlu0
      %v2037 = vpop.trf.xlu0
      %v2038 = vpop.trf.xlu0
      %v2039 = vpop.trf.xlu0
      %v2040 = vpop.trf.xlu0
      %v2041 = vpop.trf.xlu0
      %v2042 = vpop.trf.xlu0
      %v2043 = vpop.trf.xlu0
      %v2044 = vpop.trf.xlu0
      %v2045 = vpop.trf.xlu0
      %v2046 = vpop.trf.xlu0
      %v2047 = vpop.trf.xlu0
      %v2048 = vpop.trf.xlu0
      %v2049 = vpop.trf.xlu0
      %v2050 = vpop.trf.xlu0
      %v2051 = vpop.trf.xlu0
      %v2052 = vcombine.low %v1812, %v1876
      %v2054 = vunpack.c.l.s4 1983009808
      %v2055 = vunpack.c.0.s8 %v2054
      %v2056 = vlaneseq
      %v2057 = vshrl.u32 %v2056, 7
      %v2058 = vsub.s32 %v2055, %v2057
      %v2059 = vrot.slane %v2052, %v2058
      %v2060 = vcombine.low %v1844, %v1908
      %v2062 = vunpack.c.l.s4 1983009808
      %v2063 = vunpack.c.0.s8 %v2062
      %v2064 = vlaneseq
      %v2065 = vshrl.u32 %v2064, 7
      %v2066 = vsub.s32 %v2063, %v2065
      %v2067 = vrot.slane %v2060, %v2066
      %v2068 = vcombine.low %v1940, %v2004
      %v2070 = vunpack.c.l.s4 1983009808
      %v2071 = vunpack.c.0.s8 %v2070
      %v2072 = vlaneseq
      %v2073 = vshrl.u32 %v2072, 7
      %v2074 = vsub.s32 %v2071, %v2073
      %v2075 = vrot.slane %v2068, %v2074
      %v2076 = vcombine.low %v1972, %v2036
      %v2078 = vunpack.c.l.s4 1983009808
      %v2079 = vunpack.c.0.s8 %v2078
      %v2080 = vlaneseq
      %v2081 = vshrl.u32 %v2080, 7
      %v2082 = vsub.s32 %v2079, %v2081
      %v2083 = vrot.slane %v2076, %v2082
      %v2084 = vcombine.low %v2059, %v2067
      %v2086 = vunpack.c.l.s4 1934713408
      %v2087 = vunpack.c.0.s8 %v2086
      %v2088 = vlaneseq
      %v2089 = vshrl.u32 %v2088, 7
      %v2090 = vsub.s32 %v2087, %v2089
      %v2091 = vrot.slane %v2084, %v2090
      %v2092 = vcombine.low %v2075, %v2083
      %v2094 = vunpack.c.l.s4 1934713408
      %v2095 = vunpack.c.0.s8 %v2094
      %v2096 = vlaneseq
      %v2097 = vshrl.u32 %v2096, 7
      %v2098 = vsub.s32 %v2095, %v2097
      %v2099 = vrot.slane %v2092, %v2098
      %v2100 = vcombine.low %v2091, %v2099
      %v2101 = vld [vmem:[%s5] sm:$0xff]
      %v2102 = vadd.f32 %v2100, %v2101
      %v2103 = vpack.c.bf16 %v2102, %v2102
      %v2105 = vsel %vm497, %v2103, 0
      %v2107 = vsel %vm497, %v464, 0
      %2109 = vmatprep.subr.bf16.mxu0 0
      %2110 = vmatpush1.bf16.xpose.msra.mxu0 %v2107
      %2111 = vmatprep.subr.bf16.mxu0 0
      %2112 = vmatpush1.bf16.xpose.msra.mxu0 0
      %2113 = vmatprep.subr.bf16.mxu0 0
      %2114 = vmatpush1.bf16.xpose.msra.mxu0 0
      %2115 = vmatprep.subr.bf16.mxu0 0
      %2116 = vmatpush1.bf16.xpose.msra.mxu0 0
      %2117 = vmatprep.subr.bf16.mxu0 0
      %2118 = vmatpush1.bf16.xpose.msra.mxu0 0
      %2119 = vmatprep.subr.bf16.mxu0 0
      %2120 = vmatpush1.bf16.xpose.msra.mxu0 0
      %2121 = vmatprep.subr.bf16.mxu0 0
      %2122 = vmatpush1.bf16.xpose.msra.mxu0 0
      %2123 = vmatprep.subr.bf16.mxu0 0
      %2124 = vmatpush1.bf16.xpose.msra.mxu0 0
      %2125 = vmatprep.subr.bf16.mxu0 0
      %2126 = vmatpush1.bf16.xpose.msra.mxu0 0
      %2127 = vmatprep.subr.bf16.mxu0 0
      %2128 = vmatpush1.bf16.xpose.msra.mxu0 0
      %2129 = vmatprep.subr.bf16.mxu0 0
      %2130 = vmatpush1.bf16.xpose.msra.mxu0 0
      %2131 = vmatprep.subr.bf16.mxu0 0
      %2132 = vmatpush1.bf16.xpose.msra.mxu0 0
      %2133 = vmatprep.subr.bf16.mxu0 0
      %2134 = vmatpush1.bf16.xpose.msra.mxu0 0
      %2135 = vmatprep.subr.bf16.mxu0 0
      %2136 = vmatpush1.bf16.xpose.msra.mxu0 0
      %2137 = vmatprep.subr.bf16.mxu0 0
      %2138 = vmatpush1.bf16.xpose.msra.mxu0 0
      %2139 = vmatprep.subr.bf16.mxu0 0
      %2140 = vmatpush1.bf16.xpose.msra.mxu0 0
      %2141 = vmatprep.mubr.bf16.mxu0 0
      %2142 = vmatmul.mubr.bf16.gmra.mrb[0].mxu0 %v2105
      %v2143 = vpop.f32.mrb[0].mxu0
      %v2144 = vadd.f32 0.0, %v2143
      %v2145 = vpop.f32.mrb[0].mxu0
      %v2146 = vpop.f32.mrb[0].mxu0
      %v2147 = vpop.f32.mrb[0].mxu0
      %2148 = vdwg.mxu0
      %v2149 = vmul.f32 %v2144, %v2144
      %vm2150 = vcmask 31744
      %v2151 = vsel %vm2150, %v2149, 0.0
      %2152 = vadd.xlane.f32.xlu0 %v2151
      %v2153 = vpop.xlane.xlu0 %2152
      %v2154 = vrot.slane %v2153, 4
      %v2155 = vadd.f32 %v2153, %v2154
      %v2156 = vrot.slane %v2155, 2
      %v2157 = vadd.f32 %v2155, %v2156
      %v2158 = vrot.slane %v2157, 1
      %v2159 = vadd.f32 %v2157, %v2158
      %v2160 = vmax.f32 %v2159, 1e-24
      %v2161 = vrsqrt.pop %v2160
      %v2162 = vmul.f32 %v2144, %v2161
      %v2163 = vld [vmem:[%s443] sm:$0x3]
      %v2164 = vld [vmem:[%s443 + $0x2] sm:$0x3]
      %v2165 = vld [vmem:[%s443 + $0x4] sm:$0x3]
      %v2166 = vld [vmem:[%s443 + $0x6] sm:$0x3]
      %v2167 = vld [vmem:[%s443 + $0x8] sm:$0x3]
      %v2168 = vld [vmem:[%s443 + $0xa] sm:$0x3]
      %v2169 = vld [vmem:[%s443 + $0xc] sm:$0x3]
      %v2170 = vld [vmem:[%s443 + $0xe] sm:$0x3]
      %v2171 = vld [vmem:[%s443 + $0x10] sm:$0x3]
      %v2172 = vld [vmem:[%s443 + $0x12] sm:$0x3]
      %v2173 = vld [vmem:[%s443 + $0x14] sm:$0x3]
      %v2174 = vld [vmem:[%s443 + $0x16] sm:$0x3]
      %v2175 = vld [vmem:[%s443 + $0x18] sm:$0x3]
      %v2176 = vld [vmem:[%s443 + $0x1a] sm:$0x3]
      %v2177 = vld [vmem:[%s443 + $0x1c] sm:$0x3]
      %v2178 = vld [vmem:[%s443 + $0x1e] sm:$0x3]
      %vm2179 = vcmask 123904
      %v2181 = vsel %vm2179, %v2163, 4286644096
      %v2183 = vunpack.i.l.bf16 %v2181
      %v2184 = vunpack.i.h.bf16 %v2181
      %v2185 = vmax.f32 %v2183, %v2184
      %v2186 = vrot.slane %v2185, 4
      %v2187 = vmax.f32 %v2185, %v2186
      %v2188 = vrot.slane %v2187, 2
      %v2189 = vmax.f32 %v2187, %v2188
      %v2190 = vrot.slane %v2189, 1
      %v2191 = vmax.f32 %v2189, %v2190
      %v2192 = vpack.i.bf16 %v2191, %v2191
      %v2194 = vsel %vm2179, %v2164, 4286644096
      %v2196 = vunpack.i.l.bf16 %v2194
      %v2197 = vunpack.i.h.bf16 %v2194
      %v2198 = vmax.f32 %v2196, %v2197
      %v2199 = vrot.slane %v2198, 4
      %v2200 = vmax.f32 %v2198, %v2199
      %v2201 = vrot.slane %v2200, 2
      %v2202 = vmax.f32 %v2200, %v2201
      %v2203 = vrot.slane %v2202, 1
      %v2204 = vmax.f32 %v2202, %v2203
      %v2205 = vpack.i.bf16 %v2204, %v2204
      %v2207 = vsel %vm2179, %v2165, 4286644096
      %v2209 = vunpack.i.l.bf16 %v2207
      %v2210 = vunpack.i.h.bf16 %v2207
      %v2211 = vmax.f32 %v2209, %v2210
      %v2212 = vrot.slane %v2211, 4
      %v2213 = vmax.f32 %v2211, %v2212
      %v2214 = vrot.slane %v2213, 2
      %v2215 = vmax.f32 %v2213, %v2214
      %v2216 = vrot.slane %v2215, 1
      %v2217 = vmax.f32 %v2215, %v2216
      %v2218 = vpack.i.bf16 %v2217, %v2217
      %v2220 = vsel %vm2179, %v2166, 4286644096
      %v2222 = vunpack.i.l.bf16 %v2220
      %v2223 = vunpack.i.h.bf16 %v2220
      %v2224 = vmax.f32 %v2222, %v2223
      %v2225 = vrot.slane %v2224, 4
      %v2226 = vmax.f32 %v2224, %v2225
      %v2227 = vrot.slane %v2226, 2
      %v2228 = vmax.f32 %v2226, %v2227
      %v2229 = vrot.slane %v2228, 1
      %v2230 = vmax.f32 %v2228, %v2229
      %v2231 = vpack.i.bf16 %v2230, %v2230
      %v2233 = vsel %vm2179, %v2167, 4286644096
      %v2235 = vunpack.i.l.bf16 %v2233
      %v2236 = vunpack.i.h.bf16 %v2233
      %v2237 = vmax.f32 %v2235, %v2236
      %v2238 = vrot.slane %v2237, 4
      %v2239 = vmax.f32 %v2237, %v2238
      %v2240 = vrot.slane %v2239, 2
      %v2241 = vmax.f32 %v2239, %v2240
      %v2242 = vrot.slane %v2241, 1
      %v2243 = vmax.f32 %v2241, %v2242
      %v2244 = vpack.i.bf16 %v2243, %v2243
      %v2246 = vsel %vm2179, %v2168, 4286644096
      %v2248 = vunpack.i.l.bf16 %v2246
      %v2249 = vunpack.i.h.bf16 %v2246
      %v2250 = vmax.f32 %v2248, %v2249
      %v2251 = vrot.slane %v2250, 4
      %v2252 = vmax.f32 %v2250, %v2251
      %v2253 = vrot.slane %v2252, 2
      %v2254 = vmax.f32 %v2252, %v2253
      %v2255 = vrot.slane %v2254, 1
      %v2256 = vmax.f32 %v2254, %v2255
      %v2257 = vpack.i.bf16 %v2256, %v2256
      %v2259 = vsel %vm2179, %v2169, 4286644096
      %v2261 = vunpack.i.l.bf16 %v2259
      %v2262 = vunpack.i.h.bf16 %v2259
      %v2263 = vmax.f32 %v2261, %v2262
      %v2264 = vrot.slane %v2263, 4
      %v2265 = vmax.f32 %v2263, %v2264
      %v2266 = vrot.slane %v2265, 2
      %v2267 = vmax.f32 %v2265, %v2266
      %v2268 = vrot.slane %v2267, 1
      %v2269 = vmax.f32 %v2267, %v2268
      %v2270 = vpack.i.bf16 %v2269, %v2269
      %v2272 = vsel %vm2179, %v2170, 4286644096
      %v2274 = vunpack.i.l.bf16 %v2272
      %v2275 = vunpack.i.h.bf16 %v2272
      %v2276 = vmax.f32 %v2274, %v2275
      %v2277 = vrot.slane %v2276, 4
      %v2278 = vmax.f32 %v2276, %v2277
      %v2279 = vrot.slane %v2278, 2
      %v2280 = vmax.f32 %v2278, %v2279
      %v2281 = vrot.slane %v2280, 1
      %v2282 = vmax.f32 %v2280, %v2281
      %v2283 = vpack.i.bf16 %v2282, %v2282
      %v2285 = vsel %vm2179, %v2171, 4286644096
      %v2287 = vunpack.i.l.bf16 %v2285
      %v2288 = vunpack.i.h.bf16 %v2285
      %v2289 = vmax.f32 %v2287, %v2288
      %v2290 = vrot.slane %v2289, 4
      %v2291 = vmax.f32 %v2289, %v2290
      %v2292 = vrot.slane %v2291, 2
      %v2293 = vmax.f32 %v2291, %v2292
      %v2294 = vrot.slane %v2293, 1
      %v2295 = vmax.f32 %v2293, %v2294
      %v2296 = vpack.i.bf16 %v2295, %v2295
      %v2298 = vsel %vm2179, %v2172, 4286644096
      %v2300 = vunpack.i.l.bf16 %v2298
      %v2301 = vunpack.i.h.bf16 %v2298
      %v2302 = vmax.f32 %v2300, %v2301
      %v2303 = vrot.slane %v2302, 4
      %v2304 = vmax.f32 %v2302, %v2303
      %v2305 = vrot.slane %v2304, 2
      %v2306 = vmax.f32 %v2304, %v2305
      %v2307 = vrot.slane %v2306, 1
      %v2308 = vmax.f32 %v2306, %v2307
      %v2309 = vpack.i.bf16 %v2308, %v2308
      %v2311 = vsel %vm2179, %v2173, 4286644096
      %v2313 = vunpack.i.l.bf16 %v2311
      %v2314 = vunpack.i.h.bf16 %v2311
      %v2315 = vmax.f32 %v2313, %v2314
      %v2316 = vrot.slane %v2315, 4
      %v2317 = vmax.f32 %v2315, %v2316
      %v2318 = vrot.slane %v2317, 2
      %v2319 = vmax.f32 %v2317, %v2318
      %v2320 = vrot.slane %v2319, 1
      %v2321 = vmax.f32 %v2319, %v2320
      %v2322 = vpack.i.bf16 %v2321, %v2321
      %v2324 = vsel %vm2179, %v2174, 4286644096
      %v2326 = vunpack.i.l.bf16 %v2324
      %v2327 = vunpack.i.h.bf16 %v2324
      %v2328 = vmax.f32 %v2326, %v2327
      %v2329 = vrot.slane %v2328, 4
      %v2330 = vmax.f32 %v2328, %v2329
      %v2331 = vrot.slane %v2330, 2
      %v2332 = vmax.f32 %v2330, %v2331
      %v2333 = vrot.slane %v2332, 1
      %v2334 = vmax.f32 %v2332, %v2333
      %v2335 = vpack.i.bf16 %v2334, %v2334
      %v2337 = vsel %vm2179, %v2175, 4286644096
      %v2339 = vunpack.i.l.bf16 %v2337
      %v2340 = vunpack.i.h.bf16 %v2337
      %v2341 = vmax.f32 %v2339, %v2340
      %v2342 = vrot.slane %v2341, 4
      %v2343 = vmax.f32 %v2341, %v2342
      %v2344 = vrot.slane %v2343, 2
      %v2345 = vmax.f32 %v2343, %v2344
      %v2346 = vrot.slane %v2345, 1
      %v2347 = vmax.f32 %v2345, %v2346
      %v2348 = vpack.i.bf16 %v2347, %v2347
      %v2350 = vsel %vm2179, %v2176, 4286644096
      %v2352 = vunpack.i.l.bf16 %v2350
      %v2353 = vunpack.i.h.bf16 %v2350
      %v2354 = vmax.f32 %v2352, %v2353
      %v2355 = vrot.slane %v2354, 4
      %v2356 = vmax.f32 %v2354, %v2355
      %v2357 = vrot.slane %v2356, 2
      %v2358 = vmax.f32 %v2356, %v2357
      %v2359 = vrot.slane %v2358, 1
      %v2360 = vmax.f32 %v2358, %v2359
      %v2361 = vpack.i.bf16 %v2360, %v2360
      %v2363 = vsel %vm2179, %v2177, 4286644096
      %v2365 = vunpack.i.l.bf16 %v2363
      %v2366 = vunpack.i.h.bf16 %v2363
      %v2367 = vmax.f32 %v2365, %v2366
      %v2368 = vrot.slane %v2367, 4
      %v2369 = vmax.f32 %v2367, %v2368
      %v2370 = vrot.slane %v2369, 2
      %v2371 = vmax.f32 %v2369, %v2370
      %v2372 = vrot.slane %v2371, 1
      %v2373 = vmax.f32 %v2371, %v2372
      %v2374 = vpack.i.bf16 %v2373, %v2373
      %v2376 = vsel %vm2179, %v2178, 4286644096
      %v2378 = vunpack.i.l.bf16 %v2376
      %v2379 = vunpack.i.h.bf16 %v2376
      %v2380 = vmax.f32 %v2378, %v2379
      %v2381 = vrot.slane %v2380, 4
      %v2382 = vmax.f32 %v2380, %v2381
      %v2383 = vrot.slane %v2382, 2
      %v2384 = vmax.f32 %v2382, %v2383
      %v2385 = vrot.slane %v2384, 1
      %v2386 = vmax.f32 %v2384, %v2385
      %v2387 = vpack.i.bf16 %v2386, %v2386
      %v2388 = vld [vmem:[%s6] sm:$0xf]
      %v2389 = vld [vmem:[%s6 + $0x4] sm:$0xf]
      %v2390 = vld [vmem:[%s7] sm:$0x1]
      %v2392 = vlaneseq
      %v2393 = vshrl.u32 %v2392, 7
      %v2394 = vsub.s32 0, %v2393
      %v2395 = vrot.slane %v2390, %v2394
      %v2413 = vunpack.c.l.b16 %v2192
      %v2414 = vunpack.c.l.b16 %v2205
      %v2415 = vunpack.c.l.b16 %v2218
      %v2416 = vunpack.c.l.b16 %v2231
      %v2417 = vunpack.c.l.b16 %v2244
      %v2418 = vunpack.c.l.b16 %v2257
      %v2419 = vunpack.c.l.b16 %v2270
      %v2420 = vunpack.c.l.b16 %v2283
      %v2421 = vunpack.c.l.b16 %v2296
      %v2422 = vunpack.c.l.b16 %v2309
      %v2423 = vunpack.c.l.b16 %v2322
      %v2424 = vunpack.c.l.b16 %v2335
      %v2425 = vunpack.c.l.b16 %v2348
      %v2426 = vunpack.c.l.b16 %v2361
      %v2427 = vunpack.c.l.b16 %v2374
      %v2428 = vunpack.c.l.b16 %v2387
      %vm2429 = vcmask 1041409
      %v2430 = vsel %vm2429, %v2414, %v2413
      %vm2431 = vcmask 1042434
      %v2432 = vsel %vm2431, %v2415, %v2430
      %vm2433 = vcmask 1043459
      %v2434 = vsel %vm2433, %v2416, %v2432
      %vm2435 = vcmask 1044484
      %v2436 = vsel %vm2435, %v2417, %v2434
      %vm2437 = vcmask 1045509
      %v2438 = vsel %vm2437, %v2418, %v2436
      %vm2439 = vcmask 1046534
      %v2440 = vsel %vm2439, %v2419, %v2438
      %vm2441 = vcmask 1047559
      %v2442 = vsel %vm2441, %v2420, %v2440
      %v2443 = vsel %vm2429, %v2422, %v2421
      %v2444 = vsel %vm2431, %v2423, %v2443
      %v2445 = vsel %vm2433, %v2424, %v2444
      %v2446 = vsel %vm2435, %v2425, %v2445
      %v2447 = vsel %vm2437, %v2426, %v2446
      %v2448 = vsel %vm2439, %v2427, %v2447
      %v2449 = vsel %vm2441, %v2428, %v2448
      %v2450 = vpack.c.b16 %v2449, %v2442
      %v2453 = vunpack.c.l.b16 %v2388
      %v2454 = vunpack.c.l.b16 %v2389
      %v2455 = vpack.c.b16 %v2454, %v2453
      %v2458 = vsel %vm1201, %v2450, 0
      %2460 = vmatprep.subr.bf16.mxu0 0
      %2461 = vmatpush1.bf16.msra.mxu0 %v2455
      %2462 = vmatprep.subr.bf16.mxu0 0
      %2463 = vmatpush1.bf16.msra.mxu0 0
      %2464 = vmatprep.subr.bf16.mxu0 0
      %2465 = vmatpush1.bf16.msra.mxu0 0
      %2466 = vmatprep.subr.bf16.mxu0 0
      %2467 = vmatpush1.bf16.msra.mxu0 0
      %2468 = vmatprep.subr.bf16.mxu0 0
      %2469 = vmatpush1.bf16.msra.mxu0 0
      %2470 = vmatprep.subr.bf16.mxu0 0
      %2471 = vmatpush1.bf16.msra.mxu0 0
      %2472 = vmatprep.subr.bf16.mxu0 0
      %2473 = vmatpush1.bf16.msra.mxu0 0
      %2474 = vmatprep.subr.bf16.mxu0 0
      %2475 = vmatpush1.bf16.msra.mxu0 0
      %2476 = vmatprep.subr.bf16.mxu0 0
      %2477 = vmatpush1.bf16.msra.mxu0 0
      %2478 = vmatprep.subr.bf16.mxu0 0
      %2479 = vmatpush1.bf16.msra.mxu0 0
      %2480 = vmatprep.subr.bf16.mxu0 0
      %2481 = vmatpush1.bf16.msra.mxu0 0
      %2482 = vmatprep.subr.bf16.mxu0 0
      %2483 = vmatpush1.bf16.msra.mxu0 0
      %2484 = vmatprep.subr.bf16.mxu0 0
      %2485 = vmatpush1.bf16.msra.mxu0 0
      %2486 = vmatprep.subr.bf16.mxu0 0
      %2487 = vmatpush1.bf16.msra.mxu0 0
      %2488 = vmatprep.subr.bf16.mxu0 0
      %2489 = vmatpush1.bf16.msra.mxu0 0
      %2490 = vmatprep.subr.bf16.mxu0 0
      %2491 = vmatpush1.bf16.msra.mxu0 0
      %2492 = vmatprep.mubr.bf16.mxu0 0
      %2493 = vmatmul.mubr.bf16.gmra.mrb[0].mxu0 %v2458
      %v2494 = vpop.f32.mrb[0].mxu0
      %v2495 = vadd.f32 %v2395, %v2494
      %v2496 = vpop.f32.mrb[0].mxu0
      %v2497 = vpop.f32.mrb[0].mxu0
      %v2498 = vadd.f32 %v2395, %v2497
      %v2499 = vpop.f32.mrb[0].mxu0
      %2500 = vdwg.mxu0
      %2503 = vrot.lane.b32.xlu0 %v2495, 120
      %v2504 = vpop.permute.xlu0 %2503
      %2505 = vrot.lane.b32.xlu0 %v2498, 120
      %v2506 = vpop.permute.xlu0 %2505
      %2509 = vrot.lane.b32.xlu0 %v2495, 112
      %v2510 = vpop.permute.xlu0 %2509
      %2511 = vrot.lane.b32.xlu0 %v2498, 112
      %v2512 = vpop.permute.xlu0 %2511
      %2515 = vrot.lane.b32.xlu0 %v2495, 104
      %v2516 = vpop.permute.xlu0 %2515
      %2517 = vrot.lane.b32.xlu0 %v2498, 104
      %v2518 = vpop.permute.xlu0 %2517
      %2521 = vrot.lane.b32.xlu0 %v2495, 96
      %v2522 = vpop.permute.xlu0 %2521
      %2523 = vrot.lane.b32.xlu0 %v2498, 96
      %v2524 = vpop.permute.xlu0 %2523
      %2527 = vrot.lane.b32.xlu0 %v2495, 88
      %v2528 = vpop.permute.xlu0 %2527
      %2529 = vrot.lane.b32.xlu0 %v2498, 88
      %v2530 = vpop.permute.xlu0 %2529
      %2533 = vrot.lane.b32.xlu0 %v2495, 80
      %v2534 = vpop.permute.xlu0 %2533
      %2535 = vrot.lane.b32.xlu0 %v2498, 80
      %v2536 = vpop.permute.xlu0 %2535
      %2539 = vrot.lane.b32.xlu0 %v2495, 72
      %v2540 = vpop.permute.xlu0 %2539
      %2541 = vrot.lane.b32.xlu0 %v2498, 72
      %v2542 = vpop.permute.xlu0 %2541
      %v2545 = vcombine.low %v2495, %v2510
      %v2546 = vcombine.high %v2495, %v2510
      %v2548 = vunpack.c.l.s4 1983009808
      %v2549 = vunpack.c.0.s8 %v2548
      %v2550 = vlaneseq
      %v2551 = vshrl.u32 %v2550, 7
      %v2552 = vsub.s32 %v2549, %v2551
      %v2553 = vrot.slane %v2545, %v2552
      %v2555 = vunpack.c.l.s4 1983009808
      %v2556 = vunpack.c.0.s8 %v2555
      %v2557 = vlaneseq
      %v2558 = vshrl.u32 %v2557, 7
      %v2559 = vsub.s32 %v2556, %v2558
      %v2560 = vrot.slane %v2546, %v2559
      %v2561 = vcombine.low %v2504, %v2516
      %v2562 = vcombine.high %v2504, %v2516
      %v2564 = vunpack.c.l.s4 1983009808
      %v2565 = vunpack.c.0.s8 %v2564
      %v2566 = vlaneseq
      %v2567 = vshrl.u32 %v2566, 7
      %v2568 = vsub.s32 %v2565, %v2567
      %v2569 = vrot.slane %v2561, %v2568
      %v2571 = vunpack.c.l.s4 1983009808
      %v2572 = vunpack.c.0.s8 %v2571
      %v2573 = vlaneseq
      %v2574 = vshrl.u32 %v2573, 7
      %v2575 = vsub.s32 %v2572, %v2574
      %v2576 = vrot.slane %v2562, %v2575
      %v2577 = vcombine.low %v2522, %v2534
      %v2578 = vcombine.high %v2522, %v2534
      %v2580 = vunpack.c.l.s4 1983009808
      %v2581 = vunpack.c.0.s8 %v2580
      %v2582 = vlaneseq
      %v2583 = vshrl.u32 %v2582, 7
      %v2584 = vsub.s32 %v2581, %v2583
      %v2585 = vrot.slane %v2577, %v2584
      %v2587 = vunpack.c.l.s4 1983009808
      %v2588 = vunpack.c.0.s8 %v2587
      %v2589 = vlaneseq
      %v2590 = vshrl.u32 %v2589, 7
      %v2591 = vsub.s32 %v2588, %v2590
      %v2592 = vrot.slane %v2578, %v2591
      %v2593 = vcombine.low %v2528, %v2540
      %v2594 = vcombine.high %v2528, %v2540
      %v2596 = vunpack.c.l.s4 1983009808
      %v2597 = vunpack.c.0.s8 %v2596
      %v2598 = vlaneseq
      %v2599 = vshrl.u32 %v2598, 7
      %v2600 = vsub.s32 %v2597, %v2599
      %v2601 = vrot.slane %v2593, %v2600
      %v2603 = vunpack.c.l.s4 1983009808
      %v2604 = vunpack.c.0.s8 %v2603
      %v2605 = vlaneseq
      %v2606 = vshrl.u32 %v2605, 7
      %v2607 = vsub.s32 %v2604, %v2606
      %v2608 = vrot.slane %v2594, %v2607
      %v2609 = vcombine.low %v2553, %v2569
      %v2610 = vcombine.high %v2553, %v2569
      %v2612 = vunpack.c.l.s4 1934713408
      %v2613 = vunpack.c.0.s8 %v2612
      %v2614 = vlaneseq
      %v2615 = vshrl.u32 %v2614, 7
      %v2616 = vsub.s32 %v2613, %v2615
      %v2617 = vrot.slane %v2609, %v2616
      %v2619 = vunpack.c.l.s4 1934713408
      %v2620 = vunpack.c.0.s8 %v2619
      %v2621 = vlaneseq
      %v2622 = vshrl.u32 %v2621, 7
      %v2623 = vsub.s32 %v2620, %v2622
      %v2624 = vrot.slane %v2610, %v2623
      %v2625 = vcombine.low %v2560, %v2576
      %v2626 = vcombine.high %v2560, %v2576
      %v2628 = vunpack.c.l.s4 1934713408
      %v2629 = vunpack.c.0.s8 %v2628
      %v2630 = vlaneseq
      %v2631 = vshrl.u32 %v2630, 7
      %v2632 = vsub.s32 %v2629, %v2631
      %v2633 = vrot.slane %v2625, %v2632
      %v2635 = vunpack.c.l.s4 1934713408
      %v2636 = vunpack.c.0.s8 %v2635
      %v2637 = vlaneseq
      %v2638 = vshrl.u32 %v2637, 7
      %v2639 = vsub.s32 %v2636, %v2638
      %v2640 = vrot.slane %v2626, %v2639
      %v2641 = vcombine.low %v2585, %v2601
      %v2642 = vcombine.high %v2585, %v2601
      %v2644 = vunpack.c.l.s4 1934713408
      %v2645 = vunpack.c.0.s8 %v2644
      %v2646 = vlaneseq
      %v2647 = vshrl.u32 %v2646, 7
      %v2648 = vsub.s32 %v2645, %v2647
      %v2649 = vrot.slane %v2641, %v2648
      %v2651 = vunpack.c.l.s4 1934713408
      %v2652 = vunpack.c.0.s8 %v2651
      %v2653 = vlaneseq
      %v2654 = vshrl.u32 %v2653, 7
      %v2655 = vsub.s32 %v2652, %v2654
      %v2656 = vrot.slane %v2642, %v2655
      %v2657 = vcombine.low %v2592, %v2608
      %v2658 = vcombine.high %v2592, %v2608
      %v2660 = vunpack.c.l.s4 1934713408
      %v2661 = vunpack.c.0.s8 %v2660
      %v2662 = vlaneseq
      %v2663 = vshrl.u32 %v2662, 7
      %v2664 = vsub.s32 %v2661, %v2663
      %v2665 = vrot.slane %v2657, %v2664
      %v2667 = vunpack.c.l.s4 1934713408
      %v2668 = vunpack.c.0.s8 %v2667
      %v2669 = vlaneseq
      %v2670 = vshrl.u32 %v2669, 7
      %v2671 = vsub.s32 %v2668, %v2670
      %v2672 = vrot.slane %v2658, %v2671
      %v2673 = vcombine.low %v2617, %v2649
      %v2674 = vcombine.high %v2617, %v2649
      %v2675 = vcombine.low %v2624, %v2656
      %v2676 = vcombine.high %v2624, %v2656
      %v2677 = vcombine.low %v2633, %v2665
      %v2678 = vcombine.high %v2633, %v2665
      %v2679 = vcombine.low %v2640, %v2672
      %v2680 = vcombine.high %v2640, %v2672
      %v2681 = vcombine.low %v2498, %v2512
      %v2682 = vcombine.high %v2498, %v2512
      %v2684 = vunpack.c.l.s4 1983009808
      %v2685 = vunpack.c.0.s8 %v2684
      %v2686 = vlaneseq
      %v2687 = vshrl.u32 %v2686, 7
      %v2688 = vsub.s32 %v2685, %v2687
      %v2689 = vrot.slane %v2681, %v2688
      %v2691 = vunpack.c.l.s4 1983009808
      %v2692 = vunpack.c.0.s8 %v2691
      %v2693 = vlaneseq
      %v2694 = vshrl.u32 %v2693, 7
      %v2695 = vsub.s32 %v2692, %v2694
      %v2696 = vrot.slane %v2682, %v2695
      %v2697 = vcombine.low %v2506, %v2518
      %v2698 = vcombine.high %v2506, %v2518
      %v2700 = vunpack.c.l.s4 1983009808
      %v2701 = vunpack.c.0.s8 %v2700
      %v2702 = vlaneseq
      %v2703 = vshrl.u32 %v2702, 7
      %v2704 = vsub.s32 %v2701, %v2703
      %v2705 = vrot.slane %v2697, %v2704
      %v2707 = vunpack.c.l.s4 1983009808
      %v2708 = vunpack.c.0.s8 %v2707
      %v2709 = vlaneseq
      %v2710 = vshrl.u32 %v2709, 7
      %v2711 = vsub.s32 %v2708, %v2710
      %v2712 = vrot.slane %v2698, %v2711
      %v2713 = vcombine.low %v2524, %v2536
      %v2714 = vcombine.high %v2524, %v2536
      %v2716 = vunpack.c.l.s4 1983009808
      %v2717 = vunpack.c.0.s8 %v2716
      %v2718 = vlaneseq
      %v2719 = vshrl.u32 %v2718, 7
      %v2720 = vsub.s32 %v2717, %v2719
      %v2721 = vrot.slane %v2713, %v2720
      %v2723 = vunpack.c.l.s4 1983009808
      %v2724 = vunpack.c.0.s8 %v2723
      %v2725 = vlaneseq
      %v2726 = vshrl.u32 %v2725, 7
      %v2727 = vsub.s32 %v2724, %v2726
      %v2728 = vrot.slane %v2714, %v2727
      %v2729 = vcombine.low %v2530, %v2542
      %v2730 = vcombine.high %v2530, %v2542
      %v2732 = vunpack.c.l.s4 1983009808
      %v2733 = vunpack.c.0.s8 %v2732
      %v2734 = vlaneseq
      %v2735 = vshrl.u32 %v2734, 7
      %v2736 = vsub.s32 %v2733, %v2735
      %v2737 = vrot.slane %v2729, %v2736
      %v2739 = vunpack.c.l.s4 1983009808
      %v2740 = vunpack.c.0.s8 %v2739
      %v2741 = vlaneseq
      %v2742 = vshrl.u32 %v2741, 7
      %v2743 = vsub.s32 %v2740, %v2742
      %v2744 = vrot.slane %v2730, %v2743
      %v2745 = vcombine.low %v2689, %v2705
      %v2746 = vcombine.high %v2689, %v2705
      %v2748 = vunpack.c.l.s4 1934713408
      %v2749 = vunpack.c.0.s8 %v2748
      %v2750 = vlaneseq
      %v2751 = vshrl.u32 %v2750, 7
      %v2752 = vsub.s32 %v2749, %v2751
      %v2753 = vrot.slane %v2745, %v2752
      %v2755 = vunpack.c.l.s4 1934713408
      %v2756 = vunpack.c.0.s8 %v2755
      %v2757 = vlaneseq
      %v2758 = vshrl.u32 %v2757, 7
      %v2759 = vsub.s32 %v2756, %v2758
      %v2760 = vrot.slane %v2746, %v2759
      %v2761 = vcombine.low %v2696, %v2712
      %v2762 = vcombine.high %v2696, %v2712
      %v2764 = vunpack.c.l.s4 1934713408
      %v2765 = vunpack.c.0.s8 %v2764
      %v2766 = vlaneseq
      %v2767 = vshrl.u32 %v2766, 7
      %v2768 = vsub.s32 %v2765, %v2767
      %v2769 = vrot.slane %v2761, %v2768
      %v2771 = vunpack.c.l.s4 1934713408
      %v2772 = vunpack.c.0.s8 %v2771
      %v2773 = vlaneseq
      %v2774 = vshrl.u32 %v2773, 7
      %v2775 = vsub.s32 %v2772, %v2774
      %v2776 = vrot.slane %v2762, %v2775
      %v2777 = vcombine.low %v2721, %v2737
      %v2778 = vcombine.high %v2721, %v2737
      %v2780 = vunpack.c.l.s4 1934713408
      %v2781 = vunpack.c.0.s8 %v2780
      %v2782 = vlaneseq
      %v2783 = vshrl.u32 %v2782, 7
      %v2784 = vsub.s32 %v2781, %v2783
      %v2785 = vrot.slane %v2777, %v2784
      %v2787 = vunpack.c.l.s4 1934713408
      %v2788 = vunpack.c.0.s8 %v2787
      %v2789 = vlaneseq
      %v2790 = vshrl.u32 %v2789, 7
      %v2791 = vsub.s32 %v2788, %v2790
      %v2792 = vrot.slane %v2778, %v2791
      %v2793 = vcombine.low %v2728, %v2744
      %v2794 = vcombine.high %v2728, %v2744
      %v2796 = vunpack.c.l.s4 1934713408
      %v2797 = vunpack.c.0.s8 %v2796
      %v2798 = vlaneseq
      %v2799 = vshrl.u32 %v2798, 7
      %v2800 = vsub.s32 %v2797, %v2799
      %v2801 = vrot.slane %v2793, %v2800
      %v2803 = vunpack.c.l.s4 1934713408
      %v2804 = vunpack.c.0.s8 %v2803
      %v2805 = vlaneseq
      %v2806 = vshrl.u32 %v2805, 7
      %v2807 = vsub.s32 %v2804, %v2806
      %v2808 = vrot.slane %v2794, %v2807
      %v2809 = vcombine.low %v2753, %v2785
      %v2810 = vcombine.high %v2753, %v2785
      %v2811 = vcombine.low %v2760, %v2792
      %v2812 = vcombine.high %v2760, %v2792
      %v2813 = vcombine.low %v2769, %v2801
      %v2814 = vcombine.high %v2769, %v2801
      %v2815 = vcombine.low %v2776, %v2808
      %v2816 = vcombine.high %v2776, %v2808
      %v2817 = vpack.c.bf16 %v2673, %v2673
      %v2818 = vpack.c.bf16 %v2674, %v2674
      %v2819 = vpack.c.bf16 %v2675, %v2675
      %v2820 = vpack.c.bf16 %v2676, %v2676
      %v2821 = vpack.c.bf16 %v2677, %v2677
      %v2822 = vpack.c.bf16 %v2678, %v2678
      %v2823 = vpack.c.bf16 %v2679, %v2679
      %v2824 = vpack.c.bf16 %v2680, %v2680
      %v2825 = vpack.c.bf16 %v2809, %v2809
      %v2826 = vpack.c.bf16 %v2810, %v2810
      %v2827 = vpack.c.bf16 %v2811, %v2811
      %v2828 = vpack.c.bf16 %v2812, %v2812
      %v2829 = vpack.c.bf16 %v2813, %v2813
      %v2830 = vpack.c.bf16 %v2814, %v2814
      %v2831 = vpack.c.bf16 %v2815, %v2815
      %v2832 = vpack.c.bf16 %v2816, %v2816
      %v2833 = vld [vmem:[%s8] sm:$0xf]
      %v2834 = vld [vmem:[%s8 + $0x4] sm:$0xf]
      %v2835 = vld [vmem:[%s8 + $0x8] sm:$0xf]
      %v2836 = vld [vmem:[%s8 + $0xc] sm:$0xf]
      %v2837 = vld [vmem:[%s8 + $0x10] sm:$0xf]
      %v2838 = vld [vmem:[%s8 + $0x14] sm:$0xf]
      %v2839 = vld [vmem:[%s8 + $0x18] sm:$0xf]
      %v2840 = vld [vmem:[%s8 + $0x1c] sm:$0xf]
      %2841 = vxpose.xlu0.c.b16.start [1/8] %v2817, 128
      %2842 = vxpose.xlu0.c.b16.cont [2/8] 0, 128
      %2843 = vxpose.xlu0.c.b16.cont [3/8] 0, 128
      %2844 = vxpose.xlu0.c.b16.cont [4/8] 0, 128
      %2845 = vxpose.xlu0.c.b16.cont [5/8] 0, 128
      %2846 = vxpose.xlu0.c.b16.cont [6/8] 0, 128
      %2847 = vxpose.xlu0.c.b16.cont [7/8] 0, 128
      %2848 = vxpose.xlu0.c.b16.end [8/8] 0, 128
      %v2849 = vpop.trf.xlu0
      %v2850 = vpop.trf.xlu0
      %v2851 = vpop.trf.xlu0
      %v2852 = vpop.trf.xlu0
      %v2853 = vpop.trf.xlu0
      %v2854 = vpop.trf.xlu0
      %v2855 = vpop.trf.xlu0
      %v2856 = vpop.trf.xlu0
      %2857 = vxpose.xlu0.c.b16.start [1/8] %v2818, 128
      %2858 = vxpose.xlu0.c.b16.cont [2/8] 0, 128
      %2859 = vxpose.xlu0.c.b16.cont [3/8] 0, 128
      %2860 = vxpose.xlu0.c.b16.cont [4/8] 0, 128
      %2861 = vxpose.xlu0.c.b16.cont [5/8] 0, 128
      %2862 = vxpose.xlu0.c.b16.cont [6/8] 0, 128
      %2863 = vxpose.xlu0.c.b16.cont [7/8] 0, 128
      %2864 = vxpose.xlu0.c.b16.end [8/8] 0, 128
      %v2865 = vpop.trf.xlu0
      %v2866 = vpop.trf.xlu0
      %v2867 = vpop.trf.xlu0
      %v2868 = vpop.trf.xlu0
      %v2869 = vpop.trf.xlu0
      %v2870 = vpop.trf.xlu0
      %v2871 = vpop.trf.xlu0
      %v2872 = vpop.trf.xlu0
      %2873 = vxpose.xlu0.c.b16.start [1/8] %v2819, 128
      %2874 = vxpose.xlu0.c.b16.cont [2/8] 0, 128
      %2875 = vxpose.xlu0.c.b16.cont [3/8] 0, 128
      %2876 = vxpose.xlu0.c.b16.cont [4/8] 0, 128
      %2877 = vxpose.xlu0.c.b16.cont [5/8] 0, 128
      %2878 = vxpose.xlu0.c.b16.cont [6/8] 0, 128
      %2879 = vxpose.xlu0.c.b16.cont [7/8] 0, 128
      %2880 = vxpose.xlu0.c.b16.end [8/8] 0, 128
      %v2881 = vpop.trf.xlu0
      %v2882 = vpop.trf.xlu0
      %v2883 = vpop.trf.xlu0
      %v2884 = vpop.trf.xlu0
      %v2885 = vpop.trf.xlu0
      %v2886 = vpop.trf.xlu0
      %v2887 = vpop.trf.xlu0
      %v2888 = vpop.trf.xlu0
      %2889 = vxpose.xlu0.c.b16.start [1/8] %v2820, 128
      %2890 = vxpose.xlu0.c.b16.cont [2/8] 0, 128
      %2891 = vxpose.xlu0.c.b16.cont [3/8] 0, 128
      %2892 = vxpose.xlu0.c.b16.cont [4/8] 0, 128
      %2893 = vxpose.xlu0.c.b16.cont [5/8] 0, 128
      %2894 = vxpose.xlu0.c.b16.cont [6/8] 0, 128
      %2895 = vxpose.xlu0.c.b16.cont [7/8] 0, 128
      %2896 = vxpose.xlu0.c.b16.end [8/8] 0, 128
      %v2897 = vpop.trf.xlu0
      %v2898 = vpop.trf.xlu0
      %v2899 = vpop.trf.xlu0
      %v2900 = vpop.trf.xlu0
      %v2901 = vpop.trf.xlu0
      %v2902 = vpop.trf.xlu0
      %v2903 = vpop.trf.xlu0
      %v2904 = vpop.trf.xlu0
      %2905 = vxpose.xlu0.c.b16.start [1/8] %v2821, 128
      %2906 = vxpose.xlu0.c.b16.cont [2/8] 0, 128
      %2907 = vxpose.xlu0.c.b16.cont [3/8] 0, 128
      %2908 = vxpose.xlu0.c.b16.cont [4/8] 0, 128
      %2909 = vxpose.xlu0.c.b16.cont [5/8] 0, 128
      %2910 = vxpose.xlu0.c.b16.cont [6/8] 0, 128
      %2911 = vxpose.xlu0.c.b16.cont [7/8] 0, 128
      %2912 = vxpose.xlu0.c.b16.end [8/8] 0, 128
      %v2913 = vpop.trf.xlu0
      %v2914 = vpop.trf.xlu0
      %v2915 = vpop.trf.xlu0
      %v2916 = vpop.trf.xlu0
      %v2917 = vpop.trf.xlu0
      %v2918 = vpop.trf.xlu0
      %v2919 = vpop.trf.xlu0
      %v2920 = vpop.trf.xlu0
      %2921 = vxpose.xlu0.c.b16.start [1/8] %v2822, 128
      %2922 = vxpose.xlu0.c.b16.cont [2/8] 0, 128
      %2923 = vxpose.xlu0.c.b16.cont [3/8] 0, 128
      %2924 = vxpose.xlu0.c.b16.cont [4/8] 0, 128
      %2925 = vxpose.xlu0.c.b16.cont [5/8] 0, 128
      %2926 = vxpose.xlu0.c.b16.cont [6/8] 0, 128
      %2927 = vxpose.xlu0.c.b16.cont [7/8] 0, 128
      %2928 = vxpose.xlu0.c.b16.end [8/8] 0, 128
      %v2929 = vpop.trf.xlu0
      %v2930 = vpop.trf.xlu0
      %v2931 = vpop.trf.xlu0
      %v2932 = vpop.trf.xlu0
      %v2933 = vpop.trf.xlu0
      %v2934 = vpop.trf.xlu0
      %v2935 = vpop.trf.xlu0
      %v2936 = vpop.trf.xlu0
      %2937 = vxpose.xlu0.c.b16.start [1/8] %v2823, 128
      %2938 = vxpose.xlu0.c.b16.cont [2/8] 0, 128
      %2939 = vxpose.xlu0.c.b16.cont [3/8] 0, 128
      %2940 = vxpose.xlu0.c.b16.cont [4/8] 0, 128
      %2941 = vxpose.xlu0.c.b16.cont [5/8] 0, 128
      %2942 = vxpose.xlu0.c.b16.cont [6/8] 0, 128
      %2943 = vxpose.xlu0.c.b16.cont [7/8] 0, 128
      %2944 = vxpose.xlu0.c.b16.end [8/8] 0, 128
      %v2945 = vpop.trf.xlu0
      %v2946 = vpop.trf.xlu0
      %v2947 = vpop.trf.xlu0
      %v2948 = vpop.trf.xlu0
      %v2949 = vpop.trf.xlu0
      %v2950 = vpop.trf.xlu0
      %v2951 = vpop.trf.xlu0
      %v2952 = vpop.trf.xlu0
      %2953 = vxpose.xlu0.c.b16.start [1/8] %v2824, 128
      %2954 = vxpose.xlu0.c.b16.cont [2/8] 0, 128
      %2955 = vxpose.xlu0.c.b16.cont [3/8] 0, 128
      %2956 = vxpose.xlu0.c.b16.cont [4/8] 0, 128
      %2957 = vxpose.xlu0.c.b16.cont [5/8] 0, 128
      %2958 = vxpose.xlu0.c.b16.cont [6/8] 0, 128
      %2959 = vxpose.xlu0.c.b16.cont [7/8] 0, 128
      %2960 = vxpose.xlu0.c.b16.end [8/8] 0, 128
      %v2961 = vpop.trf.xlu0
      %v2962 = vpop.trf.xlu0
      %v2963 = vpop.trf.xlu0
      %v2964 = vpop.trf.xlu0
      %v2965 = vpop.trf.xlu0
      %v2966 = vpop.trf.xlu0
      %v2967 = vpop.trf.xlu0
      %v2968 = vpop.trf.xlu0
      %2969 = vxpose.xlu0.c.b16.start [1/8] %v2825, 128
      %2970 = vxpose.xlu0.c.b16.cont [2/8] 0, 128
      %2971 = vxpose.xlu0.c.b16.cont [3/8] 0, 128
      %2972 = vxpose.xlu0.c.b16.cont [4/8] 0, 128
      %2973 = vxpose.xlu0.c.b16.cont [5/8] 0, 128
      %2974 = vxpose.xlu0.c.b16.cont [6/8] 0, 128
      %2975 = vxpose.xlu0.c.b16.cont [7/8] 0, 128
      %2976 = vxpose.xlu0.c.b16.end [8/8] 0, 128
      %v2977 = vpop.trf.xlu0
      %v2978 = vpop.trf.xlu0
      %v2979 = vpop.trf.xlu0
      %v2980 = vpop.trf.xlu0
      %v2981 = vpop.trf.xlu0
      %v2982 = vpop.trf.xlu0
      %v2983 = vpop.trf.xlu0
      %v2984 = vpop.trf.xlu0
      %2985 = vxpose.xlu0.c.b16.start [1/8] %v2826, 128
      %2986 = vxpose.xlu0.c.b16.cont [2/8] 0, 128
      %2987 = vxpose.xlu0.c.b16.cont [3/8] 0, 128
      %2988 = vxpose.xlu0.c.b16.cont [4/8] 0, 128
      %2989 = vxpose.xlu0.c.b16.cont [5/8] 0, 128
      %2990 = vxpose.xlu0.c.b16.cont [6/8] 0, 128
      %2991 = vxpose.xlu0.c.b16.cont [7/8] 0, 128
      %2992 = vxpose.xlu0.c.b16.end [8/8] 0, 128
      %v2993 = vpop.trf.xlu0
      %v2994 = vpop.trf.xlu0
      %v2995 = vpop.trf.xlu0
      %v2996 = vpop.trf.xlu0
      %v2997 = vpop.trf.xlu0
      %v2998 = vpop.trf.xlu0
      %v2999 = vpop.trf.xlu0
      %v3000 = vpop.trf.xlu0
      %3001 = vxpose.xlu0.c.b16.start [1/8] %v2827, 128
      %3002 = vxpose.xlu0.c.b16.cont [2/8] 0, 128
      %3003 = vxpose.xlu0.c.b16.cont [3/8] 0, 128
      %3004 = vxpose.xlu0.c.b16.cont [4/8] 0, 128
      %3005 = vxpose.xlu0.c.b16.cont [5/8] 0, 128
      %3006 = vxpose.xlu0.c.b16.cont [6/8] 0, 128
      %3007 = vxpose.xlu0.c.b16.cont [7/8] 0, 128
      %3008 = vxpose.xlu0.c.b16.end [8/8] 0, 128
      %v3009 = vpop.trf.xlu0
      %v3010 = vpop.trf.xlu0
      %v3011 = vpop.trf.xlu0
      %v3012 = vpop.trf.xlu0
      %v3013 = vpop.trf.xlu0
      %v3014 = vpop.trf.xlu0
      %v3015 = vpop.trf.xlu0
      %v3016 = vpop.trf.xlu0
      %3017 = vxpose.xlu0.c.b16.start [1/8] %v2828, 128
      %3018 = vxpose.xlu0.c.b16.cont [2/8] 0, 128
      %3019 = vxpose.xlu0.c.b16.cont [3/8] 0, 128
      %3020 = vxpose.xlu0.c.b16.cont [4/8] 0, 128
      %3021 = vxpose.xlu0.c.b16.cont [5/8] 0, 128
      %3022 = vxpose.xlu0.c.b16.cont [6/8] 0, 128
      %3023 = vxpose.xlu0.c.b16.cont [7/8] 0, 128
      %3024 = vxpose.xlu0.c.b16.end [8/8] 0, 128
      %v3025 = vpop.trf.xlu0
      %v3026 = vpop.trf.xlu0
      %v3027 = vpop.trf.xlu0
      %v3028 = vpop.trf.xlu0
      %v3029 = vpop.trf.xlu0
      %v3030 = vpop.trf.xlu0
      %v3031 = vpop.trf.xlu0
      %v3032 = vpop.trf.xlu0
      %3033 = vxpose.xlu0.c.b16.start [1/8] %v2829, 128
      %3034 = vxpose.xlu0.c.b16.cont [2/8] 0, 128
      %3035 = vxpose.xlu0.c.b16.cont [3/8] 0, 128
      %3036 = vxpose.xlu0.c.b16.cont [4/8] 0, 128
      %3037 = vxpose.xlu0.c.b16.cont [5/8] 0, 128
      %3038 = vxpose.xlu0.c.b16.cont [6/8] 0, 128
      %3039 = vxpose.xlu0.c.b16.cont [7/8] 0, 128
      %3040 = vxpose.xlu0.c.b16.end [8/8] 0, 128
      %v3041 = vpop.trf.xlu0
      %v3042 = vpop.trf.xlu0
      %v3043 = vpop.trf.xlu0
      %v3044 = vpop.trf.xlu0
      %v3045 = vpop.trf.xlu0
      %v3046 = vpop.trf.xlu0
      %v3047 = vpop.trf.xlu0
      %v3048 = vpop.trf.xlu0
      %3049 = vxpose.xlu0.c.b16.start [1/8] %v2830, 128
      %3050 = vxpose.xlu0.c.b16.cont [2/8] 0, 128
      %3051 = vxpose.xlu0.c.b16.cont [3/8] 0, 128
      %3052 = vxpose.xlu0.c.b16.cont [4/8] 0, 128
      %3053 = vxpose.xlu0.c.b16.cont [5/8] 0, 128
      %3054 = vxpose.xlu0.c.b16.cont [6/8] 0, 128
      %3055 = vxpose.xlu0.c.b16.cont [7/8] 0, 128
      %3056 = vxpose.xlu0.c.b16.end [8/8] 0, 128
      %v3057 = vpop.trf.xlu0
      %v3058 = vpop.trf.xlu0
      %v3059 = vpop.trf.xlu0
      %v3060 = vpop.trf.xlu0
      %v3061 = vpop.trf.xlu0
      %v3062 = vpop.trf.xlu0
      %v3063 = vpop.trf.xlu0
      %v3064 = vpop.trf.xlu0
      %3065 = vxpose.xlu0.c.b16.start [1/8] %v2831, 128
      %3066 = vxpose.xlu0.c.b16.cont [2/8] 0, 128
      %3067 = vxpose.xlu0.c.b16.cont [3/8] 0, 128
      %3068 = vxpose.xlu0.c.b16.cont [4/8] 0, 128
      %3069 = vxpose.xlu0.c.b16.cont [5/8] 0, 128
      %3070 = vxpose.xlu0.c.b16.cont [6/8] 0, 128
      %3071 = vxpose.xlu0.c.b16.cont [7/8] 0, 128
      %3072 = vxpose.xlu0.c.b16.end [8/8] 0, 128
      %v3073 = vpop.trf.xlu0
      %v3074 = vpop.trf.xlu0
      %v3075 = vpop.trf.xlu0
      %v3076 = vpop.trf.xlu0
      %v3077 = vpop.trf.xlu0
      %v3078 = vpop.trf.xlu0
      %v3079 = vpop.trf.xlu0
      %v3080 = vpop.trf.xlu0
      %3081 = vxpose.xlu0.c.b16.start [1/8] %v2832, 128
      %3082 = vxpose.xlu0.c.b16.cont [2/8] 0, 128
      %3083 = vxpose.xlu0.c.b16.cont [3/8] 0, 128
      %3084 = vxpose.xlu0.c.b16.cont [4/8] 0, 128
      %3085 = vxpose.xlu0.c.b16.cont [5/8] 0, 128
      %3086 = vxpose.xlu0.c.b16.cont [6/8] 0, 128
      %3087 = vxpose.xlu0.c.b16.cont [7/8] 0, 128
      %3088 = vxpose.xlu0.c.b16.end [8/8] 0, 128
      %v3089 = vpop.trf.xlu0
      %v3090 = vpop.trf.xlu0
      %v3091 = vpop.trf.xlu0
      %v3092 = vpop.trf.xlu0
      %v3093 = vpop.trf.xlu0
      %v3094 = vpop.trf.xlu0
      %v3095 = vpop.trf.xlu0
      %v3096 = vpop.trf.xlu0
      %v3097 = vcombine.low %v2849, %v2913
      %v3099 = vunpack.c.l.s4 1983009808
      %v3100 = vunpack.c.0.s8 %v3099
      %v3101 = vlaneseq
      %v3102 = vshrl.u32 %v3101, 7
      %v3103 = vsub.s32 %v3100, %v3102
      %v3104 = vrot.slane %v3097, %v3103
      %v3105 = vcombine.low %v2881, %v2945
      %v3107 = vunpack.c.l.s4 1983009808
      %v3108 = vunpack.c.0.s8 %v3107
      %v3109 = vlaneseq
      %v3110 = vshrl.u32 %v3109, 7
      %v3111 = vsub.s32 %v3108, %v3110
      %v3112 = vrot.slane %v3105, %v3111
      %v3113 = vcombine.low %v2977, %v3041
      %v3115 = vunpack.c.l.s4 1983009808
      %v3116 = vunpack.c.0.s8 %v3115
      %v3117 = vlaneseq
      %v3118 = vshrl.u32 %v3117, 7
      %v3119 = vsub.s32 %v3116, %v3118
      %v3120 = vrot.slane %v3113, %v3119
      %v3121 = vcombine.low %v3009, %v3073
      %v3123 = vunpack.c.l.s4 1983009808
      %v3124 = vunpack.c.0.s8 %v3123
      %v3125 = vlaneseq
      %v3126 = vshrl.u32 %v3125, 7
      %v3127 = vsub.s32 %v3124, %v3126
      %v3128 = vrot.slane %v3121, %v3127
      %v3129 = vcombine.low %v3104, %v3112
      %v3130 = vcombine.high %v3104, %v3112
      %v3132 = vunpack.c.l.s4 1934713408
      %v3133 = vunpack.c.0.s8 %v3132
      %v3134 = vlaneseq
      %v3135 = vshrl.u32 %v3134, 7
      %v3136 = vsub.s32 %v3133, %v3135
      %v3137 = vrot.slane %v3129, %v3136
      %v3139 = vunpack.c.l.s4 1934713408
      %v3140 = vunpack.c.0.s8 %v3139
      %v3141 = vlaneseq
      %v3142 = vshrl.u32 %v3141, 7
      %v3143 = vsub.s32 %v3140, %v3142
      %v3144 = vrot.slane %v3130, %v3143
      %v3145 = vcombine.low %v3120, %v3128
      %v3146 = vcombine.high %v3120, %v3128
      %v3148 = vunpack.c.l.s4 1934713408
      %v3149 = vunpack.c.0.s8 %v3148
      %v3150 = vlaneseq
      %v3151 = vshrl.u32 %v3150, 7
      %v3152 = vsub.s32 %v3149, %v3151
      %v3153 = vrot.slane %v3145, %v3152
      %v3155 = vunpack.c.l.s4 1934713408
      %v3156 = vunpack.c.0.s8 %v3155
      %v3157 = vlaneseq
      %v3158 = vshrl.u32 %v3157, 7
      %v3159 = vsub.s32 %v3156, %v3158
      %v3160 = vrot.slane %v3146, %v3159
      %v3161 = vcombine.low %v3137, %v3153
      %v3162 = vcombine.high %v3137, %v3153
      %v3163 = vcombine.low %v3144, %v3160
      %v3164 = vcombine.high %v3144, %v3160
      %v3165 = vcombine.low %v2865, %v2929
      %v3167 = vunpack.c.l.s4 1983009808
      %v3168 = vunpack.c.0.s8 %v3167
      %v3169 = vlaneseq
      %v3170 = vshrl.u32 %v3169, 7
      %v3171 = vsub.s32 %v3168, %v3170
      %v3172 = vrot.slane %v3165, %v3171
      %v3173 = vcombine.low %v2897, %v2961
      %v3175 = vunpack.c.l.s4 1983009808
      %v3176 = vunpack.c.0.s8 %v3175
      %v3177 = vlaneseq
      %v3178 = vshrl.u32 %v3177, 7
      %v3179 = vsub.s32 %v3176, %v3178
      %v3180 = vrot.slane %v3173, %v3179
      %v3181 = vcombine.low %v2993, %v3057
      %v3183 = vunpack.c.l.s4 1983009808
      %v3184 = vunpack.c.0.s8 %v3183
      %v3185 = vlaneseq
      %v3186 = vshrl.u32 %v3185, 7
      %v3187 = vsub.s32 %v3184, %v3186
      %v3188 = vrot.slane %v3181, %v3187
      %v3189 = vcombine.low %v3025, %v3089
      %v3191 = vunpack.c.l.s4 1983009808
      %v3192 = vunpack.c.0.s8 %v3191
      %v3193 = vlaneseq
      %v3194 = vshrl.u32 %v3193, 7
      %v3195 = vsub.s32 %v3192, %v3194
      %v3196 = vrot.slane %v3189, %v3195
      %v3197 = vcombine.low %v3172, %v3180
      %v3198 = vcombine.high %v3172, %v3180
      %v3200 = vunpack.c.l.s4 1934713408
      %v3201 = vunpack.c.0.s8 %v3200
      %v3202 = vlaneseq
      %v3203 = vshrl.u32 %v3202, 7
      %v3204 = vsub.s32 %v3201, %v3203
      %v3205 = vrot.slane %v3197, %v3204
      %v3207 = vunpack.c.l.s4 1934713408
      %v3208 = vunpack.c.0.s8 %v3207
      %v3209 = vlaneseq
      %v3210 = vshrl.u32 %v3209, 7
      %v3211 = vsub.s32 %v3208, %v3210
      %v3212 = vrot.slane %v3198, %v3211
      %v3213 = vcombine.low %v3188, %v3196
      %v3214 = vcombine.high %v3188, %v3196
      %v3216 = vunpack.c.l.s4 1934713408
      %v3217 = vunpack.c.0.s8 %v3216
      %v3218 = vlaneseq
      %v3219 = vshrl.u32 %v3218, 7
      %v3220 = vsub.s32 %v3217, %v3219
      %v3221 = vrot.slane %v3213, %v3220
      %v3223 = vunpack.c.l.s4 1934713408
      %v3224 = vunpack.c.0.s8 %v3223
      %v3225 = vlaneseq
      %v3226 = vshrl.u32 %v3225, 7
      %v3227 = vsub.s32 %v3224, %v3226
      %v3228 = vrot.slane %v3214, %v3227
      %v3229 = vcombine.low %v3205, %v3221
      %v3230 = vcombine.high %v3205, %v3221
      %v3231 = vcombine.low %v3212, %v3228
      %v3232 = vcombine.high %v3212, %v3228
      %v3235 = vpack.i.b16 %v3229, %v3161
      %v3237 = vshrl.u32 %v3161, 16
      %v3238 = vshrl.u32 %v3229, 16
      %v3239 = vpack.i.b16 %v3238, %v3237
      %v3243 = vpack.i.b16 %v3230, %v3162
      %v3245 = vshrl.u32 %v3162, 16
      %v3246 = vshrl.u32 %v3230, 16
      %v3247 = vpack.i.b16 %v3246, %v3245
      %v3251 = vpack.i.b16 %v3231, %v3163
      %v3253 = vshrl.u32 %v3163, 16
      %v3254 = vshrl.u32 %v3231, 16
      %v3255 = vpack.i.b16 %v3254, %v3253
      %v3259 = vpack.i.b16 %v3232, %v3164
      %v3261 = vshrl.u32 %v3164, 16
      %v3262 = vshrl.u32 %v3232, 16
      %v3263 = vpack.i.b16 %v3262, %v3261
      %3265 = vxpose.xlu0.c.b16.start [1/8] %v3235, 128
      %3266 = vxpose.xlu0.c.b16.cont [2/8] 0, 128
      %3267 = vxpose.xlu0.c.b16.cont [3/8] 0, 128
      %3268 = vxpose.xlu0.c.b16.cont [4/8] 0, 128
      %3269 = vxpose.xlu0.c.b16.cont [5/8] 0, 128
      %3270 = vxpose.xlu0.c.b16.cont [6/8] 0, 128
      %3271 = vxpose.xlu0.c.b16.cont [7/8] 0, 128
      %3272 = vxpose.xlu0.c.b16.end [8/8] 0, 128
      %v3273 = vpop.trf.xlu0
      %v3274 = vpop.trf.xlu0
      %v3275 = vpop.trf.xlu0
      %v3276 = vpop.trf.xlu0
      %v3277 = vpop.trf.xlu0
      %v3278 = vpop.trf.xlu0
      %v3279 = vpop.trf.xlu0
      %v3280 = vpop.trf.xlu0
      %3281 = vxpose.xlu0.c.b16.start [1/8] %v3239, 128
      %3282 = vxpose.xlu0.c.b16.cont [2/8] 0, 128
      %3283 = vxpose.xlu0.c.b16.cont [3/8] 0, 128
      %3284 = vxpose.xlu0.c.b16.cont [4/8] 0, 128
      %3285 = vxpose.xlu0.c.b16.cont [5/8] 0, 128
      %3286 = vxpose.xlu0.c.b16.cont [6/8] 0, 128
      %3287 = vxpose.xlu0.c.b16.cont [7/8] 0, 128
      %3288 = vxpose.xlu0.c.b16.end [8/8] 0, 128
      %v3289 = vpop.trf.xlu0
      %v3290 = vpop.trf.xlu0
      %v3291 = vpop.trf.xlu0
      %v3292 = vpop.trf.xlu0
      %v3293 = vpop.trf.xlu0
      %v3294 = vpop.trf.xlu0
      %v3295 = vpop.trf.xlu0
      %v3296 = vpop.trf.xlu0
      %3297 = vxpose.xlu0.c.b16.start [1/8] %v3243, 128
      %3298 = vxpose.xlu0.c.b16.cont [2/8] 0, 128
      %3299 = vxpose.xlu0.c.b16.cont [3/8] 0, 128
      %3300 = vxpose.xlu0.c.b16.cont [4/8] 0, 128
      %3301 = vxpose.xlu0.c.b16.cont [5/8] 0, 128
      %3302 = vxpose.xlu0.c.b16.cont [6/8] 0, 128
      %3303 = vxpose.xlu0.c.b16.cont [7/8] 0, 128
      %3304 = vxpose.xlu0.c.b16.end [8/8] 0, 128
      %v3305 = vpop.trf.xlu0
      %v3306 = vpop.trf.xlu0
      %v3307 = vpop.trf.xlu0
      %v3308 = vpop.trf.xlu0
      %v3309 = vpop.trf.xlu0
      %v3310 = vpop.trf.xlu0
      %v3311 = vpop.trf.xlu0
      %v3312 = vpop.trf.xlu0
      %3313 = vxpose.xlu0.c.b16.start [1/8] %v3247, 128
      %3314 = vxpose.xlu0.c.b16.cont [2/8] 0, 128
      %3315 = vxpose.xlu0.c.b16.cont [3/8] 0, 128
      %3316 = vxpose.xlu0.c.b16.cont [4/8] 0, 128
      %3317 = vxpose.xlu0.c.b16.cont [5/8] 0, 128
      %3318 = vxpose.xlu0.c.b16.cont [6/8] 0, 128
      %3319 = vxpose.xlu0.c.b16.cont [7/8] 0, 128
      %3320 = vxpose.xlu0.c.b16.end [8/8] 0, 128
      %v3321 = vpop.trf.xlu0
      %v3322 = vpop.trf.xlu0
      %v3323 = vpop.trf.xlu0
      %v3324 = vpop.trf.xlu0
      %v3325 = vpop.trf.xlu0
      %v3326 = vpop.trf.xlu0
      %v3327 = vpop.trf.xlu0
      %v3328 = vpop.trf.xlu0
      %3329 = vxpose.xlu0.c.b16.start [1/8] %v3251, 128
      %3330 = vxpose.xlu0.c.b16.cont [2/8] 0, 128
      %3331 = vxpose.xlu0.c.b16.cont [3/8] 0, 128
      %3332 = vxpose.xlu0.c.b16.cont [4/8] 0, 128
      %3333 = vxpose.xlu0.c.b16.cont [5/8] 0, 128
      %3334 = vxpose.xlu0.c.b16.cont [6/8] 0, 128
      %3335 = vxpose.xlu0.c.b16.cont [7/8] 0, 128
      %3336 = vxpose.xlu0.c.b16.end [8/8] 0, 128
      %v3337 = vpop.trf.xlu0
      %v3338 = vpop.trf.xlu0
      %v3339 = vpop.trf.xlu0
      %v3340 = vpop.trf.xlu0
      %v3341 = vpop.trf.xlu0
      %v3342 = vpop.trf.xlu0
      %v3343 = vpop.trf.xlu0
      %v3344 = vpop.trf.xlu0
      %3345 = vxpose.xlu0.c.b16.start [1/8] %v3255, 128
      %3346 = vxpose.xlu0.c.b16.cont [2/8] 0, 128
      %3347 = vxpose.xlu0.c.b16.cont [3/8] 0, 128
      %3348 = vxpose.xlu0.c.b16.cont [4/8] 0, 128
      %3349 = vxpose.xlu0.c.b16.cont [5/8] 0, 128
      %3350 = vxpose.xlu0.c.b16.cont [6/8] 0, 128
      %3351 = vxpose.xlu0.c.b16.cont [7/8] 0, 128
      %3352 = vxpose.xlu0.c.b16.end [8/8] 0, 128
      %v3353 = vpop.trf.xlu0
      %v3354 = vpop.trf.xlu0
      %v3355 = vpop.trf.xlu0
      %v3356 = vpop.trf.xlu0
      %v3357 = vpop.trf.xlu0
      %v3358 = vpop.trf.xlu0
      %v3359 = vpop.trf.xlu0
      %v3360 = vpop.trf.xlu0
      %3361 = vxpose.xlu0.c.b16.start [1/8] %v3259, 128
      %3362 = vxpose.xlu0.c.b16.cont [2/8] 0, 128
      %3363 = vxpose.xlu0.c.b16.cont [3/8] 0, 128
      %3364 = vxpose.xlu0.c.b16.cont [4/8] 0, 128
      %3365 = vxpose.xlu0.c.b16.cont [5/8] 0, 128
      %3366 = vxpose.xlu0.c.b16.cont [6/8] 0, 128
      %3367 = vxpose.xlu0.c.b16.cont [7/8] 0, 128
      %3368 = vxpose.xlu0.c.b16.end [8/8] 0, 128
      %v3369 = vpop.trf.xlu0
      %v3370 = vpop.trf.xlu0
      %v3371 = vpop.trf.xlu0
      %v3372 = vpop.trf.xlu0
      %v3373 = vpop.trf.xlu0
      %v3374 = vpop.trf.xlu0
      %v3375 = vpop.trf.xlu0
      %v3376 = vpop.trf.xlu0
      %3377 = vxpose.xlu0.c.b16.start [1/8] %v3263, 128
      %3378 = vxpose.xlu0.c.b16.cont [2/8] 0, 128
      %3379 = vxpose.xlu0.c.b16.cont [3/8] 0, 128
      %3380 = vxpose.xlu0.c.b16.cont [4/8] 0, 128
      %3381 = vxpose.xlu0.c.b16.cont [5/8] 0, 128
      %3382 = vxpose.xlu0.c.b16.cont [6/8] 0, 128
      %3383 = vxpose.xlu0.c.b16.cont [7/8] 0, 128
      %3384 = vxpose.xlu0.c.b16.end [8/8] 0, 128
      %v3385 = vpop.trf.xlu0
      %v3386 = vpop.trf.xlu0
      %v3387 = vpop.trf.xlu0
      %v3388 = vpop.trf.xlu0
      %v3389 = vpop.trf.xlu0
      %v3390 = vpop.trf.xlu0
      %v3391 = vpop.trf.xlu0
      %v3392 = vpop.trf.xlu0
      %v3393 = vcombine.low %v3273, %v3337
      %v3395 = vunpack.c.l.s4 1983009808
      %v3396 = vunpack.c.0.s8 %v3395
      %v3397 = vlaneseq
      %v3398 = vshrl.u32 %v3397, 7
      %v3399 = vsub.s32 %v3396, %v3398
      %v3400 = vrot.slane %v3393, %v3399
      %v3401 = vcombine.low %v3305, %v3369
      %v3403 = vunpack.c.l.s4 1983009808
      %v3404 = vunpack.c.0.s8 %v3403
      %v3405 = vlaneseq
      %v3406 = vshrl.u32 %v3405, 7
      %v3407 = vsub.s32 %v3404, %v3406
      %v3408 = vrot.slane %v3401, %v3407
      %v3409 = vcombine.low %v3400, %v3408
      %v3410 = vcombine.high %v3400, %v3408
      %v3412 = vunpack.c.l.s4 1934713408
      %v3413 = vunpack.c.0.s8 %v3412
      %v3414 = vlaneseq
      %v3415 = vshrl.u32 %v3414, 7
      %v3416 = vsub.s32 %v3413, %v3415
      %v3417 = vrot.slane %v3409, %v3416
      %v3419 = vunpack.c.l.s4 1934713408
      %v3420 = vunpack.c.0.s8 %v3419
      %v3421 = vlaneseq
      %v3422 = vshrl.u32 %v3421, 7
      %v3423 = vsub.s32 %v3420, %v3422
      %v3424 = vrot.slane %v3410, %v3423
      %v3425 = vcombine.high %v3417, 0
      %v3426 = vcombine.high %v3424, 0
      %v3427 = vcombine.low %v3289, %v3353
      %v3429 = vunpack.c.l.s4 1983009808
      %v3430 = vunpack.c.0.s8 %v3429
      %v3431 = vlaneseq
      %v3432 = vshrl.u32 %v3431, 7
      %v3433 = vsub.s32 %v3430, %v3432
      %v3434 = vrot.slane %v3427, %v3433
      %v3435 = vcombine.low %v3321, %v3385
      %v3437 = vunpack.c.l.s4 1983009808
      %v3438 = vunpack.c.0.s8 %v3437
      %v3439 = vlaneseq
      %v3440 = vshrl.u32 %v3439, 7
      %v3441 = vsub.s32 %v3438, %v3440
      %v3442 = vrot.slane %v3435, %v3441
      %v3443 = vcombine.low %v3434, %v3442
      %v3444 = vcombine.high %v3434, %v3442
      %v3446 = vunpack.c.l.s4 1934713408
      %v3447 = vunpack.c.0.s8 %v3446
      %v3448 = vlaneseq
      %v3449 = vshrl.u32 %v3448, 7
      %v3450 = vsub.s32 %v3447, %v3449
      %v3451 = vrot.slane %v3443, %v3450
      %v3453 = vunpack.c.l.s4 1934713408
      %v3454 = vunpack.c.0.s8 %v3453
      %v3455 = vlaneseq
      %v3456 = vshrl.u32 %v3455, 7
      %v3457 = vsub.s32 %v3454, %v3456
      %v3458 = vrot.slane %v3444, %v3457
      %v3459 = vcombine.high %v3451, 0
      %v3460 = vcombine.high %v3458, 0
      %v3463 = vpack.i.b16 %v3451, %v3417
      %v3464 = vshrl.u32 %v3417, 16
      %v3465 = vshrl.u32 %v3451, 16
      %v3466 = vpack.i.b16 %v3465, %v3464
      %v3469 = vpack.i.b16 %v3459, %v3425
      %v3470 = vshrl.u32 %v3425, 16
      %v3471 = vshrl.u32 %v3459, 16
      %v3472 = vpack.i.b16 %v3471, %v3470
      %v3475 = vpack.i.b16 %v3458, %v3424
      %v3476 = vshrl.u32 %v3424, 16
      %v3477 = vshrl.u32 %v3458, 16
      %v3478 = vpack.i.b16 %v3477, %v3476
      %v3481 = vpack.i.b16 %v3460, %v3426
      %v3482 = vshrl.u32 %v3426, 16
      %v3483 = vshrl.u32 %v3460, 16
      %v3484 = vpack.i.b16 %v3483, %v3482
      %3485 = vxpose.xlu0.c.b16.start [1/8] %v2833, 128
      %3486 = vxpose.xlu0.c.b16.cont [2/8] 0, 128
      %3487 = vxpose.xlu0.c.b16.cont [3/8] 0, 128
      %3488 = vxpose.xlu0.c.b16.cont [4/8] 0, 128
      %3489 = vxpose.xlu0.c.b16.cont [5/8] 0, 128
      %3490 = vxpose.xlu0.c.b16.cont [6/8] 0, 128
      %3491 = vxpose.xlu0.c.b16.cont [7/8] 0, 128
      %3492 = vxpose.xlu0.c.b16.end [8/8] 0, 128
      %v3493 = vpop.trf.xlu0
      %v3494 = vpop.trf.xlu0
      %v3495 = vpop.trf.xlu0
      %v3496 = vpop.trf.xlu0
      %v3497 = vpop.trf.xlu0
      %v3498 = vpop.trf.xlu0
      %v3499 = vpop.trf.xlu0
      %v3500 = vpop.trf.xlu0
      %vm3501 = vcmask 64512
      %v3503 = vsel %vm3501, %v3493, 0
      %vm3505 = vcmask 1043456
      %v3507 = vsel %vm3505, %v3463, 0
      %3509 = vmatprep.subr.bf16.mxu0 0
      %3510 = vmatpush1.bf16.msra.mxu0 %v3507
      %3511 = vmatprep.subr.bf16.mxu0 0
      %3512 = vmatpush1.bf16.msra.mxu0 0
      %3513 = vmatprep.subr.bf16.mxu0 0
      %3514 = vmatpush1.bf16.msra.mxu0 0
      %3515 = vmatprep.subr.bf16.mxu0 0
      %3516 = vmatpush1.bf16.msra.mxu0 0
      %3517 = vmatprep.subr.bf16.mxu0 0
      %3518 = vmatpush1.bf16.msra.mxu0 0
      %3519 = vmatprep.subr.bf16.mxu0 0
      %3520 = vmatpush1.bf16.msra.mxu0 0
      %3521 = vmatprep.subr.bf16.mxu0 0
      %3522 = vmatpush1.bf16.msra.mxu0 0
      %3523 = vmatprep.subr.bf16.mxu0 0
      %3524 = vmatpush1.bf16.msra.mxu0 0
      %3525 = vmatprep.subr.bf16.mxu0 0
      %3526 = vmatpush1.bf16.msra.mxu0 0
      %3527 = vmatprep.subr.bf16.mxu0 0
      %3528 = vmatpush1.bf16.msra.mxu0 0
      %3529 = vmatprep.subr.bf16.mxu0 0
      %3530 = vmatpush1.bf16.msra.mxu0 0
      %3531 = vmatprep.subr.bf16.mxu0 0
      %3532 = vmatpush1.bf16.msra.mxu0 0
      %3533 = vmatprep.subr.bf16.mxu0 0
      %3534 = vmatpush1.bf16.msra.mxu0 0
      %3535 = vmatprep.subr.bf16.mxu0 0
      %3536 = vmatpush1.bf16.msra.mxu0 0
      %3537 = vmatprep.subr.bf16.mxu0 0
      %3538 = vmatpush1.bf16.msra.mxu0 0
      %3539 = vmatprep.subr.bf16.mxu0 0
      %3540 = vmatpush1.bf16.msra.mxu0 0
      %3541 = vmatprep.mubr.bf16.mxu0 0
      %3542 = vmatmul.mubr.bf16.gmra.mrb[0].mxu0 %v3503
      %v3543 = vpop.f32.mrb[0].mxu0
      %v3544 = vadd.f32 0.0, %v3543
      %v3545 = vpop.f32.mrb[0].mxu0
      %v3546 = vpop.f32.mrb[0].mxu0
      %v3547 = vadd.f32 0.0, %v3546
      %v3548 = vpop.f32.mrb[0].mxu0
      %3549 = vdwg.mxu0
      %3550 = vxpose.xlu0.c.b16.start [1/8] %v2834, 128
      %3551 = vxpose.xlu0.c.b16.cont [2/8] 0, 128
      %3552 = vxpose.xlu0.c.b16.cont [3/8] 0, 128
      %3553 = vxpose.xlu0.c.b16.cont [4/8] 0, 128
      %3554 = vxpose.xlu0.c.b16.cont [5/8] 0, 128
      %3555 = vxpose.xlu0.c.b16.cont [6/8] 0, 128
      %3556 = vxpose.xlu0.c.b16.cont [7/8] 0, 128
      %3557 = vxpose.xlu0.c.b16.end [8/8] 0, 128
      %v3558 = vpop.trf.xlu0
      %v3559 = vpop.trf.xlu0
      %v3560 = vpop.trf.xlu0
      %v3561 = vpop.trf.xlu0
      %v3562 = vpop.trf.xlu0
      %v3563 = vpop.trf.xlu0
      %v3564 = vpop.trf.xlu0
      %v3565 = vpop.trf.xlu0
      %v3567 = vsel %vm3501, %v3558, 0
      %v3570 = vsel %vm3505, %v3466, 0
      %3572 = vmatprep.subr.bf16.mxu0 0
      %3573 = vmatpush1.bf16.msra.mxu0 %v3570
      %3574 = vmatprep.subr.bf16.mxu0 0
      %3575 = vmatpush1.bf16.msra.mxu0 0
      %3576 = vmatprep.subr.bf16.mxu0 0
      %3577 = vmatpush1.bf16.msra.mxu0 0
      %3578 = vmatprep.subr.bf16.mxu0 0
      %3579 = vmatpush1.bf16.msra.mxu0 0
      %3580 = vmatprep.subr.bf16.mxu0 0
      %3581 = vmatpush1.bf16.msra.mxu0 0
      %3582 = vmatprep.subr.bf16.mxu0 0
      %3583 = vmatpush1.bf16.msra.mxu0 0
      %3584 = vmatprep.subr.bf16.mxu0 0
      %3585 = vmatpush1.bf16.msra.mxu0 0
      %3586 = vmatprep.subr.bf16.mxu0 0
      %3587 = vmatpush1.bf16.msra.mxu0 0
      %3588 = vmatprep.subr.bf16.mxu0 0
      %3589 = vmatpush1.bf16.msra.mxu0 0
      %3590 = vmatprep.subr.bf16.mxu0 0
      %3591 = vmatpush1.bf16.msra.mxu0 0
      %3592 = vmatprep.subr.bf16.mxu0 0
      %3593 = vmatpush1.bf16.msra.mxu0 0
      %3594 = vmatprep.subr.bf16.mxu0 0
      %3595 = vmatpush1.bf16.msra.mxu0 0
      %3596 = vmatprep.subr.bf16.mxu0 0
      %3597 = vmatpush1.bf16.msra.mxu0 0
      %3598 = vmatprep.subr.bf16.mxu0 0
      %3599 = vmatpush1.bf16.msra.mxu0 0
      %3600 = vmatprep.subr.bf16.mxu0 0
      %3601 = vmatpush1.bf16.msra.mxu0 0
      %3602 = vmatprep.subr.bf16.mxu0 0
      %3603 = vmatpush1.bf16.msra.mxu0 0
      %3604 = vmatprep.mubr.bf16.mxu0 0
      %3605 = vmatmul.mubr.bf16.gmra.mrb[0].mxu0 %v3567
      %v3606 = vpop.f32.mrb[0].mxu0
      %v3607 = vadd.f32 0.0, %v3606
      %v3608 = vpop.f32.mrb[0].mxu0
      %v3609 = vpop.f32.mrb[0].mxu0
      %v3610 = vadd.f32 0.0, %v3609
      %v3611 = vpop.f32.mrb[0].mxu0
      %3612 = vdwg.mxu0
      %3613 = vxpose.xlu0.c.b16.start [1/8] %v2835, 128
      %3614 = vxpose.xlu0.c.b16.cont [2/8] 0, 128
      %3615 = vxpose.xlu0.c.b16.cont [3/8] 0, 128
      %3616 = vxpose.xlu0.c.b16.cont [4/8] 0, 128
      %3617 = vxpose.xlu0.c.b16.cont [5/8] 0, 128
      %3618 = vxpose.xlu0.c.b16.cont [6/8] 0, 128
      %3619 = vxpose.xlu0.c.b16.cont [7/8] 0, 128
      %3620 = vxpose.xlu0.c.b16.end [8/8] 0, 128
      %v3621 = vpop.trf.xlu0
      %v3622 = vpop.trf.xlu0
      %v3623 = vpop.trf.xlu0
      %v3624 = vpop.trf.xlu0
      %v3625 = vpop.trf.xlu0
      %v3626 = vpop.trf.xlu0
      %v3627 = vpop.trf.xlu0
      %v3628 = vpop.trf.xlu0
      %v3630 = vsel %vm3501, %v3621, 0
      %v3633 = vsel %vm3505, %v3469, 0
      %3635 = vmatprep.subr.bf16.mxu0 0
      %3636 = vmatpush1.bf16.msra.mxu0 %v3633
      %3637 = vmatprep.subr.bf16.mxu0 0
      %3638 = vmatpush1.bf16.msra.mxu0 0
      %3639 = vmatprep.subr.bf16.mxu0 0
      %3640 = vmatpush1.bf16.msra.mxu0 0
      %3641 = vmatprep.subr.bf16.mxu0 0
      %3642 = vmatpush1.bf16.msra.mxu0 0
      %3643 = vmatprep.subr.bf16.mxu0 0
      %3644 = vmatpush1.bf16.msra.mxu0 0
      %3645 = vmatprep.subr.bf16.mxu0 0
      %3646 = vmatpush1.bf16.msra.mxu0 0
      %3647 = vmatprep.subr.bf16.mxu0 0
      %3648 = vmatpush1.bf16.msra.mxu0 0
      %3649 = vmatprep.subr.bf16.mxu0 0
      %3650 = vmatpush1.bf16.msra.mxu0 0
      %3651 = vmatprep.subr.bf16.mxu0 0
      %3652 = vmatpush1.bf16.msra.mxu0 0
      %3653 = vmatprep.subr.bf16.mxu0 0
      %3654 = vmatpush1.bf16.msra.mxu0 0
      %3655 = vmatprep.subr.bf16.mxu0 0
      %3656 = vmatpush1.bf16.msra.mxu0 0
      %3657 = vmatprep.subr.bf16.mxu0 0
      %3658 = vmatpush1.bf16.msra.mxu0 0
      %3659 = vmatprep.subr.bf16.mxu0 0
      %3660 = vmatpush1.bf16.msra.mxu0 0
      %3661 = vmatprep.subr.bf16.mxu0 0
      %3662 = vmatpush1.bf16.msra.mxu0 0
      %3663 = vmatprep.subr.bf16.mxu0 0
      %3664 = vmatpush1.bf16.msra.mxu0 0
      %3665 = vmatprep.subr.bf16.mxu0 0
      %3666 = vmatpush1.bf16.msra.mxu0 0
      %3667 = vmatprep.mubr.bf16.mxu0 0
      %3668 = vmatmul.mubr.bf16.gmra.mrb[0].mxu0 %v3630
      %v3669 = vpop.f32.mrb[0].mxu0
      %v3670 = vadd.f32 0.0, %v3669
      %v3671 = vpop.f32.mrb[0].mxu0
      %v3672 = vpop.f32.mrb[0].mxu0
      %v3673 = vadd.f32 0.0, %v3672
      %v3674 = vpop.f32.mrb[0].mxu0
      %3675 = vdwg.mxu0
      %3676 = vxpose.xlu0.c.b16.start [1/8] %v2836, 128
      %3677 = vxpose.xlu0.c.b16.cont [2/8] 0, 128
      %3678 = vxpose.xlu0.c.b16.cont [3/8] 0, 128
      %3679 = vxpose.xlu0.c.b16.cont [4/8] 0, 128
      %3680 = vxpose.xlu0.c.b16.cont [5/8] 0, 128
      %3681 = vxpose.xlu0.c.b16.cont [6/8] 0, 128
      %3682 = vxpose.xlu0.c.b16.cont [7/8] 0, 128
      %3683 = vxpose.xlu0.c.b16.end [8/8] 0, 128
      %v3684 = vpop.trf.xlu0
      %v3685 = vpop.trf.xlu0
      %v3686 = vpop.trf.xlu0
      %v3687 = vpop.trf.xlu0
      %v3688 = vpop.trf.xlu0
      %v3689 = vpop.trf.xlu0
      %v3690 = vpop.trf.xlu0
      %v3691 = vpop.trf.xlu0
      %v3693 = vsel %vm3501, %v3684, 0
      %v3696 = vsel %vm3505, %v3472, 0
      %3698 = vmatprep.subr.bf16.mxu0 0
      %3699 = vmatpush1.bf16.msra.mxu0 %v3696
      %3700 = vmatprep.subr.bf16.mxu0 0
      %3701 = vmatpush1.bf16.msra.mxu0 0
      %3702 = vmatprep.subr.bf16.mxu0 0
      %3703 = vmatpush1.bf16.msra.mxu0 0
      %3704 = vmatprep.subr.bf16.mxu0 0
      %3705 = vmatpush1.bf16.msra.mxu0 0
      %3706 = vmatprep.subr.bf16.mxu0 0
      %3707 = vmatpush1.bf16.msra.mxu0 0
      %3708 = vmatprep.subr.bf16.mxu0 0
      %3709 = vmatpush1.bf16.msra.mxu0 0
      %3710 = vmatprep.subr.bf16.mxu0 0
      %3711 = vmatpush1.bf16.msra.mxu0 0
      %3712 = vmatprep.subr.bf16.mxu0 0
      %3713 = vmatpush1.bf16.msra.mxu0 0
      %3714 = vmatprep.subr.bf16.mxu0 0
      %3715 = vmatpush1.bf16.msra.mxu0 0
      %3716 = vmatprep.subr.bf16.mxu0 0
      %3717 = vmatpush1.bf16.msra.mxu0 0
      %3718 = vmatprep.subr.bf16.mxu0 0
      %3719 = vmatpush1.bf16.msra.mxu0 0
      %3720 = vmatprep.subr.bf16.mxu0 0
      %3721 = vmatpush1.bf16.msra.mxu0 0
      %3722 = vmatprep.subr.bf16.mxu0 0
      %3723 = vmatpush1.bf16.msra.mxu0 0
      %3724 = vmatprep.subr.bf16.mxu0 0
      %3725 = vmatpush1.bf16.msra.mxu0 0
      %3726 = vmatprep.subr.bf16.mxu0 0
      %3727 = vmatpush1.bf16.msra.mxu0 0
      %3728 = vmatprep.subr.bf16.mxu0 0
      %3729 = vmatpush1.bf16.msra.mxu0 0
      %3730 = vmatprep.mubr.bf16.mxu0 0
      %3731 = vmatmul.mubr.bf16.gmra.mrb[0].mxu0 %v3693
      %v3732 = vpop.f32.mrb[0].mxu0
      %v3733 = vadd.f32 0.0, %v3732
      %v3734 = vpop.f32.mrb[0].mxu0
      %v3735 = vpop.f32.mrb[0].mxu0
      %v3736 = vadd.f32 0.0, %v3735
      %v3737 = vpop.f32.mrb[0].mxu0
      %3738 = vdwg.mxu0
      %3739 = vxpose.xlu0.c.b16.start [1/8] %v2837, 128
      %3740 = vxpose.xlu0.c.b16.cont [2/8] 0, 128
      %3741 = vxpose.xlu0.c.b16.cont [3/8] 0, 128
      %3742 = vxpose.xlu0.c.b16.cont [4/8] 0, 128
      %3743 = vxpose.xlu0.c.b16.cont [5/8] 0, 128
      %3744 = vxpose.xlu0.c.b16.cont [6/8] 0, 128
      %3745 = vxpose.xlu0.c.b16.cont [7/8] 0, 128
      %3746 = vxpose.xlu0.c.b16.end [8/8] 0, 128
      %v3747 = vpop.trf.xlu0
      %v3748 = vpop.trf.xlu0
      %v3749 = vpop.trf.xlu0
      %v3750 = vpop.trf.xlu0
      %v3751 = vpop.trf.xlu0
      %v3752 = vpop.trf.xlu0
      %v3753 = vpop.trf.xlu0
      %v3754 = vpop.trf.xlu0
      %v3756 = vsel %vm3501, %v3747, 0
      %v3759 = vsel %vm3505, %v3475, 0
      %3761 = vmatprep.subr.bf16.mxu0 0
      %3762 = vmatpush1.bf16.msra.mxu0 %v3759
      %3763 = vmatprep.subr.bf16.mxu0 0
      %3764 = vmatpush1.bf16.msra.mxu0 0
      %3765 = vmatprep.subr.bf16.mxu0 0
      %3766 = vmatpush1.bf16.msra.mxu0 0
      %3767 = vmatprep.subr.bf16.mxu0 0
      %3768 = vmatpush1.bf16.msra.mxu0 0
      %3769 = vmatprep.subr.bf16.mxu0 0
      %3770 = vmatpush1.bf16.msra.mxu0 0
      %3771 = vmatprep.subr.bf16.mxu0 0
      %3772 = vmatpush1.bf16.msra.mxu0 0
      %3773 = vmatprep.subr.bf16.mxu0 0
      %3774 = vmatpush1.bf16.msra.mxu0 0
      %3775 = vmatprep.subr.bf16.mxu0 0
      %3776 = vmatpush1.bf16.msra.mxu0 0
      %3777 = vmatprep.subr.bf16.mxu0 0
      %3778 = vmatpush1.bf16.msra.mxu0 0
      %3779 = vmatprep.subr.bf16.mxu0 0
      %3780 = vmatpush1.bf16.msra.mxu0 0
      %3781 = vmatprep.subr.bf16.mxu0 0
      %3782 = vmatpush1.bf16.msra.mxu0 0
      %3783 = vmatprep.subr.bf16.mxu0 0
      %3784 = vmatpush1.bf16.msra.mxu0 0
      %3785 = vmatprep.subr.bf16.mxu0 0
      %3786 = vmatpush1.bf16.msra.mxu0 0
      %3787 = vmatprep.subr.bf16.mxu0 0
      %3788 = vmatpush1.bf16.msra.mxu0 0
      %3789 = vmatprep.subr.bf16.mxu0 0
      %3790 = vmatpush1.bf16.msra.mxu0 0
      %3791 = vmatprep.subr.bf16.mxu0 0
      %3792 = vmatpush1.bf16.msra.mxu0 0
      %3793 = vmatprep.mubr.bf16.mxu0 0
      %3794 = vmatmul.mubr.bf16.gmra.mrb[0].mxu0 %v3756
      %v3795 = vpop.f32.mrb[0].mxu0
      %v3796 = vadd.f32 0.0, %v3795
      %v3797 = vpop.f32.mrb[0].mxu0
      %v3798 = vpop.f32.mrb[0].mxu0
      %v3799 = vadd.f32 0.0, %v3798
      %v3800 = vpop.f32.mrb[0].mxu0
      %3801 = vdwg.mxu0
      %3802 = vxpose.xlu0.c.b16.start [1/8] %v2838, 128
      %3803 = vxpose.xlu0.c.b16.cont [2/8] 0, 128
      %3804 = vxpose.xlu0.c.b16.cont [3/8] 0, 128
      %3805 = vxpose.xlu0.c.b16.cont [4/8] 0, 128
      %3806 = vxpose.xlu0.c.b16.cont [5/8] 0, 128
      %3807 = vxpose.xlu0.c.b16.cont [6/8] 0, 128
      %3808 = vxpose.xlu0.c.b16.cont [7/8] 0, 128
      %3809 = vxpose.xlu0.c.b16.end [8/8] 0, 128
      %v3810 = vpop.trf.xlu0
      %v3811 = vpop.trf.xlu0
      %v3812 = vpop.trf.xlu0
      %v3813 = vpop.trf.xlu0
      %v3814 = vpop.trf.xlu0
      %v3815 = vpop.trf.xlu0
      %v3816 = vpop.trf.xlu0
      %v3817 = vpop.trf.xlu0
      %v3819 = vsel %vm3501, %v3810, 0
      %v3822 = vsel %vm3505, %v3478, 0
      %3824 = vmatprep.subr.bf16.mxu0 0
      %3825 = vmatpush1.bf16.msra.mxu0 %v3822
      %3826 = vmatprep.subr.bf16.mxu0 0
      %3827 = vmatpush1.bf16.msra.mxu0 0
      %3828 = vmatprep.subr.bf16.mxu0 0
      %3829 = vmatpush1.bf16.msra.mxu0 0
      %3830 = vmatprep.subr.bf16.mxu0 0
      %3831 = vmatpush1.bf16.msra.mxu0 0
      %3832 = vmatprep.subr.bf16.mxu0 0
      %3833 = vmatpush1.bf16.msra.mxu0 0
      %3834 = vmatprep.subr.bf16.mxu0 0
      %3835 = vmatpush1.bf16.msra.mxu0 0
      %3836 = vmatprep.subr.bf16.mxu0 0
      %3837 = vmatpush1.bf16.msra.mxu0 0
      %3838 = vmatprep.subr.bf16.mxu0 0
      %3839 = vmatpush1.bf16.msra.mxu0 0
      %3840 = vmatprep.subr.bf16.mxu0 0
      %3841 = vmatpush1.bf16.msra.mxu0 0
      %3842 = vmatprep.subr.bf16.mxu0 0
      %3843 = vmatpush1.bf16.msra.mxu0 0
      %3844 = vmatprep.subr.bf16.mxu0 0
      %3845 = vmatpush1.bf16.msra.mxu0 0
      %3846 = vmatprep.subr.bf16.mxu0 0
      %3847 = vmatpush1.bf16.msra.mxu0 0
      %3848 = vmatprep.subr.bf16.mxu0 0
      %3849 = vmatpush1.bf16.msra.mxu0 0
      %3850 = vmatprep.subr.bf16.mxu0 0
      %3851 = vmatpush1.bf16.msra.mxu0 0
      %3852 = vmatprep.subr.bf16.mxu0 0
      %3853 = vmatpush1.bf16.msra.mxu0 0
      %3854 = vmatprep.subr.bf16.mxu0 0
      %3855 = vmatpush1.bf16.msra.mxu0 0
      %3856 = vmatprep.mubr.bf16.mxu0 0
      %3857 = vmatmul.mubr.bf16.gmra.mrb[0].mxu0 %v3819
      %v3858 = vpop.f32.mrb[0].mxu0
      %v3859 = vadd.f32 0.0, %v3858
      %v3860 = vpop.f32.mrb[0].mxu0
      %v3861 = vpop.f32.mrb[0].mxu0
      %v3862 = vadd.f32 0.0, %v3861
      %v3863 = vpop.f32.mrb[0].mxu0
      %3864 = vdwg.mxu0
      %3865 = vxpose.xlu0.c.b16.start [1/8] %v2839, 128
      %3866 = vxpose.xlu0.c.b16.cont [2/8] 0, 128
      %3867 = vxpose.xlu0.c.b16.cont [3/8] 0, 128
      %3868 = vxpose.xlu0.c.b16.cont [4/8] 0, 128
      %3869 = vxpose.xlu0.c.b16.cont [5/8] 0, 128
      %3870 = vxpose.xlu0.c.b16.cont [6/8] 0, 128
      %3871 = vxpose.xlu0.c.b16.cont [7/8] 0, 128
      %3872 = vxpose.xlu0.c.b16.end [8/8] 0, 128
      %v3873 = vpop.trf.xlu0
      %v3874 = vpop.trf.xlu0
      %v3875 = vpop.trf.xlu0
      %v3876 = vpop.trf.xlu0
      %v3877 = vpop.trf.xlu0
      %v3878 = vpop.trf.xlu0
      %v3879 = vpop.trf.xlu0
      %v3880 = vpop.trf.xlu0
      %v3882 = vsel %vm3501, %v3873, 0
      %v3885 = vsel %vm3505, %v3481, 0
      %3887 = vmatprep.subr.bf16.mxu0 0
      %3888 = vmatpush1.bf16.msra.mxu0 %v3885
      %3889 = vmatprep.subr.bf16.mxu0 0
      %3890 = vmatpush1.bf16.msra.mxu0 0
      %3891 = vmatprep.subr.bf16.mxu0 0
      %3892 = vmatpush1.bf16.msra.mxu0 0
      %3893 = vmatprep.subr.bf16.mxu0 0
      %3894 = vmatpush1.bf16.msra.mxu0 0
      %3895 = vmatprep.subr.bf16.mxu0 0
      %3896 = vmatpush1.bf16.msra.mxu0 0
      %3897 = vmatprep.subr.bf16.mxu0 0
      %3898 = vmatpush1.bf16.msra.mxu0 0
      %3899 = vmatprep.subr.bf16.mxu0 0
      %3900 = vmatpush1.bf16.msra.mxu0 0
      %3901 = vmatprep.subr.bf16.mxu0 0
      %3902 = vmatpush1.bf16.msra.mxu0 0
      %3903 = vmatprep.subr.bf16.mxu0 0
      %3904 = vmatpush1.bf16.msra.mxu0 0
      %3905 = vmatprep.subr.bf16.mxu0 0
      %3906 = vmatpush1.bf16.msra.mxu0 0
      %3907 = vmatprep.subr.bf16.mxu0 0
      %3908 = vmatpush1.bf16.msra.mxu0 0
      %3909 = vmatprep.subr.bf16.mxu0 0
      %3910 = vmatpush1.bf16.msra.mxu0 0
      %3911 = vmatprep.subr.bf16.mxu0 0
      %3912 = vmatpush1.bf16.msra.mxu0 0
      %3913 = vmatprep.subr.bf16.mxu0 0
      %3914 = vmatpush1.bf16.msra.mxu0 0
      %3915 = vmatprep.subr.bf16.mxu0 0
      %3916 = vmatpush1.bf16.msra.mxu0 0
      %3917 = vmatprep.subr.bf16.mxu0 0
      %3918 = vmatpush1.bf16.msra.mxu0 0
      %3919 = vmatprep.mubr.bf16.mxu0 0
      %3920 = vmatmul.mubr.bf16.gmra.mrb[0].mxu0 %v3882
      %v3921 = vpop.f32.mrb[0].mxu0
      %v3922 = vadd.f32 0.0, %v3921
      %v3923 = vpop.f32.mrb[0].mxu0
      %v3924 = vpop.f32.mrb[0].mxu0
      %v3925 = vadd.f32 0.0, %v3924
      %v3926 = vpop.f32.mrb[0].mxu0
      %3927 = vdwg.mxu0
      %3928 = vxpose.xlu0.c.b16.start [1/8] %v2840, 128
      %3929 = vxpose.xlu0.c.b16.cont [2/8] 0, 128
      %3930 = vxpose.xlu0.c.b16.cont [3/8] 0, 128
      %3931 = vxpose.xlu0.c.b16.cont [4/8] 0, 128
      %3932 = vxpose.xlu0.c.b16.cont [5/8] 0, 128
      %3933 = vxpose.xlu0.c.b16.cont [6/8] 0, 128
      %3934 = vxpose.xlu0.c.b16.cont [7/8] 0, 128
      %3935 = vxpose.xlu0.c.b16.end [8/8] 0, 128
      %v3936 = vpop.trf.xlu0
      %v3937 = vpop.trf.xlu0
      %v3938 = vpop.trf.xlu0
      %v3939 = vpop.trf.xlu0
      %v3940 = vpop.trf.xlu0
      %v3941 = vpop.trf.xlu0
      %v3942 = vpop.trf.xlu0
      %v3943 = vpop.trf.xlu0
      %v3945 = vsel %vm3501, %v3936, 0
      %v3948 = vsel %vm3505, %v3484, 0
      %3950 = vmatprep.subr.bf16.mxu0 0
      %3951 = vmatpush1.bf16.msra.mxu0 %v3948
      %3952 = vmatprep.subr.bf16.mxu0 0
      %3953 = vmatpush1.bf16.msra.mxu0 0
      %3954 = vmatprep.subr.bf16.mxu0 0
      %3955 = vmatpush1.bf16.msra.mxu0 0
      %3956 = vmatprep.subr.bf16.mxu0 0
      %3957 = vmatpush1.bf16.msra.mxu0 0
      %3958 = vmatprep.subr.bf16.mxu0 0
      %3959 = vmatpush1.bf16.msra.mxu0 0
      %3960 = vmatprep.subr.bf16.mxu0 0
      %3961 = vmatpush1.bf16.msra.mxu0 0
      %3962 = vmatprep.subr.bf16.mxu0 0
      %3963 = vmatpush1.bf16.msra.mxu0 0
      %3964 = vmatprep.subr.bf16.mxu0 0
      %3965 = vmatpush1.bf16.msra.mxu0 0
      %3966 = vmatprep.subr.bf16.mxu0 0
      %3967 = vmatpush1.bf16.msra.mxu0 0
      %3968 = vmatprep.subr.bf16.mxu0 0
      %3969 = vmatpush1.bf16.msra.mxu0 0
      %3970 = vmatprep.subr.bf16.mxu0 0
      %3971 = vmatpush1.bf16.msra.mxu0 0
      %3972 = vmatprep.subr.bf16.mxu0 0
      %3973 = vmatpush1.bf16.msra.mxu0 0
      %3974 = vmatprep.subr.bf16.mxu0 0
      %3975 = vmatpush1.bf16.msra.mxu0 0
      %3976 = vmatprep.subr.bf16.mxu0 0
      %3977 = vmatpush1.bf16.msra.mxu0 0
      %3978 = vmatprep.subr.bf16.mxu0 0
      %3979 = vmatpush1.bf16.msra.mxu0 0
      %3980 = vmatprep.subr.bf16.mxu0 0
      %3981 = vmatpush1.bf16.msra.mxu0 0
      %3982 = vmatprep.mubr.bf16.mxu0 0
      %3983 = vmatmul.mubr.bf16.gmra.mrb[0].mxu0 %v3945
      %v3984 = vpop.f32.mrb[0].mxu0
      %v3985 = vadd.f32 0.0, %v3984
      %v3986 = vpop.f32.mrb[0].mxu0
      %v3987 = vpop.f32.mrb[0].mxu0
      %v3988 = vadd.f32 0.0, %v3987
      %v3989 = vpop.f32.mrb[0].mxu0
      %3990 = vdwg.mxu0
      %3991 = vxpose.xlu0.b32.start [1/16] %v3544, 128
      %3992 = vxpose.xlu0.b32.cont [2/16] %v3547, 128
      %3993 = vxpose.xlu0.b32.cont [3/16] 0.0, 128
      %3994 = vxpose.xlu0.b32.cont [4/16] 0.0, 128
      %3995 = vxpose.xlu0.b32.cont [5/16] 0.0, 128
      %3996 = vxpose.xlu0.b32.cont [6/16] 0.0, 128
      %3997 = vxpose.xlu0.b32.cont [7/16] 0.0, 128
      %3998 = vxpose.xlu0.b32.cont [8/16] 0.0, 128
      %3999 = vxpose.xlu0.b32.cont [9/16] 0.0, 128
      %4000 = vxpose.xlu0.b32.cont [10/16] 0.0, 128
      %4001 = vxpose.xlu0.b32.cont [11/16] 0.0, 128
      %4002 = vxpose.xlu0.b32.cont [12/16] 0.0, 128
      %4003 = vxpose.xlu0.b32.cont [13/16] 0.0, 128
      %4004 = vxpose.xlu0.b32.cont [14/16] 0.0, 128
      %4005 = vxpose.xlu0.b32.cont [15/16] 0.0, 128
      %4006 = vxpose.xlu0.b32.end [16/16] 0.0, 128
      %v4007 = vpop.trf.xlu0
      %v4008 = vpop.trf.xlu0
      %v4009 = vpop.trf.xlu0
      %v4010 = vpop.trf.xlu0
      %v4011 = vpop.trf.xlu0
      %v4012 = vpop.trf.xlu0
      %v4013 = vpop.trf.xlu0
      %v4014 = vpop.trf.xlu0
      %v4015 = vpop.trf.xlu0
      %v4016 = vpop.trf.xlu0
      %v4017 = vpop.trf.xlu0
      %v4018 = vpop.trf.xlu0
      %v4019 = vpop.trf.xlu0
      %v4020 = vpop.trf.xlu0
      %v4021 = vpop.trf.xlu0
      %v4022 = vpop.trf.xlu0
      %4023 = vxpose.xlu0.b32.start [1/16] %v3607, 128
      %4024 = vxpose.xlu0.b32.cont [2/16] %v3610, 128
      %4025 = vxpose.xlu0.b32.cont [3/16] 0.0, 128
      %4026 = vxpose.xlu0.b32.cont [4/16] 0.0, 128
      %4027 = vxpose.xlu0.b32.cont [5/16] 0.0, 128
      %4028 = vxpose.xlu0.b32.cont [6/16] 0.0, 128
      %4029 = vxpose.xlu0.b32.cont [7/16] 0.0, 128
      %4030 = vxpose.xlu0.b32.cont [8/16] 0.0, 128
      %4031 = vxpose.xlu0.b32.cont [9/16] 0.0, 128
      %4032 = vxpose.xlu0.b32.cont [10/16] 0.0, 128
      %4033 = vxpose.xlu0.b32.cont [11/16] 0.0, 128
      %4034 = vxpose.xlu0.b32.cont [12/16] 0.0, 128
      %4035 = vxpose.xlu0.b32.cont [13/16] 0.0, 128
      %4036 = vxpose.xlu0.b32.cont [14/16] 0.0, 128
      %4037 = vxpose.xlu0.b32.cont [15/16] 0.0, 128
      %4038 = vxpose.xlu0.b32.end [16/16] 0.0, 128
      %v4039 = vpop.trf.xlu0
      %v4040 = vpop.trf.xlu0
      %v4041 = vpop.trf.xlu0
      %v4042 = vpop.trf.xlu0
      %v4043 = vpop.trf.xlu0
      %v4044 = vpop.trf.xlu0
      %v4045 = vpop.trf.xlu0
      %v4046 = vpop.trf.xlu0
      %v4047 = vpop.trf.xlu0
      %v4048 = vpop.trf.xlu0
      %v4049 = vpop.trf.xlu0
      %v4050 = vpop.trf.xlu0
      %v4051 = vpop.trf.xlu0
      %v4052 = vpop.trf.xlu0
      %v4053 = vpop.trf.xlu0
      %v4054 = vpop.trf.xlu0
      %4055 = vxpose.xlu0.b32.start [1/16] %v3670, 128
      %4056 = vxpose.xlu0.b32.cont [2/16] %v3673, 128
      %4057 = vxpose.xlu0.b32.cont [3/16] 0.0, 128
      %4058 = vxpose.xlu0.b32.cont [4/16] 0.0, 128
      %4059 = vxpose.xlu0.b32.cont [5/16] 0.0, 128
      %4060 = vxpose.xlu0.b32.cont [6/16] 0.0, 128
      %4061 = vxpose.xlu0.b32.cont [7/16] 0.0, 128
      %4062 = vxpose.xlu0.b32.cont [8/16] 0.0, 128
      %4063 = vxpose.xlu0.b32.cont [9/16] 0.0, 128
      %4064 = vxpose.xlu0.b32.cont [10/16] 0.0, 128
      %4065 = vxpose.xlu0.b32.cont [11/16] 0.0, 128
      %4066 = vxpose.xlu0.b32.cont [12/16] 0.0, 128
      %4067 = vxpose.xlu0.b32.cont [13/16] 0.0, 128
      %4068 = vxpose.xlu0.b32.cont [14/16] 0.0, 128
      %4069 = vxpose.xlu0.b32.cont [15/16] 0.0, 128
      %4070 = vxpose.xlu0.b32.end [16/16] 0.0, 128
      %v4071 = vpop.trf.xlu0
      %v4072 = vpop.trf.xlu0
      %v4073 = vpop.trf.xlu0
      %v4074 = vpop.trf.xlu0
      %v4075 = vpop.trf.xlu0
      %v4076 = vpop.trf.xlu0
      %v4077 = vpop.trf.xlu0
      %v4078 = vpop.trf.xlu0
      %v4079 = vpop.trf.xlu0
      %v4080 = vpop.trf.xlu0
      %v4081 = vpop.trf.xlu0
      %v4082 = vpop.trf.xlu0
      %v4083 = vpop.trf.xlu0
      %v4084 = vpop.trf.xlu0
      %v4085 = vpop.trf.xlu0
      %v4086 = vpop.trf.xlu0
      %4087 = vxpose.xlu0.b32.start [1/16] %v3733, 128
      %4088 = vxpose.xlu0.b32.cont [2/16] %v3736, 128
      %4089 = vxpose.xlu0.b32.cont [3/16] 0.0, 128
      %4090 = vxpose.xlu0.b32.cont [4/16] 0.0, 128
      %4091 = vxpose.xlu0.b32.cont [5/16] 0.0, 128
      %4092 = vxpose.xlu0.b32.cont [6/16] 0.0, 128
      %4093 = vxpose.xlu0.b32.cont [7/16] 0.0, 128
      %4094 = vxpose.xlu0.b32.cont [8/16] 0.0, 128
      %4095 = vxpose.xlu0.b32.cont [9/16] 0.0, 128
      %4096 = vxpose.xlu0.b32.cont [10/16] 0.0, 128
      %4097 = vxpose.xlu0.b32.cont [11/16] 0.0, 128
      %4098 = vxpose.xlu0.b32.cont [12/16] 0.0, 128
      %4099 = vxpose.xlu0.b32.cont [13/16] 0.0, 128
      %4100 = vxpose.xlu0.b32.cont [14/16] 0.0, 128
      %4101 = vxpose.xlu0.b32.cont [15/16] 0.0, 128
      %4102 = vxpose.xlu0.b32.end [16/16] 0.0, 128
      %v4103 = vpop.trf.xlu0
      %v4104 = vpop.trf.xlu0
      %v4105 = vpop.trf.xlu0
      %v4106 = vpop.trf.xlu0
      %v4107 = vpop.trf.xlu0
      %v4108 = vpop.trf.xlu0
      %v4109 = vpop.trf.xlu0
      %v4110 = vpop.trf.xlu0
      %v4111 = vpop.trf.xlu0
      %v4112 = vpop.trf.xlu0
      %v4113 = vpop.trf.xlu0
      %v4114 = vpop.trf.xlu0
      %v4115 = vpop.trf.xlu0
      %v4116 = vpop.trf.xlu0
      %v4117 = vpop.trf.xlu0
      %v4118 = vpop.trf.xlu0
      %4119 = vxpose.xlu0.b32.start [1/16] %v3796, 128
      %4120 = vxpose.xlu0.b32.cont [2/16] %v3799, 128
      %4121 = vxpose.xlu0.b32.cont [3/16] 0.0, 128
      %4122 = vxpose.xlu0.b32.cont [4/16] 0.0, 128
      %4123 = vxpose.xlu0.b32.cont [5/16] 0.0, 128
      %4124 = vxpose.xlu0.b32.cont [6/16] 0.0, 128
      %4125 = vxpose.xlu0.b32.cont [7/16] 0.0, 128
      %4126 = vxpose.xlu0.b32.cont [8/16] 0.0, 128
      %4127 = vxpose.xlu0.b32.cont [9/16] 0.0, 128
      %4128 = vxpose.xlu0.b32.cont [10/16] 0.0, 128
      %4129 = vxpose.xlu0.b32.cont [11/16] 0.0, 128
      %4130 = vxpose.xlu0.b32.cont [12/16] 0.0, 128
      %4131 = vxpose.xlu0.b32.cont [13/16] 0.0, 128
      %4132 = vxpose.xlu0.b32.cont [14/16] 0.0, 128
      %4133 = vxpose.xlu0.b32.cont [15/16] 0.0, 128
      %4134 = vxpose.xlu0.b32.end [16/16] 0.0, 128
      %v4135 = vpop.trf.xlu0
      %v4136 = vpop.trf.xlu0
      %v4137 = vpop.trf.xlu0
      %v4138 = vpop.trf.xlu0
      %v4139 = vpop.trf.xlu0
      %v4140 = vpop.trf.xlu0
      %v4141 = vpop.trf.xlu0
      %v4142 = vpop.trf.xlu0
      %v4143 = vpop.trf.xlu0
      %v4144 = vpop.trf.xlu0
      %v4145 = vpop.trf.xlu0
      %v4146 = vpop.trf.xlu0
      %v4147 = vpop.trf.xlu0
      %v4148 = vpop.trf.xlu0
      %v4149 = vpop.trf.xlu0
      %v4150 = vpop.trf.xlu0
      %4151 = vxpose.xlu0.b32.start [1/16] %v3859, 128
      %4152 = vxpose.xlu0.b32.cont [2/16] %v3862, 128
      %4153 = vxpose.xlu0.b32.cont [3/16] 0.0, 128
      %4154 = vxpose.xlu0.b32.cont [4/16] 0.0, 128
      %4155 = vxpose.xlu0.b32.cont [5/16] 0.0, 128
      %4156 = vxpose.xlu0.b32.cont [6/16] 0.0, 128
      %4157 = vxpose.xlu0.b32.cont [7/16] 0.0, 128
      %4158 = vxpose.xlu0.b32.cont [8/16] 0.0, 128
      %4159 = vxpose.xlu0.b32.cont [9/16] 0.0, 128
      %4160 = vxpose.xlu0.b32.cont [10/16] 0.0, 128
      %4161 = vxpose.xlu0.b32.cont [11/16] 0.0, 128
      %4162 = vxpose.xlu0.b32.cont [12/16] 0.0, 128
      %4163 = vxpose.xlu0.b32.cont [13/16] 0.0, 128
      %4164 = vxpose.xlu0.b32.cont [14/16] 0.0, 128
      %4165 = vxpose.xlu0.b32.cont [15/16] 0.0, 128
      %4166 = vxpose.xlu0.b32.end [16/16] 0.0, 128
      %v4167 = vpop.trf.xlu0
      %v4168 = vpop.trf.xlu0
      %v4169 = vpop.trf.xlu0
      %v4170 = vpop.trf.xlu0
      %v4171 = vpop.trf.xlu0
      %v4172 = vpop.trf.xlu0
      %v4173 = vpop.trf.xlu0
      %v4174 = vpop.trf.xlu0
      %v4175 = vpop.trf.xlu0
      %v4176 = vpop.trf.xlu0
      %v4177 = vpop.trf.xlu0
      %v4178 = vpop.trf.xlu0
      %v4179 = vpop.trf.xlu0
      %v4180 = vpop.trf.xlu0
      %v4181 = vpop.trf.xlu0
      %v4182 = vpop.trf.xlu0
      %4183 = vxpose.xlu0.b32.start [1/16] %v3922, 128
      %4184 = vxpose.xlu0.b32.cont [2/16] %v3925, 128
      %4185 = vxpose.xlu0.b32.cont [3/16] 0.0, 128
      %4186 = vxpose.xlu0.b32.cont [4/16] 0.0, 128
      %4187 = vxpose.xlu0.b32.cont [5/16] 0.0, 128
      %4188 = vxpose.xlu0.b32.cont [6/16] 0.0, 128
      %4189 = vxpose.xlu0.b32.cont [7/16] 0.0, 128
      %4190 = vxpose.xlu0.b32.cont [8/16] 0.0, 128
      %4191 = vxpose.xlu0.b32.cont [9/16] 0.0, 128
      %4192 = vxpose.xlu0.b32.cont [10/16] 0.0, 128
      %4193 = vxpose.xlu0.b32.cont [11/16] 0.0, 128
      %4194 = vxpose.xlu0.b32.cont [12/16] 0.0, 128
      %4195 = vxpose.xlu0.b32.cont [13/16] 0.0, 128
      %4196 = vxpose.xlu0.b32.cont [14/16] 0.0, 128
      %4197 = vxpose.xlu0.b32.cont [15/16] 0.0, 128
      %4198 = vxpose.xlu0.b32.end [16/16] 0.0, 128
      %v4199 = vpop.trf.xlu0
      %v4200 = vpop.trf.xlu0
      %v4201 = vpop.trf.xlu0
      %v4202 = vpop.trf.xlu0
      %v4203 = vpop.trf.xlu0
      %v4204 = vpop.trf.xlu0
      %v4205 = vpop.trf.xlu0
      %v4206 = vpop.trf.xlu0
      %v4207 = vpop.trf.xlu0
      %v4208 = vpop.trf.xlu0
      %v4209 = vpop.trf.xlu0
      %v4210 = vpop.trf.xlu0
      %v4211 = vpop.trf.xlu0
      %v4212 = vpop.trf.xlu0
      %v4213 = vpop.trf.xlu0
      %v4214 = vpop.trf.xlu0
      %4215 = vxpose.xlu0.b32.start [1/16] %v3985, 128
      %4216 = vxpose.xlu0.b32.cont [2/16] %v3988, 128
      %4217 = vxpose.xlu0.b32.cont [3/16] 0.0, 128
      %4218 = vxpose.xlu0.b32.cont [4/16] 0.0, 128
      %4219 = vxpose.xlu0.b32.cont [5/16] 0.0, 128
      %4220 = vxpose.xlu0.b32.cont [6/16] 0.0, 128
      %4221 = vxpose.xlu0.b32.cont [7/16] 0.0, 128
      %4222 = vxpose.xlu0.b32.cont [8/16] 0.0, 128
      %4223 = vxpose.xlu0.b32.cont [9/16] 0.0, 128
      %4224 = vxpose.xlu0.b32.cont [10/16] 0.0, 128
      %4225 = vxpose.xlu0.b32.cont [11/16] 0.0, 128
      %4226 = vxpose.xlu0.b32.cont [12/16] 0.0, 128
      %4227 = vxpose.xlu0.b32.cont [13/16] 0.0, 128
      %4228 = vxpose.xlu0.b32.cont [14/16] 0.0, 128
      %4229 = vxpose.xlu0.b32.cont [15/16] 0.0, 128
      %4230 = vxpose.xlu0.b32.end [16/16] 0.0, 128
      %v4231 = vpop.trf.xlu0
      %v4232 = vpop.trf.xlu0
      %v4233 = vpop.trf.xlu0
      %v4234 = vpop.trf.xlu0
      %v4235 = vpop.trf.xlu0
      %v4236 = vpop.trf.xlu0
      %v4237 = vpop.trf.xlu0
      %v4238 = vpop.trf.xlu0
      %v4239 = vpop.trf.xlu0
      %v4240 = vpop.trf.xlu0
      %v4241 = vpop.trf.xlu0
      %v4242 = vpop.trf.xlu0
      %v4243 = vpop.trf.xlu0
      %v4244 = vpop.trf.xlu0
      %v4245 = vpop.trf.xlu0
      %v4246 = vpop.trf.xlu0
      %v4247 = vcombine.low %v4007, %v4071
      %v4248 = vcombine.high %v4007, %v4071
      %v4250 = vunpack.c.l.s4 1983009808
      %v4251 = vunpack.c.0.s8 %v4250
      %v4252 = vlaneseq
      %v4253 = vshrl.u32 %v4252, 7
      %v4254 = vsub.s32 %v4251, %v4253
      %v4255 = vrot.slane %v4247, %v4254
      %v4257 = vunpack.c.l.s4 1983009808
      %v4258 = vunpack.c.0.s8 %v4257
      %v4259 = vlaneseq
      %v4260 = vshrl.u32 %v4259, 7
      %v4261 = vsub.s32 %v4258, %v4260
      %v4262 = vrot.slane %v4248, %v4261
      %v4263 = vcombine.low %v4039, %v4103
      %v4264 = vcombine.high %v4039, %v4103
      %v4266 = vunpack.c.l.s4 1983009808
      %v4267 = vunpack.c.0.s8 %v4266
      %v4268 = vlaneseq
      %v4269 = vshrl.u32 %v4268, 7
      %v4270 = vsub.s32 %v4267, %v4269
      %v4271 = vrot.slane %v4263, %v4270
      %v4273 = vunpack.c.l.s4 1983009808
      %v4274 = vunpack.c.0.s8 %v4273
      %v4275 = vlaneseq
      %v4276 = vshrl.u32 %v4275, 7
      %v4277 = vsub.s32 %v4274, %v4276
      %v4278 = vrot.slane %v4264, %v4277
      %v4279 = vcombine.low %v4135, %v4199
      %v4280 = vcombine.high %v4135, %v4199
      %v4282 = vunpack.c.l.s4 1983009808
      %v4283 = vunpack.c.0.s8 %v4282
      %v4284 = vlaneseq
      %v4285 = vshrl.u32 %v4284, 7
      %v4286 = vsub.s32 %v4283, %v4285
      %v4287 = vrot.slane %v4279, %v4286
      %v4289 = vunpack.c.l.s4 1983009808
      %v4290 = vunpack.c.0.s8 %v4289
      %v4291 = vlaneseq
      %v4292 = vshrl.u32 %v4291, 7
      %v4293 = vsub.s32 %v4290, %v4292
      %v4294 = vrot.slane %v4280, %v4293
      %v4295 = vcombine.low %v4167, %v4231
      %v4296 = vcombine.high %v4167, %v4231
      %v4298 = vunpack.c.l.s4 1983009808
      %v4299 = vunpack.c.0.s8 %v4298
      %v4300 = vlaneseq
      %v4301 = vshrl.u32 %v4300, 7
      %v4302 = vsub.s32 %v4299, %v4301
      %v4303 = vrot.slane %v4295, %v4302
      %v4305 = vunpack.c.l.s4 1983009808
      %v4306 = vunpack.c.0.s8 %v4305
      %v4307 = vlaneseq
      %v4308 = vshrl.u32 %v4307, 7
      %v4309 = vsub.s32 %v4306, %v4308
      %v4310 = vrot.slane %v4296, %v4309
      %v4311 = vcombine.low %v4255, %v4271
      %v4312 = vcombine.high %v4255, %v4271
      %v4314 = vunpack.c.l.s4 1934713408
      %v4315 = vunpack.c.0.s8 %v4314
      %v4316 = vlaneseq
      %v4317 = vshrl.u32 %v4316, 7
      %v4318 = vsub.s32 %v4315, %v4317
      %v4319 = vrot.slane %v4311, %v4318
      %v4321 = vunpack.c.l.s4 1934713408
      %v4322 = vunpack.c.0.s8 %v4321
      %v4323 = vlaneseq
      %v4324 = vshrl.u32 %v4323, 7
      %v4325 = vsub.s32 %v4322, %v4324
      %v4326 = vrot.slane %v4312, %v4325
      %v4327 = vcombine.low %v4262, %v4278
      %v4328 = vcombine.high %v4262, %v4278
      %v4330 = vunpack.c.l.s4 1934713408
      %v4331 = vunpack.c.0.s8 %v4330
      %v4332 = vlaneseq
      %v4333 = vshrl.u32 %v4332, 7
      %v4334 = vsub.s32 %v4331, %v4333
      %v4335 = vrot.slane %v4327, %v4334
      %v4337 = vunpack.c.l.s4 1934713408
      %v4338 = vunpack.c.0.s8 %v4337
      %v4339 = vlaneseq
      %v4340 = vshrl.u32 %v4339, 7
      %v4341 = vsub.s32 %v4338, %v4340
      %v4342 = vrot.slane %v4328, %v4341
      %v4343 = vcombine.low %v4287, %v4303
      %v4344 = vcombine.high %v4287, %v4303
      %v4346 = vunpack.c.l.s4 1934713408
      %v4347 = vunpack.c.0.s8 %v4346
      %v4348 = vlaneseq
      %v4349 = vshrl.u32 %v4348, 7
      %v4350 = vsub.s32 %v4347, %v4349
      %v4351 = vrot.slane %v4343, %v4350
      %v4353 = vunpack.c.l.s4 1934713408
      %v4354 = vunpack.c.0.s8 %v4353
      %v4355 = vlaneseq
      %v4356 = vshrl.u32 %v4355, 7
      %v4357 = vsub.s32 %v4354, %v4356
      %v4358 = vrot.slane %v4344, %v4357
      %v4359 = vcombine.low %v4294, %v4310
      %v4360 = vcombine.high %v4294, %v4310
      %v4362 = vunpack.c.l.s4 1934713408
      %v4363 = vunpack.c.0.s8 %v4362
      %v4364 = vlaneseq
      %v4365 = vshrl.u32 %v4364, 7
      %v4366 = vsub.s32 %v4363, %v4365
      %v4367 = vrot.slane %v4359, %v4366
      %v4369 = vunpack.c.l.s4 1934713408
      %v4370 = vunpack.c.0.s8 %v4369
      %v4371 = vlaneseq
      %v4372 = vshrl.u32 %v4371, 7
      %v4373 = vsub.s32 %v4370, %v4372
      %v4374 = vrot.slane %v4360, %v4373
      %v4375 = vcombine.low %v4319, %v4351
      %v4376 = vcombine.high %v4319, %v4351
      %v4377 = vcombine.low %v4326, %v4358
      %v4378 = vcombine.high %v4326, %v4358
      %v4379 = vcombine.low %v4335, %v4367
      %v4380 = vcombine.high %v4335, %v4367
      %v4381 = vcombine.low %v4342, %v4374
      %v4382 = vcombine.high %v4342, %v4374
      %v4383 = vcombine.low %v4008, %v4072
      %v4384 = vcombine.high %v4008, %v4072
      %v4386 = vunpack.c.l.s4 1983009808
      %v4387 = vunpack.c.0.s8 %v4386
      %v4388 = vlaneseq
      %v4389 = vshrl.u32 %v4388, 7
      %v4390 = vsub.s32 %v4387, %v4389
      %v4391 = vrot.slane %v4383, %v4390
      %v4393 = vunpack.c.l.s4 1983009808
      %v4394 = vunpack.c.0.s8 %v4393
      %v4395 = vlaneseq
      %v4396 = vshrl.u32 %v4395, 7
      %v4397 = vsub.s32 %v4394, %v4396
      %v4398 = vrot.slane %v4384, %v4397
      %v4399 = vcombine.low %v4040, %v4104
      %v4400 = vcombine.high %v4040, %v4104
      %v4402 = vunpack.c.l.s4 1983009808
      %v4403 = vunpack.c.0.s8 %v4402
      %v4404 = vlaneseq
      %v4405 = vshrl.u32 %v4404, 7
      %v4406 = vsub.s32 %v4403, %v4405
      %v4407 = vrot.slane %v4399, %v4406
      %v4409 = vunpack.c.l.s4 1983009808
      %v4410 = vunpack.c.0.s8 %v4409
      %v4411 = vlaneseq
      %v4412 = vshrl.u32 %v4411, 7
      %v4413 = vsub.s32 %v4410, %v4412
      %v4414 = vrot.slane %v4400, %v4413
      %v4415 = vcombine.low %v4136, %v4200
      %v4416 = vcombine.high %v4136, %v4200
      %v4418 = vunpack.c.l.s4 1983009808
      %v4419 = vunpack.c.0.s8 %v4418
      %v4420 = vlaneseq
      %v4421 = vshrl.u32 %v4420, 7
      %v4422 = vsub.s32 %v4419, %v4421
      %v4423 = vrot.slane %v4415, %v4422
      %v4425 = vunpack.c.l.s4 1983009808
      %v4426 = vunpack.c.0.s8 %v4425
      %v4427 = vlaneseq
      %v4428 = vshrl.u32 %v4427, 7
      %v4429 = vsub.s32 %v4426, %v4428
      %v4430 = vrot.slane %v4416, %v4429
      %v4431 = vcombine.low %v4168, %v4232
      %v4432 = vcombine.high %v4168, %v4232
      %v4434 = vunpack.c.l.s4 1983009808
      %v4435 = vunpack.c.0.s8 %v4434
      %v4436 = vlaneseq
      %v4437 = vshrl.u32 %v4436, 7
      %v4438 = vsub.s32 %v4435, %v4437
      %v4439 = vrot.slane %v4431, %v4438
      %v4441 = vunpack.c.l.s4 1983009808
      %v4442 = vunpack.c.0.s8 %v4441
      %v4443 = vlaneseq
      %v4444 = vshrl.u32 %v4443, 7
      %v4445 = vsub.s32 %v4442, %v4444
      %v4446 = vrot.slane %v4432, %v4445
      %v4447 = vcombine.low %v4391, %v4407
      %v4448 = vcombine.high %v4391, %v4407
      %v4450 = vunpack.c.l.s4 1934713408
      %v4451 = vunpack.c.0.s8 %v4450
      %v4452 = vlaneseq
      %v4453 = vshrl.u32 %v4452, 7
      %v4454 = vsub.s32 %v4451, %v4453
      %v4455 = vrot.slane %v4447, %v4454
      %v4457 = vunpack.c.l.s4 1934713408
      %v4458 = vunpack.c.0.s8 %v4457
      %v4459 = vlaneseq
      %v4460 = vshrl.u32 %v4459, 7
      %v4461 = vsub.s32 %v4458, %v4460
      %v4462 = vrot.slane %v4448, %v4461
      %v4463 = vcombine.low %v4398, %v4414
      %v4464 = vcombine.high %v4398, %v4414
      %v4466 = vunpack.c.l.s4 1934713408
      %v4467 = vunpack.c.0.s8 %v4466
      %v4468 = vlaneseq
      %v4469 = vshrl.u32 %v4468, 7
      %v4470 = vsub.s32 %v4467, %v4469
      %v4471 = vrot.slane %v4463, %v4470
      %v4473 = vunpack.c.l.s4 1934713408
      %v4474 = vunpack.c.0.s8 %v4473
      %v4475 = vlaneseq
      %v4476 = vshrl.u32 %v4475, 7
      %v4477 = vsub.s32 %v4474, %v4476
      %v4478 = vrot.slane %v4464, %v4477
      %v4479 = vcombine.low %v4423, %v4439
      %v4480 = vcombine.high %v4423, %v4439
      %v4482 = vunpack.c.l.s4 1934713408
      %v4483 = vunpack.c.0.s8 %v4482
      %v4484 = vlaneseq
      %v4485 = vshrl.u32 %v4484, 7
      %v4486 = vsub.s32 %v4483, %v4485
      %v4487 = vrot.slane %v4479, %v4486
      %v4489 = vunpack.c.l.s4 1934713408
      %v4490 = vunpack.c.0.s8 %v4489
      %v4491 = vlaneseq
      %v4492 = vshrl.u32 %v4491, 7
      %v4493 = vsub.s32 %v4490, %v4492
      %v4494 = vrot.slane %v4480, %v4493
      %v4495 = vcombine.low %v4430, %v4446
      %v4496 = vcombine.high %v4430, %v4446
      %v4498 = vunpack.c.l.s4 1934713408
      %v4499 = vunpack.c.0.s8 %v4498
      %v4500 = vlaneseq
      %v4501 = vshrl.u32 %v4500, 7
      %v4502 = vsub.s32 %v4499, %v4501
      %v4503 = vrot.slane %v4495, %v4502
      %v4505 = vunpack.c.l.s4 1934713408
      %v4506 = vunpack.c.0.s8 %v4505
      %v4507 = vlaneseq
      %v4508 = vshrl.u32 %v4507, 7
      %v4509 = vsub.s32 %v4506, %v4508
      %v4510 = vrot.slane %v4496, %v4509
      %v4511 = vcombine.low %v4455, %v4487
      %v4512 = vcombine.high %v4455, %v4487
      %v4513 = vcombine.low %v4462, %v4494
      %v4514 = vcombine.high %v4462, %v4494
      %v4515 = vcombine.low %v4471, %v4503
      %v4516 = vcombine.high %v4471, %v4503
      %v4517 = vcombine.low %v4478, %v4510
      %v4518 = vcombine.high %v4478, %v4510
      %v4519 = vld [vmem:[%s9] sm:$0xff]
      %v4520 = vadd.f32 %v4375, %v4519
      %v4521 = vadd.f32 %v4376, %v4519
      %v4522 = vadd.f32 %v4377, %v4519
      %v4523 = vadd.f32 %v4378, %v4519
      %v4524 = vadd.f32 %v4379, %v4519
      %v4525 = vadd.f32 %v4380, %v4519
      %v4526 = vadd.f32 %v4381, %v4519
      %v4527 = vadd.f32 %v4382, %v4519
      %v4528 = vadd.f32 %v4511, %v4519
      %v4529 = vadd.f32 %v4512, %v4519
      %v4530 = vadd.f32 %v4513, %v4519
      %v4531 = vadd.f32 %v4514, %v4519
      %v4532 = vadd.f32 %v4515, %v4519
      %v4533 = vadd.f32 %v4516, %v4519
      %v4534 = vadd.f32 %v4517, %v4519
      %v4535 = vadd.f32 %v4518, %v4519
      %v4536 = vpack.c.bf16 %v4520, %v4520
      %v4537 = vpack.c.bf16 %v4521, %v4521
      %v4538 = vpack.c.bf16 %v4522, %v4522
      %v4539 = vpack.c.bf16 %v4523, %v4523
      %v4540 = vpack.c.bf16 %v4524, %v4524
      %v4541 = vpack.c.bf16 %v4525, %v4525
      %v4542 = vpack.c.bf16 %v4526, %v4526
      %v4543 = vpack.c.bf16 %v4527, %v4527
      %v4544 = vpack.c.bf16 %v4528, %v4528
      %v4545 = vpack.c.bf16 %v4529, %v4529
      %v4546 = vpack.c.bf16 %v4530, %v4530
      %v4547 = vpack.c.bf16 %v4531, %v4531
      %v4548 = vpack.c.bf16 %v4532, %v4532
      %v4549 = vpack.c.bf16 %v4533, %v4533
      %v4550 = vpack.c.bf16 %v4534, %v4534
      %v4551 = vpack.c.bf16 %v4535, %v4535
      %v4553 = vsel %vm1201, %v4536, 0
      %v4555 = vsel %vm1201, %v2163, 0
      %4557 = vmatprep.subr.bf16.mxu0 0
      %4558 = vmatpush1.bf16.xpose.msra.mxu0 %v4555
      %4559 = vmatprep.subr.bf16.mxu0 0
      %4560 = vmatpush1.bf16.xpose.msra.mxu0 0
      %4561 = vmatprep.subr.bf16.mxu0 0
      %4562 = vmatpush1.bf16.xpose.msra.mxu0 0
      %4563 = vmatprep.subr.bf16.mxu0 0
      %4564 = vmatpush1.bf16.xpose.msra.mxu0 0
      %4565 = vmatprep.subr.bf16.mxu0 0
      %4566 = vmatpush1.bf16.xpose.msra.mxu0 0
      %4567 = vmatprep.subr.bf16.mxu0 0
      %4568 = vmatpush1.bf16.xpose.msra.mxu0 0
      %4569 = vmatprep.subr.bf16.mxu0 0
      %4570 = vmatpush1.bf16.xpose.msra.mxu0 0
      %4571 = vmatprep.subr.bf16.mxu0 0
      %4572 = vmatpush1.bf16.xpose.msra.mxu0 0
      %4573 = vmatprep.subr.bf16.mxu0 0
      %4574 = vmatpush1.bf16.xpose.msra.mxu0 0
      %4575 = vmatprep.subr.bf16.mxu0 0
      %4576 = vmatpush1.bf16.xpose.msra.mxu0 0
      %4577 = vmatprep.subr.bf16.mxu0 0
      %4578 = vmatpush1.bf16.xpose.msra.mxu0 0
      %4579 = vmatprep.subr.bf16.mxu0 0
      %4580 = vmatpush1.bf16.xpose.msra.mxu0 0
      %4581 = vmatprep.subr.bf16.mxu0 0
      %4582 = vmatpush1.bf16.xpose.msra.mxu0 0
      %4583 = vmatprep.subr.bf16.mxu0 0
      %4584 = vmatpush1.bf16.xpose.msra.mxu0 0
      %4585 = vmatprep.subr.bf16.mxu0 0
      %4586 = vmatpush1.bf16.xpose.msra.mxu0 0
      %4587 = vmatprep.subr.bf16.mxu0 0
      %4588 = vmatpush1.bf16.xpose.msra.mxu0 0
      %4589 = vmatprep.mubr.bf16.mxu0 0
      %4590 = vmatmul.mubr.bf16.gmra.mrb[0].mxu0 %v4553
      %v4591 = vpop.f32.mrb[0].mxu0
      %v4592 = vadd.f32 0.0, %v4591
      %v4593 = vpop.f32.mrb[0].mxu0
      %v4594 = vpop.f32.mrb[0].mxu0
      %v4595 = vpop.f32.mrb[0].mxu0
      %4596 = vdwg.mxu0
      %v4598 = vsel %vm1201, %v4537, 0
      %v4600 = vsel %vm1201, %v2164, 0
      %4602 = vmatprep.subr.bf16.mxu0 0
      %4603 = vmatpush1.bf16.xpose.msra.mxu0 %v4600
      %4604 = vmatprep.subr.bf16.mxu0 0
      %4605 = vmatpush1.bf16.xpose.msra.mxu0 0
      %4606 = vmatprep.subr.bf16.mxu0 0
      %4607 = vmatpush1.bf16.xpose.msra.mxu0 0
      %4608 = vmatprep.subr.bf16.mxu0 0
      %4609 = vmatpush1.bf16.xpose.msra.mxu0 0
      %4610 = vmatprep.subr.bf16.mxu0 0
      %4611 = vmatpush1.bf16.xpose.msra.mxu0 0
      %4612 = vmatprep.subr.bf16.mxu0 0
      %4613 = vmatpush1.bf16.xpose.msra.mxu0 0
      %4614 = vmatprep.subr.bf16.mxu0 0
      %4615 = vmatpush1.bf16.xpose.msra.mxu0 0
      %4616 = vmatprep.subr.bf16.mxu0 0
      %4617 = vmatpush1.bf16.xpose.msra.mxu0 0
      %4618 = vmatprep.subr.bf16.mxu0 0
      %4619 = vmatpush1.bf16.xpose.msra.mxu0 0
      %4620 = vmatprep.subr.bf16.mxu0 0
      %4621 = vmatpush1.bf16.xpose.msra.mxu0 0
      %4622 = vmatprep.subr.bf16.mxu0 0
      %4623 = vmatpush1.bf16.xpose.msra.mxu0 0
      %4624 = vmatprep.subr.bf16.mxu0 0
      %4625 = vmatpush1.bf16.xpose.msra.mxu0 0
      %4626 = vmatprep.subr.bf16.mxu0 0
      %4627 = vmatpush1.bf16.xpose.msra.mxu0 0
      %4628 = vmatprep.subr.bf16.mxu0 0
      %4629 = vmatpush1.bf16.xpose.msra.mxu0 0
      %4630 = vmatprep.subr.bf16.mxu0 0
      %4631 = vmatpush1.bf16.xpose.msra.mxu0 0
      %4632 = vmatprep.subr.bf16.mxu0 0
      %4633 = vmatpush1.bf16.xpose.msra.mxu0 0
      %4634 = vmatprep.mubr.bf16.mxu0 0
      %4635 = vmatmul.mubr.bf16.gmra.mrb[0].mxu0 %v4598
      %v4636 = vpop.f32.mrb[0].mxu0
      %v4637 = vadd.f32 0.0, %v4636
      %v4638 = vpop.f32.mrb[0].mxu0
      %v4639 = vpop.f32.mrb[0].mxu0
      %v4640 = vpop.f32.mrb[0].mxu0
      %4641 = vdwg.mxu0
      %v4643 = vsel %vm1201, %v4538, 0
      %v4645 = vsel %vm1201, %v2165, 0
      %4647 = vmatprep.subr.bf16.mxu0 0
      %4648 = vmatpush1.bf16.xpose.msra.mxu0 %v4645
      %4649 = vmatprep.subr.bf16.mxu0 0
      %4650 = vmatpush1.bf16.xpose.msra.mxu0 0
      %4651 = vmatprep.subr.bf16.mxu0 0
      %4652 = vmatpush1.bf16.xpose.msra.mxu0 0
      %4653 = vmatprep.subr.bf16.mxu0 0
      %4654 = vmatpush1.bf16.xpose.msra.mxu0 0
      %4655 = vmatprep.subr.bf16.mxu0 0
      %4656 = vmatpush1.bf16.xpose.msra.mxu0 0
      %4657 = vmatprep.subr.bf16.mxu0 0
      %4658 = vmatpush1.bf16.xpose.msra.mxu0 0
      %4659 = vmatprep.subr.bf16.mxu0 0
      %4660 = vmatpush1.bf16.xpose.msra.mxu0 0
      %4661 = vmatprep.subr.bf16.mxu0 0
      %4662 = vmatpush1.bf16.xpose.msra.mxu0 0
      %4663 = vmatprep.subr.bf16.mxu0 0
      %4664 = vmatpush1.bf16.xpose.msra.mxu0 0
      %4665 = vmatprep.subr.bf16.mxu0 0
      %4666 = vmatpush1.bf16.xpose.msra.mxu0 0
      %4667 = vmatprep.subr.bf16.mxu0 0
      %4668 = vmatpush1.bf16.xpose.msra.mxu0 0
      %4669 = vmatprep.subr.bf16.mxu0 0
      %4670 = vmatpush1.bf16.xpose.msra.mxu0 0
      %4671 = vmatprep.subr.bf16.mxu0 0
      %4672 = vmatpush1.bf16.xpose.msra.mxu0 0
      %4673 = vmatprep.subr.bf16.mxu0 0
      %4674 = vmatpush1.bf16.xpose.msra.mxu0 0
      %4675 = vmatprep.subr.bf16.mxu0 0
      %4676 = vmatpush1.bf16.xpose.msra.mxu0 0
      %4677 = vmatprep.subr.bf16.mxu0 0
      %4678 = vmatpush1.bf16.xpose.msra.mxu0 0
      %4679 = vmatprep.mubr.bf16.mxu0 0
      %4680 = vmatmul.mubr.bf16.gmra.mrb[0].mxu0 %v4643
      %v4681 = vpop.f32.mrb[0].mxu0
      %v4682 = vadd.f32 0.0, %v4681
      %v4683 = vpop.f32.mrb[0].mxu0
      %v4684 = vpop.f32.mrb[0].mxu0
      %v4685 = vpop.f32.mrb[0].mxu0
      %4686 = vdwg.mxu0
      %v4688 = vsel %vm1201, %v4539, 0
      %v4690 = vsel %vm1201, %v2166, 0
      %4692 = vmatprep.subr.bf16.mxu0 0
      %4693 = vmatpush1.bf16.xpose.msra.mxu0 %v4690
      %4694 = vmatprep.subr.bf16.mxu0 0
      %4695 = vmatpush1.bf16.xpose.msra.mxu0 0
      %4696 = vmatprep.subr.bf16.mxu0 0
      %4697 = vmatpush1.bf16.xpose.msra.mxu0 0
      %4698 = vmatprep.subr.bf16.mxu0 0
      %4699 = vmatpush1.bf16.xpose.msra.mxu0 0
      %4700 = vmatprep.subr.bf16.mxu0 0
      %4701 = vmatpush1.bf16.xpose.msra.mxu0 0
      %4702 = vmatprep.subr.bf16.mxu0 0
      %4703 = vmatpush1.bf16.xpose.msra.mxu0 0
      %4704 = vmatprep.subr.bf16.mxu0 0
      %4705 = vmatpush1.bf16.xpose.msra.mxu0 0
      %4706 = vmatprep.subr.bf16.mxu0 0
      %4707 = vmatpush1.bf16.xpose.msra.mxu0 0
      %4708 = vmatprep.subr.bf16.mxu0 0
      %4709 = vmatpush1.bf16.xpose.msra.mxu0 0
      %4710 = vmatprep.subr.bf16.mxu0 0
      %4711 = vmatpush1.bf16.xpose.msra.mxu0 0
      %4712 = vmatprep.subr.bf16.mxu0 0
      %4713 = vmatpush1.bf16.xpose.msra.mxu0 0
      %4714 = vmatprep.subr.bf16.mxu0 0
      %4715 = vmatpush1.bf16.xpose.msra.mxu0 0
      %4716 = vmatprep.subr.bf16.mxu0 0
      %4717 = vmatpush1.bf16.xpose.msra.mxu0 0
      %4718 = vmatprep.subr.bf16.mxu0 0
      %4719 = vmatpush1.bf16.xpose.msra.mxu0 0
      %4720 = vmatprep.subr.bf16.mxu0 0
      %4721 = vmatpush1.bf16.xpose.msra.mxu0 0
      %4722 = vmatprep.subr.bf16.mxu0 0
      %4723 = vmatpush1.bf16.xpose.msra.mxu0 0
      %4724 = vmatprep.mubr.bf16.mxu0 0
      %4725 = vmatmul.mubr.bf16.gmra.mrb[0].mxu0 %v4688
      %v4726 = vpop.f32.mrb[0].mxu0
      %v4727 = vadd.f32 0.0, %v4726
      %v4728 = vpop.f32.mrb[0].mxu0
      %v4729 = vpop.f32.mrb[0].mxu0
      %v4730 = vpop.f32.mrb[0].mxu0
      %4731 = vdwg.mxu0
      %v4733 = vsel %vm1201, %v4540, 0
      %v4735 = vsel %vm1201, %v2167, 0
      %4737 = vmatprep.subr.bf16.mxu0 0
      %4738 = vmatpush1.bf16.xpose.msra.mxu0 %v4735
      %4739 = vmatprep.subr.bf16.mxu0 0
      %4740 = vmatpush1.bf16.xpose.msra.mxu0 0
      %4741 = vmatprep.subr.bf16.mxu0 0
      %4742 = vmatpush1.bf16.xpose.msra.mxu0 0
      %4743 = vmatprep.subr.bf16.mxu0 0
      %4744 = vmatpush1.bf16.xpose.msra.mxu0 0
      %4745 = vmatprep.subr.bf16.mxu0 0
      %4746 = vmatpush1.bf16.xpose.msra.mxu0 0
      %4747 = vmatprep.subr.bf16.mxu0 0
      %4748 = vmatpush1.bf16.xpose.msra.mxu0 0
      %4749 = vmatprep.subr.bf16.mxu0 0
      %4750 = vmatpush1.bf16.xpose.msra.mxu0 0
      %4751 = vmatprep.subr.bf16.mxu0 0
      %4752 = vmatpush1.bf16.xpose.msra.mxu0 0
      %4753 = vmatprep.subr.bf16.mxu0 0
      %4754 = vmatpush1.bf16.xpose.msra.mxu0 0
      %4755 = vmatprep.subr.bf16.mxu0 0
      %4756 = vmatpush1.bf16.xpose.msra.mxu0 0
      %4757 = vmatprep.subr.bf16.mxu0 0
      %4758 = vmatpush1.bf16.xpose.msra.mxu0 0
      %4759 = vmatprep.subr.bf16.mxu0 0
      %4760 = vmatpush1.bf16.xpose.msra.mxu0 0
      %4761 = vmatprep.subr.bf16.mxu0 0
      %4762 = vmatpush1.bf16.xpose.msra.mxu0 0
      %4763 = vmatprep.subr.bf16.mxu0 0
      %4764 = vmatpush1.bf16.xpose.msra.mxu0 0
      %4765 = vmatprep.subr.bf16.mxu0 0
      %4766 = vmatpush1.bf16.xpose.msra.mxu0 0
      %4767 = vmatprep.subr.bf16.mxu0 0
      %4768 = vmatpush1.bf16.xpose.msra.mxu0 0
      %4769 = vmatprep.mubr.bf16.mxu0 0
      %4770 = vmatmul.mubr.bf16.gmra.mrb[0].mxu0 %v4733
      %v4771 = vpop.f32.mrb[0].mxu0
      %v4772 = vadd.f32 0.0, %v4771
      %v4773 = vpop.f32.mrb[0].mxu0
      %v4774 = vpop.f32.mrb[0].mxu0
      %v4775 = vpop.f32.mrb[0].mxu0
      %4776 = vdwg.mxu0
      %v4778 = vsel %vm1201, %v4541, 0
      %v4780 = vsel %vm1201, %v2168, 0
      %4782 = vmatprep.subr.bf16.mxu0 0
      %4783 = vmatpush1.bf16.xpose.msra.mxu0 %v4780
      %4784 = vmatprep.subr.bf16.mxu0 0
      %4785 = vmatpush1.bf16.xpose.msra.mxu0 0
      %4786 = vmatprep.subr.bf16.mxu0 0
      %4787 = vmatpush1.bf16.xpose.msra.mxu0 0
      %4788 = vmatprep.subr.bf16.mxu0 0
      %4789 = vmatpush1.bf16.xpose.msra.mxu0 0
      %4790 = vmatprep.subr.bf16.mxu0 0
      %4791 = vmatpush1.bf16.xpose.msra.mxu0 0
      %4792 = vmatprep.subr.bf16.mxu0 0
      %4793 = vmatpush1.bf16.xpose.msra.mxu0 0
      %4794 = vmatprep.subr.bf16.mxu0 0
      %4795 = vmatpush1.bf16.xpose.msra.mxu0 0
      %4796 = vmatprep.subr.bf16.mxu0 0
      %4797 = vmatpush1.bf16.xpose.msra.mxu0 0
      %4798 = vmatprep.subr.bf16.mxu0 0
      %4799 = vmatpush1.bf16.xpose.msra.mxu0 0
      %4800 = vmatprep.subr.bf16.mxu0 0
      %4801 = vmatpush1.bf16.xpose.msra.mxu0 0
      %4802 = vmatprep.subr.bf16.mxu0 0
      %4803 = vmatpush1.bf16.xpose.msra.mxu0 0
      %4804 = vmatprep.subr.bf16.mxu0 0
      %4805 = vmatpush1.bf16.xpose.msra.mxu0 0
      %4806 = vmatprep.subr.bf16.mxu0 0
      %4807 = vmatpush1.bf16.xpose.msra.mxu0 0
      %4808 = vmatprep.subr.bf16.mxu0 0
      %4809 = vmatpush1.bf16.xpose.msra.mxu0 0
      %4810 = vmatprep.subr.bf16.mxu0 0
      %4811 = vmatpush1.bf16.xpose.msra.mxu0 0
      %4812 = vmatprep.subr.bf16.mxu0 0
      %4813 = vmatpush1.bf16.xpose.msra.mxu0 0
      %4814 = vmatprep.mubr.bf16.mxu0 0
      %4815 = vmatmul.mubr.bf16.gmra.mrb[0].mxu0 %v4778
      %v4816 = vpop.f32.mrb[0].mxu0
      %v4817 = vadd.f32 0.0, %v4816
      %v4818 = vpop.f32.mrb[0].mxu0
      %v4819 = vpop.f32.mrb[0].mxu0
      %v4820 = vpop.f32.mrb[0].mxu0
      %4821 = vdwg.mxu0
      %v4823 = vsel %vm1201, %v4542, 0
      %v4825 = vsel %vm1201, %v2169, 0
      %4827 = vmatprep.subr.bf16.mxu0 0
      %4828 = vmatpush1.bf16.xpose.msra.mxu0 %v4825
      %4829 = vmatprep.subr.bf16.mxu0 0
      %4830 = vmatpush1.bf16.xpose.msra.mxu0 0
      %4831 = vmatprep.subr.bf16.mxu0 0
      %4832 = vmatpush1.bf16.xpose.msra.mxu0 0
      %4833 = vmatprep.subr.bf16.mxu0 0
      %4834 = vmatpush1.bf16.xpose.msra.mxu0 0
      %4835 = vmatprep.subr.bf16.mxu0 0
      %4836 = vmatpush1.bf16.xpose.msra.mxu0 0
      %4837 = vmatprep.subr.bf16.mxu0 0
      %4838 = vmatpush1.bf16.xpose.msra.mxu0 0
      %4839 = vmatprep.subr.bf16.mxu0 0
      %4840 = vmatpush1.bf16.xpose.msra.mxu0 0
      %4841 = vmatprep.subr.bf16.mxu0 0
      %4842 = vmatpush1.bf16.xpose.msra.mxu0 0
      %4843 = vmatprep.subr.bf16.mxu0 0
      %4844 = vmatpush1.bf16.xpose.msra.mxu0 0
      %4845 = vmatprep.subr.bf16.mxu0 0
      %4846 = vmatpush1.bf16.xpose.msra.mxu0 0
      %4847 = vmatprep.subr.bf16.mxu0 0
      %4848 = vmatpush1.bf16.xpose.msra.mxu0 0
      %4849 = vmatprep.subr.bf16.mxu0 0
      %4850 = vmatpush1.bf16.xpose.msra.mxu0 0
      %4851 = vmatprep.subr.bf16.mxu0 0
      %4852 = vmatpush1.bf16.xpose.msra.mxu0 0
      %4853 = vmatprep.subr.bf16.mxu0 0
      %4854 = vmatpush1.bf16.xpose.msra.mxu0 0
      %4855 = vmatprep.subr.bf16.mxu0 0
      %4856 = vmatpush1.bf16.xpose.msra.mxu0 0
      %4857 = vmatprep.subr.bf16.mxu0 0
      %4858 = vmatpush1.bf16.xpose.msra.mxu0 0
      %4859 = vmatprep.mubr.bf16.mxu0 0
      %4860 = vmatmul.mubr.bf16.gmra.mrb[0].mxu0 %v4823
      %v4861 = vpop.f32.mrb[0].mxu0
      %v4862 = vadd.f32 0.0, %v4861
      %v4863 = vpop.f32.mrb[0].mxu0
      %v4864 = vpop.f32.mrb[0].mxu0
      %v4865 = vpop.f32.mrb[0].mxu0
      %4866 = vdwg.mxu0
      %v4868 = vsel %vm1201, %v4543, 0
      %v4870 = vsel %vm1201, %v2170, 0
      %4872 = vmatprep.subr.bf16.mxu0 0
      %4873 = vmatpush1.bf16.xpose.msra.mxu0 %v4870
      %4874 = vmatprep.subr.bf16.mxu0 0
      %4875 = vmatpush1.bf16.xpose.msra.mxu0 0
      %4876 = vmatprep.subr.bf16.mxu0 0
      %4877 = vmatpush1.bf16.xpose.msra.mxu0 0
      %4878 = vmatprep.subr.bf16.mxu0 0
      %4879 = vmatpush1.bf16.xpose.msra.mxu0 0
      %4880 = vmatprep.subr.bf16.mxu0 0
      %4881 = vmatpush1.bf16.xpose.msra.mxu0 0
      %4882 = vmatprep.subr.bf16.mxu0 0
      %4883 = vmatpush1.bf16.xpose.msra.mxu0 0
      %4884 = vmatprep.subr.bf16.mxu0 0
      %4885 = vmatpush1.bf16.xpose.msra.mxu0 0
      %4886 = vmatprep.subr.bf16.mxu0 0
      %4887 = vmatpush1.bf16.xpose.msra.mxu0 0
      %4888 = vmatprep.subr.bf16.mxu0 0
      %4889 = vmatpush1.bf16.xpose.msra.mxu0 0
      %4890 = vmatprep.subr.bf16.mxu0 0
      %4891 = vmatpush1.bf16.xpose.msra.mxu0 0
      %4892 = vmatprep.subr.bf16.mxu0 0
      %4893 = vmatpush1.bf16.xpose.msra.mxu0 0
      %4894 = vmatprep.subr.bf16.mxu0 0
      %4895 = vmatpush1.bf16.xpose.msra.mxu0 0
      %4896 = vmatprep.subr.bf16.mxu0 0
      %4897 = vmatpush1.bf16.xpose.msra.mxu0 0
      %4898 = vmatprep.subr.bf16.mxu0 0
      %4899 = vmatpush1.bf16.xpose.msra.mxu0 0
      %4900 = vmatprep.subr.bf16.mxu0 0
      %4901 = vmatpush1.bf16.xpose.msra.mxu0 0
      %4902 = vmatprep.subr.bf16.mxu0 0
      %4903 = vmatpush1.bf16.xpose.msra.mxu0 0
      %4904 = vmatprep.mubr.bf16.mxu0 0
      %4905 = vmatmul.mubr.bf16.gmra.mrb[0].mxu0 %v4868
      %v4906 = vpop.f32.mrb[0].mxu0
      %v4907 = vadd.f32 0.0, %v4906
      %v4908 = vpop.f32.mrb[0].mxu0
      %v4909 = vpop.f32.mrb[0].mxu0
      %v4910 = vpop.f32.mrb[0].mxu0
      %4911 = vdwg.mxu0
      %v4913 = vsel %vm1201, %v4544, 0
      %v4915 = vsel %vm1201, %v2171, 0
      %4917 = vmatprep.subr.bf16.mxu0 0
      %4918 = vmatpush1.bf16.xpose.msra.mxu0 %v4915
      %4919 = vmatprep.subr.bf16.mxu0 0
      %4920 = vmatpush1.bf16.xpose.msra.mxu0 0
      %4921 = vmatprep.subr.bf16.mxu0 0
      %4922 = vmatpush1.bf16.xpose.msra.mxu0 0
      %4923 = vmatprep.subr.bf16.mxu0 0
      %4924 = vmatpush1.bf16.xpose.msra.mxu0 0
      %4925 = vmatprep.subr.bf16.mxu0 0
      %4926 = vmatpush1.bf16.xpose.msra.mxu0 0
      %4927 = vmatprep.subr.bf16.mxu0 0
      %4928 = vmatpush1.bf16.xpose.msra.mxu0 0
      %4929 = vmatprep.subr.bf16.mxu0 0
      %4930 = vmatpush1.bf16.xpose.msra.mxu0 0
      %4931 = vmatprep.subr.bf16.mxu0 0
      %4932 = vmatpush1.bf16.xpose.msra.mxu0 0
      %4933 = vmatprep.subr.bf16.mxu0 0
      %4934 = vmatpush1.bf16.xpose.msra.mxu0 0
      %4935 = vmatprep.subr.bf16.mxu0 0
      %4936 = vmatpush1.bf16.xpose.msra.mxu0 0
      %4937 = vmatprep.subr.bf16.mxu0 0
      %4938 = vmatpush1.bf16.xpose.msra.mxu0 0
      %4939 = vmatprep.subr.bf16.mxu0 0
      %4940 = vmatpush1.bf16.xpose.msra.mxu0 0
      %4941 = vmatprep.subr.bf16.mxu0 0
      %4942 = vmatpush1.bf16.xpose.msra.mxu0 0
      %4943 = vmatprep.subr.bf16.mxu0 0
      %4944 = vmatpush1.bf16.xpose.msra.mxu0 0
      %4945 = vmatprep.subr.bf16.mxu0 0
      %4946 = vmatpush1.bf16.xpose.msra.mxu0 0
      %4947 = vmatprep.subr.bf16.mxu0 0
      %4948 = vmatpush1.bf16.xpose.msra.mxu0 0
      %4949 = vmatprep.mubr.bf16.mxu0 0
      %4950 = vmatmul.mubr.bf16.gmra.mrb[0].mxu0 %v4913
      %v4951 = vpop.f32.mrb[0].mxu0
      %v4952 = vadd.f32 0.0, %v4951
      %v4953 = vpop.f32.mrb[0].mxu0
      %v4954 = vpop.f32.mrb[0].mxu0
      %v4955 = vpop.f32.mrb[0].mxu0
      %4956 = vdwg.mxu0
      %v4958 = vsel %vm1201, %v4545, 0
      %v4960 = vsel %vm1201, %v2172, 0
      %4962 = vmatprep.subr.bf16.mxu0 0
      %4963 = vmatpush1.bf16.xpose.msra.mxu0 %v4960
      %4964 = vmatprep.subr.bf16.mxu0 0
      %4965 = vmatpush1.bf16.xpose.msra.mxu0 0
      %4966 = vmatprep.subr.bf16.mxu0 0
      %4967 = vmatpush1.bf16.xpose.msra.mxu0 0
      %4968 = vmatprep.subr.bf16.mxu0 0
      %4969 = vmatpush1.bf16.xpose.msra.mxu0 0
      %4970 = vmatprep.subr.bf16.mxu0 0
      %4971 = vmatpush1.bf16.xpose.msra.mxu0 0
      %4972 = vmatprep.subr.bf16.mxu0 0
      %4973 = vmatpush1.bf16.xpose.msra.mxu0 0
      %4974 = vmatprep.subr.bf16.mxu0 0
      %4975 = vmatpush1.bf16.xpose.msra.mxu0 0
      %4976 = vmatprep.subr.bf16.mxu0 0
      %4977 = vmatpush1.bf16.xpose.msra.mxu0 0
      %4978 = vmatprep.subr.bf16.mxu0 0
      %4979 = vmatpush1.bf16.xpose.msra.mxu0 0
      %4980 = vmatprep.subr.bf16.mxu0 0
      %4981 = vmatpush1.bf16.xpose.msra.mxu0 0
      %4982 = vmatprep.subr.bf16.mxu0 0
      %4983 = vmatpush1.bf16.xpose.msra.mxu0 0
      %4984 = vmatprep.subr.bf16.mxu0 0
      %4985 = vmatpush1.bf16.xpose.msra.mxu0 0
      %4986 = vmatprep.subr.bf16.mxu0 0
      %4987 = vmatpush1.bf16.xpose.msra.mxu0 0
      %4988 = vmatprep.subr.bf16.mxu0 0
      %4989 = vmatpush1.bf16.xpose.msra.mxu0 0
      %4990 = vmatprep.subr.bf16.mxu0 0
      %4991 = vmatpush1.bf16.xpose.msra.mxu0 0
      %4992 = vmatprep.subr.bf16.mxu0 0
      %4993 = vmatpush1.bf16.xpose.msra.mxu0 0
      %4994 = vmatprep.mubr.bf16.mxu0 0
      %4995 = vmatmul.mubr.bf16.gmra.mrb[0].mxu0 %v4958
      %v4996 = vpop.f32.mrb[0].mxu0
      %v4997 = vadd.f32 0.0, %v4996
      %v4998 = vpop.f32.mrb[0].mxu0
      %v4999 = vpop.f32.mrb[0].mxu0
      %v5000 = vpop.f32.mrb[0].mxu0
      %5001 = vdwg.mxu0
      %v5003 = vsel %vm1201, %v4546, 0
      %v5005 = vsel %vm1201, %v2173, 0
      %5007 = vmatprep.subr.bf16.mxu0 0
      %5008 = vmatpush1.bf16.xpose.msra.mxu0 %v5005
      %5009 = vmatprep.subr.bf16.mxu0 0
      %5010 = vmatpush1.bf16.xpose.msra.mxu0 0
      %5011 = vmatprep.subr.bf16.mxu0 0
      %5012 = vmatpush1.bf16.xpose.msra.mxu0 0
      %5013 = vmatprep.subr.bf16.mxu0 0
      %5014 = vmatpush1.bf16.xpose.msra.mxu0 0
      %5015 = vmatprep.subr.bf16.mxu0 0
      %5016 = vmatpush1.bf16.xpose.msra.mxu0 0
      %5017 = vmatprep.subr.bf16.mxu0 0
      %5018 = vmatpush1.bf16.xpose.msra.mxu0 0
      %5019 = vmatprep.subr.bf16.mxu0 0
      %5020 = vmatpush1.bf16.xpose.msra.mxu0 0
      %5021 = vmatprep.subr.bf16.mxu0 0
      %5022 = vmatpush1.bf16.xpose.msra.mxu0 0
      %5023 = vmatprep.subr.bf16.mxu0 0
      %5024 = vmatpush1.bf16.xpose.msra.mxu0 0
      %5025 = vmatprep.subr.bf16.mxu0 0
      %5026 = vmatpush1.bf16.xpose.msra.mxu0 0
      %5027 = vmatprep.subr.bf16.mxu0 0
      %5028 = vmatpush1.bf16.xpose.msra.mxu0 0
      %5029 = vmatprep.subr.bf16.mxu0 0
      %5030 = vmatpush1.bf16.xpose.msra.mxu0 0
      %5031 = vmatprep.subr.bf16.mxu0 0
      %5032 = vmatpush1.bf16.xpose.msra.mxu0 0
      %5033 = vmatprep.subr.bf16.mxu0 0
      %5034 = vmatpush1.bf16.xpose.msra.mxu0 0
      %5035 = vmatprep.subr.bf16.mxu0 0
      %5036 = vmatpush1.bf16.xpose.msra.mxu0 0
      %5037 = vmatprep.subr.bf16.mxu0 0
      %5038 = vmatpush1.bf16.xpose.msra.mxu0 0
      %5039 = vmatprep.mubr.bf16.mxu0 0
      %5040 = vmatmul.mubr.bf16.gmra.mrb[0].mxu0 %v5003
      %v5041 = vpop.f32.mrb[0].mxu0
      %v5042 = vadd.f32 0.0, %v5041
      %v5043 = vpop.f32.mrb[0].mxu0
      %v5044 = vpop.f32.mrb[0].mxu0
      %v5045 = vpop.f32.mrb[0].mxu0
      %5046 = vdwg.mxu0
      %v5048 = vsel %vm1201, %v4547, 0
      %v5050 = vsel %vm1201, %v2174, 0
      %5052 = vmatprep.subr.bf16.mxu0 0
      %5053 = vmatpush1.bf16.xpose.msra.mxu0 %v5050
      %5054 = vmatprep.subr.bf16.mxu0 0
      %5055 = vmatpush1.bf16.xpose.msra.mxu0 0
      %5056 = vmatprep.subr.bf16.mxu0 0
      %5057 = vmatpush1.bf16.xpose.msra.mxu0 0
      %5058 = vmatprep.subr.bf16.mxu0 0
      %5059 = vmatpush1.bf16.xpose.msra.mxu0 0
      %5060 = vmatprep.subr.bf16.mxu0 0
      %5061 = vmatpush1.bf16.xpose.msra.mxu0 0
      %5062 = vmatprep.subr.bf16.mxu0 0
      %5063 = vmatpush1.bf16.xpose.msra.mxu0 0
      %5064 = vmatprep.subr.bf16.mxu0 0
      %5065 = vmatpush1.bf16.xpose.msra.mxu0 0
      %5066 = vmatprep.subr.bf16.mxu0 0
      %5067 = vmatpush1.bf16.xpose.msra.mxu0 0
      %5068 = vmatprep.subr.bf16.mxu0 0
      %5069 = vmatpush1.bf16.xpose.msra.mxu0 0
      %5070 = vmatprep.subr.bf16.mxu0 0
      %5071 = vmatpush1.bf16.xpose.msra.mxu0 0
      %5072 = vmatprep.subr.bf16.mxu0 0
      %5073 = vmatpush1.bf16.xpose.msra.mxu0 0
      %5074 = vmatprep.subr.bf16.mxu0 0
      %5075 = vmatpush1.bf16.xpose.msra.mxu0 0
      %5076 = vmatprep.subr.bf16.mxu0 0
      %5077 = vmatpush1.bf16.xpose.msra.mxu0 0
      %5078 = vmatprep.subr.bf16.mxu0 0
      %5079 = vmatpush1.bf16.xpose.msra.mxu0 0
      %5080 = vmatprep.subr.bf16.mxu0 0
      %5081 = vmatpush1.bf16.xpose.msra.mxu0 0
      %5082 = vmatprep.subr.bf16.mxu0 0
      %5083 = vmatpush1.bf16.xpose.msra.mxu0 0
      %5084 = vmatprep.mubr.bf16.mxu0 0
      %5085 = vmatmul.mubr.bf16.gmra.mrb[0].mxu0 %v5048
      %v5086 = vpop.f32.mrb[0].mxu0
      %v5087 = vadd.f32 0.0, %v5086
      %v5088 = vpop.f32.mrb[0].mxu0
      %v5089 = vpop.f32.mrb[0].mxu0
      %v5090 = vpop.f32.mrb[0].mxu0
      %5091 = vdwg.mxu0
      %v5093 = vsel %vm1201, %v4548, 0
      %v5095 = vsel %vm1201, %v2175, 0
      %5097 = vmatprep.subr.bf16.mxu0 0
      %5098 = vmatpush1.bf16.xpose.msra.mxu0 %v5095
      %5099 = vmatprep.subr.bf16.mxu0 0
      %5100 = vmatpush1.bf16.xpose.msra.mxu0 0
      %5101 = vmatprep.subr.bf16.mxu0 0
      %5102 = vmatpush1.bf16.xpose.msra.mxu0 0
      %5103 = vmatprep.subr.bf16.mxu0 0
      %5104 = vmatpush1.bf16.xpose.msra.mxu0 0
      %5105 = vmatprep.subr.bf16.mxu0 0
      %5106 = vmatpush1.bf16.xpose.msra.mxu0 0
      %5107 = vmatprep.subr.bf16.mxu0 0
      %5108 = vmatpush1.bf16.xpose.msra.mxu0 0
      %5109 = vmatprep.subr.bf16.mxu0 0
      %5110 = vmatpush1.bf16.xpose.msra.mxu0 0
      %5111 = vmatprep.subr.bf16.mxu0 0
      %5112 = vmatpush1.bf16.xpose.msra.mxu0 0
      %5113 = vmatprep.subr.bf16.mxu0 0
      %5114 = vmatpush1.bf16.xpose.msra.mxu0 0
      %5115 = vmatprep.subr.bf16.mxu0 0
      %5116 = vmatpush1.bf16.xpose.msra.mxu0 0
      %5117 = vmatprep.subr.bf16.mxu0 0
      %5118 = vmatpush1.bf16.xpose.msra.mxu0 0
      %5119 = vmatprep.subr.bf16.mxu0 0
      %5120 = vmatpush1.bf16.xpose.msra.mxu0 0
      %5121 = vmatprep.subr.bf16.mxu0 0
      %5122 = vmatpush1.bf16.xpose.msra.mxu0 0
      %5123 = vmatprep.subr.bf16.mxu0 0
      %5124 = vmatpush1.bf16.xpose.msra.mxu0 0
      %5125 = vmatprep.subr.bf16.mxu0 0
      %5126 = vmatpush1.bf16.xpose.msra.mxu0 0
      %5127 = vmatprep.subr.bf16.mxu0 0
      %5128 = vmatpush1.bf16.xpose.msra.mxu0 0
      %5129 = vmatprep.mubr.bf16.mxu0 0
      %5130 = vmatmul.mubr.bf16.gmra.mrb[0].mxu0 %v5093
      %v5131 = vpop.f32.mrb[0].mxu0
      %v5132 = vadd.f32 0.0, %v5131
      %v5133 = vpop.f32.mrb[0].mxu0
      %v5134 = vpop.f32.mrb[0].mxu0
      %v5135 = vpop.f32.mrb[0].mxu0
      %5136 = vdwg.mxu0
      %v5138 = vsel %vm1201, %v4549, 0
      %v5140 = vsel %vm1201, %v2176, 0
      %5142 = vmatprep.subr.bf16.mxu0 0
      %5143 = vmatpush1.bf16.xpose.msra.mxu0 %v5140
      %5144 = vmatprep.subr.bf16.mxu0 0
      %5145 = vmatpush1.bf16.xpose.msra.mxu0 0
      %5146 = vmatprep.subr.bf16.mxu0 0
      %5147 = vmatpush1.bf16.xpose.msra.mxu0 0
      %5148 = vmatprep.subr.bf16.mxu0 0
      %5149 = vmatpush1.bf16.xpose.msra.mxu0 0
      %5150 = vmatprep.subr.bf16.mxu0 0
      %5151 = vmatpush1.bf16.xpose.msra.mxu0 0
      %5152 = vmatprep.subr.bf16.mxu0 0
      %5153 = vmatpush1.bf16.xpose.msra.mxu0 0
      %5154 = vmatprep.subr.bf16.mxu0 0
      %5155 = vmatpush1.bf16.xpose.msra.mxu0 0
      %5156 = vmatprep.subr.bf16.mxu0 0
      %5157 = vmatpush1.bf16.xpose.msra.mxu0 0
      %5158 = vmatprep.subr.bf16.mxu0 0
      %5159 = vmatpush1.bf16.xpose.msra.mxu0 0
      %5160 = vmatprep.subr.bf16.mxu0 0
      %5161 = vmatpush1.bf16.xpose.msra.mxu0 0
      %5162 = vmatprep.subr.bf16.mxu0 0
      %5163 = vmatpush1.bf16.xpose.msra.mxu0 0
      %5164 = vmatprep.subr.bf16.mxu0 0
      %5165 = vmatpush1.bf16.xpose.msra.mxu0 0
      %5166 = vmatprep.subr.bf16.mxu0 0
      %5167 = vmatpush1.bf16.xpose.msra.mxu0 0
      %5168 = vmatprep.subr.bf16.mxu0 0
      %5169 = vmatpush1.bf16.xpose.msra.mxu0 0
      %5170 = vmatprep.subr.bf16.mxu0 0
      %5171 = vmatpush1.bf16.xpose.msra.mxu0 0
      %5172 = vmatprep.subr.bf16.mxu0 0
      %5173 = vmatpush1.bf16.xpose.msra.mxu0 0
      %5174 = vmatprep.mubr.bf16.mxu0 0
      %5175 = vmatmul.mubr.bf16.gmra.mrb[0].mxu0 %v5138
      %v5176 = vpop.f32.mrb[0].mxu0
      %v5177 = vadd.f32 0.0, %v5176
      %v5178 = vpop.f32.mrb[0].mxu0
      %v5179 = vpop.f32.mrb[0].mxu0
      %v5180 = vpop.f32.mrb[0].mxu0
      %5181 = vdwg.mxu0
      %v5183 = vsel %vm1201, %v4550, 0
      %v5185 = vsel %vm1201, %v2177, 0
      %5187 = vmatprep.subr.bf16.mxu0 0
      %5188 = vmatpush1.bf16.xpose.msra.mxu0 %v5185
      %5189 = vmatprep.subr.bf16.mxu0 0
      %5190 = vmatpush1.bf16.xpose.msra.mxu0 0
      %5191 = vmatprep.subr.bf16.mxu0 0
      %5192 = vmatpush1.bf16.xpose.msra.mxu0 0
      %5193 = vmatprep.subr.bf16.mxu0 0
      %5194 = vmatpush1.bf16.xpose.msra.mxu0 0
      %5195 = vmatprep.subr.bf16.mxu0 0
      %5196 = vmatpush1.bf16.xpose.msra.mxu0 0
      %5197 = vmatprep.subr.bf16.mxu0 0
      %5198 = vmatpush1.bf16.xpose.msra.mxu0 0
      %5199 = vmatprep.subr.bf16.mxu0 0
      %5200 = vmatpush1.bf16.xpose.msra.mxu0 0
      %5201 = vmatprep.subr.bf16.mxu0 0
      %5202 = vmatpush1.bf16.xpose.msra.mxu0 0
      %5203 = vmatprep.subr.bf16.mxu0 0
      %5204 = vmatpush1.bf16.xpose.msra.mxu0 0
      %5205 = vmatprep.subr.bf16.mxu0 0
      %5206 = vmatpush1.bf16.xpose.msra.mxu0 0
      %5207 = vmatprep.subr.bf16.mxu0 0
      %5208 = vmatpush1.bf16.xpose.msra.mxu0 0
      %5209 = vmatprep.subr.bf16.mxu0 0
      %5210 = vmatpush1.bf16.xpose.msra.mxu0 0
      %5211 = vmatprep.subr.bf16.mxu0 0
      %5212 = vmatpush1.bf16.xpose.msra.mxu0 0
      %5213 = vmatprep.subr.bf16.mxu0 0
      %5214 = vmatpush1.bf16.xpose.msra.mxu0 0
      %5215 = vmatprep.subr.bf16.mxu0 0
      %5216 = vmatpush1.bf16.xpose.msra.mxu0 0
      %5217 = vmatprep.subr.bf16.mxu0 0
      %5218 = vmatpush1.bf16.xpose.msra.mxu0 0
      %5219 = vmatprep.mubr.bf16.mxu0 0
      %5220 = vmatmul.mubr.bf16.gmra.mrb[0].mxu0 %v5183
      %v5221 = vpop.f32.mrb[0].mxu0
      %v5222 = vadd.f32 0.0, %v5221
      %v5223 = vpop.f32.mrb[0].mxu0
      %v5224 = vpop.f32.mrb[0].mxu0
      %v5225 = vpop.f32.mrb[0].mxu0
      %5226 = vdwg.mxu0
      %v5228 = vsel %vm1201, %v4551, 0
      %v5230 = vsel %vm1201, %v2178, 0
      %5232 = vmatprep.subr.bf16.mxu0 0
      %5233 = vmatpush1.bf16.xpose.msra.mxu0 %v5230
      %5234 = vmatprep.subr.bf16.mxu0 0
      %5235 = vmatpush1.bf16.xpose.msra.mxu0 0
      %5236 = vmatprep.subr.bf16.mxu0 0
      %5237 = vmatpush1.bf16.xpose.msra.mxu0 0
      %5238 = vmatprep.subr.bf16.mxu0 0
      %5239 = vmatpush1.bf16.xpose.msra.mxu0 0
      %5240 = vmatprep.subr.bf16.mxu0 0
      %5241 = vmatpush1.bf16.xpose.msra.mxu0 0
      %5242 = vmatprep.subr.bf16.mxu0 0
      %5243 = vmatpush1.bf16.xpose.msra.mxu0 0
      %5244 = vmatprep.subr.bf16.mxu0 0
      %5245 = vmatpush1.bf16.xpose.msra.mxu0 0
      %5246 = vmatprep.subr.bf16.mxu0 0
      %5247 = vmatpush1.bf16.xpose.msra.mxu0 0
      %5248 = vmatprep.subr.bf16.mxu0 0
      %5249 = vmatpush1.bf16.xpose.msra.mxu0 0
      %5250 = vmatprep.subr.bf16.mxu0 0
      %5251 = vmatpush1.bf16.xpose.msra.mxu0 0
      %5252 = vmatprep.subr.bf16.mxu0 0
      %5253 = vmatpush1.bf16.xpose.msra.mxu0 0
      %5254 = vmatprep.subr.bf16.mxu0 0
      %5255 = vmatpush1.bf16.xpose.msra.mxu0 0
      %5256 = vmatprep.subr.bf16.mxu0 0
      %5257 = vmatpush1.bf16.xpose.msra.mxu0 0
      %5258 = vmatprep.subr.bf16.mxu0 0
      %5259 = vmatpush1.bf16.xpose.msra.mxu0 0
      %5260 = vmatprep.subr.bf16.mxu0 0
      %5261 = vmatpush1.bf16.xpose.msra.mxu0 0
      %5262 = vmatprep.subr.bf16.mxu0 0
      %5263 = vmatpush1.bf16.xpose.msra.mxu0 0
      %5264 = vmatprep.mubr.bf16.mxu0 0
      %5265 = vmatmul.mubr.bf16.gmra.mrb[0].mxu0 %v5228
      %v5266 = vpop.f32.mrb[0].mxu0
      %v5267 = vadd.f32 0.0, %v5266
      %v5268 = vpop.f32.mrb[0].mxu0
      %v5269 = vpop.f32.mrb[0].mxu0
      %v5270 = vpop.f32.mrb[0].mxu0
      %5271 = vdwg.mxu0
      %v5272 = vmul.f32 %v4592, %v4592
      %v5273 = vmul.f32 %v4637, %v4637
      %v5274 = vmul.f32 %v4682, %v4682
      %v5275 = vmul.f32 %v4727, %v4727
      %v5276 = vmul.f32 %v4772, %v4772
      %v5277 = vmul.f32 %v4817, %v4817
      %v5278 = vmul.f32 %v4862, %v4862
      %v5279 = vmul.f32 %v4907, %v4907
      %v5280 = vmul.f32 %v4952, %v4952
      %v5281 = vmul.f32 %v4997, %v4997
      %v5282 = vmul.f32 %v5042, %v5042
      %v5283 = vmul.f32 %v5087, %v5087
      %v5284 = vmul.f32 %v5132, %v5132
      %v5285 = vmul.f32 %v5177, %v5177
      %v5286 = vmul.f32 %v5222, %v5222
      %v5287 = vmul.f32 %v5267, %v5267
      %v5288 = vsel %vm2150, %v5272, 0.0
      %5289 = vadd.xlane.f32.xlu0 %v5288
      %v5290 = vpop.xlane.xlu0 %5289
      %v5291 = vsel %vm2150, %v5273, 0.0
      %5292 = vadd.xlane.f32.xlu0 %v5291
      %v5293 = vpop.xlane.xlu0 %5292
      %v5294 = vsel %vm2150, %v5274, 0.0
      %5295 = vadd.xlane.f32.xlu0 %v5294
      %v5296 = vpop.xlane.xlu0 %5295
      %v5297 = vsel %vm2150, %v5275, 0.0
      %5298 = vadd.xlane.f32.xlu0 %v5297
      %v5299 = vpop.xlane.xlu0 %5298
      %v5300 = vsel %vm2150, %v5276, 0.0
      %5301 = vadd.xlane.f32.xlu0 %v5300
      %v5302 = vpop.xlane.xlu0 %5301
      %v5303 = vsel %vm2150, %v5277, 0.0
      %5304 = vadd.xlane.f32.xlu0 %v5303
      %v5305 = vpop.xlane.xlu0 %5304
      %v5306 = vsel %vm2150, %v5278, 0.0
      %5307 = vadd.xlane.f32.xlu0 %v5306
      %v5308 = vpop.xlane.xlu0 %5307
      %v5309 = vsel %vm2150, %v5279, 0.0
      %5310 = vadd.xlane.f32.xlu0 %v5309
      %v5311 = vpop.xlane.xlu0 %5310
      %v5312 = vsel %vm2150, %v5280, 0.0
      %5313 = vadd.xlane.f32.xlu0 %v5312
      %v5314 = vpop.xlane.xlu0 %5313
      %v5315 = vsel %vm2150, %v5281, 0.0
      %5316 = vadd.xlane.f32.xlu0 %v5315
      %v5317 = vpop.xlane.xlu0 %5316
      %v5318 = vsel %vm2150, %v5282, 0.0
      %5319 = vadd.xlane.f32.xlu0 %v5318
      %v5320 = vpop.xlane.xlu0 %5319
      %v5321 = vsel %vm2150, %v5283, 0.0
      %5322 = vadd.xlane.f32.xlu0 %v5321
      %v5323 = vpop.xlane.xlu0 %5322
      %v5324 = vsel %vm2150, %v5284, 0.0
      %5325 = vadd.xlane.f32.xlu0 %v5324
      %v5326 = vpop.xlane.xlu0 %5325
      %v5327 = vsel %vm2150, %v5285, 0.0
      %5328 = vadd.xlane.f32.xlu0 %v5327
      %v5329 = vpop.xlane.xlu0 %5328
      %v5330 = vsel %vm2150, %v5286, 0.0
      %5331 = vadd.xlane.f32.xlu0 %v5330
      %v5332 = vpop.xlane.xlu0 %5331
      %v5333 = vsel %vm2150, %v5287, 0.0
      %5334 = vadd.xlane.f32.xlu0 %v5333
      %v5335 = vpop.xlane.xlu0 %5334
      %v5336 = vrot.slane %v5290, 4
      %v5337 = vadd.f32 %v5290, %v5336
      %v5338 = vrot.slane %v5337, 2
      %v5339 = vadd.f32 %v5337, %v5338
      %v5340 = vrot.slane %v5339, 1
      %v5341 = vadd.f32 %v5339, %v5340
      %v5342 = vrot.slane %v5293, 4
      %v5343 = vadd.f32 %v5293, %v5342
      %v5344 = vrot.slane %v5343, 2
      %v5345 = vadd.f32 %v5343, %v5344
      %v5346 = vrot.slane %v5345, 1
      %v5347 = vadd.f32 %v5345, %v5346
      %v5348 = vrot.slane %v5296, 4
      %v5349 = vadd.f32 %v5296, %v5348
      %v5350 = vrot.slane %v5349, 2
      %v5351 = vadd.f32 %v5349, %v5350
      %v5352 = vrot.slane %v5351, 1
      %v5353 = vadd.f32 %v5351, %v5352
      %v5354 = vrot.slane %v5299, 4
      %v5355 = vadd.f32 %v5299, %v5354
      %v5356 = vrot.slane %v5355, 2
      %v5357 = vadd.f32 %v5355, %v5356
      %v5358 = vrot.slane %v5357, 1
      %v5359 = vadd.f32 %v5357, %v5358
      %v5360 = vrot.slane %v5302, 4
      %v5361 = vadd.f32 %v5302, %v5360
      %v5362 = vrot.slane %v5361, 2
      %v5363 = vadd.f32 %v5361, %v5362
      %v5364 = vrot.slane %v5363, 1
      %v5365 = vadd.f32 %v5363, %v5364
      %v5366 = vrot.slane %v5305, 4
      %v5367 = vadd.f32 %v5305, %v5366
      %v5368 = vrot.slane %v5367, 2
      %v5369 = vadd.f32 %v5367, %v5368
      %v5370 = vrot.slane %v5369, 1
      %v5371 = vadd.f32 %v5369, %v5370
      %v5372 = vrot.slane %v5308, 4
      %v5373 = vadd.f32 %v5308, %v5372
      %v5374 = vrot.slane %v5373, 2
      %v5375 = vadd.f32 %v5373, %v5374
      %v5376 = vrot.slane %v5375, 1
      %v5377 = vadd.f32 %v5375, %v5376
      %v5378 = vrot.slane %v5311, 4
      %v5379 = vadd.f32 %v5311, %v5378
      %v5380 = vrot.slane %v5379, 2
      %v5381 = vadd.f32 %v5379, %v5380
      %v5382 = vrot.slane %v5381, 1
      %v5383 = vadd.f32 %v5381, %v5382
      %v5384 = vrot.slane %v5314, 4
      %v5385 = vadd.f32 %v5314, %v5384
      %v5386 = vrot.slane %v5385, 2
      %v5387 = vadd.f32 %v5385, %v5386
      %v5388 = vrot.slane %v5387, 1
      %v5389 = vadd.f32 %v5387, %v5388
      %v5390 = vrot.slane %v5317, 4
      %v5391 = vadd.f32 %v5317, %v5390
      %v5392 = vrot.slane %v5391, 2
      %v5393 = vadd.f32 %v5391, %v5392
      %v5394 = vrot.slane %v5393, 1
      %v5395 = vadd.f32 %v5393, %v5394
      %v5396 = vrot.slane %v5320, 4
      %v5397 = vadd.f32 %v5320, %v5396
      %v5398 = vrot.slane %v5397, 2
      %v5399 = vadd.f32 %v5397, %v5398
      %v5400 = vrot.slane %v5399, 1
      %v5401 = vadd.f32 %v5399, %v5400
      %v5402 = vrot.slane %v5323, 4
      %v5403 = vadd.f32 %v5323, %v5402
      %v5404 = vrot.slane %v5403, 2
      %v5405 = vadd.f32 %v5403, %v5404
      %v5406 = vrot.slane %v5405, 1
      %v5407 = vadd.f32 %v5405, %v5406
      %v5408 = vrot.slane %v5326, 4
      %v5409 = vadd.f32 %v5326, %v5408
      %v5410 = vrot.slane %v5409, 2
      %v5411 = vadd.f32 %v5409, %v5410
      %v5412 = vrot.slane %v5411, 1
      %v5413 = vadd.f32 %v5411, %v5412
      %v5414 = vrot.slane %v5329, 4
      %v5415 = vadd.f32 %v5329, %v5414
      %v5416 = vrot.slane %v5415, 2
      %v5417 = vadd.f32 %v5415, %v5416
      %v5418 = vrot.slane %v5417, 1
      %v5419 = vadd.f32 %v5417, %v5418
      %v5420 = vrot.slane %v5332, 4
      %v5421 = vadd.f32 %v5332, %v5420
      %v5422 = vrot.slane %v5421, 2
      %v5423 = vadd.f32 %v5421, %v5422
      %v5424 = vrot.slane %v5423, 1
      %v5425 = vadd.f32 %v5423, %v5424
      %v5426 = vrot.slane %v5335, 4
      %v5427 = vadd.f32 %v5335, %v5426
      %v5428 = vrot.slane %v5427, 2
      %v5429 = vadd.f32 %v5427, %v5428
      %v5430 = vrot.slane %v5429, 1
      %v5431 = vadd.f32 %v5429, %v5430
      %v5432 = vmax.f32 %v5341, 1e-24
      %v5433 = vmax.f32 %v5347, 1e-24
      %v5434 = vmax.f32 %v5353, 1e-24
      %v5435 = vmax.f32 %v5359, 1e-24
      %v5436 = vmax.f32 %v5365, 1e-24
      %v5437 = vmax.f32 %v5371, 1e-24
      %v5438 = vmax.f32 %v5377, 1e-24
      %v5439 = vmax.f32 %v5383, 1e-24
      %v5440 = vmax.f32 %v5389, 1e-24
      %v5441 = vmax.f32 %v5395, 1e-24
      %v5442 = vmax.f32 %v5401, 1e-24
      %v5443 = vmax.f32 %v5407, 1e-24
      %v5444 = vmax.f32 %v5413, 1e-24
      %v5445 = vmax.f32 %v5419, 1e-24
      %v5446 = vmax.f32 %v5425, 1e-24
      %v5447 = vmax.f32 %v5431, 1e-24
      %v5448 = vrsqrt.pop %v5432
      %v5449 = vrsqrt.pop %v5433
      %v5450 = vrsqrt.pop %v5434
      %v5451 = vrsqrt.pop %v5435
      %v5452 = vrsqrt.pop %v5436
      %v5453 = vrsqrt.pop %v5437
      %v5454 = vrsqrt.pop %v5438
      %v5455 = vrsqrt.pop %v5439
      %v5456 = vrsqrt.pop %v5440
      %v5457 = vrsqrt.pop %v5441
      %v5458 = vrsqrt.pop %v5442
      %v5459 = vrsqrt.pop %v5443
      %v5460 = vrsqrt.pop %v5444
      %v5461 = vrsqrt.pop %v5445
      %v5462 = vrsqrt.pop %v5446
      %v5463 = vrsqrt.pop %v5447
      %v5464 = vmul.f32 %v4592, %v5448
      %v5465 = vmul.f32 %v4637, %v5449
      %v5466 = vmul.f32 %v4682, %v5450
      %v5467 = vmul.f32 %v4727, %v5451
      %v5468 = vmul.f32 %v4772, %v5452
      %v5469 = vmul.f32 %v4817, %v5453
      %v5470 = vmul.f32 %v4862, %v5454
      %v5471 = vmul.f32 %v4907, %v5455
      %v5472 = vmul.f32 %v4952, %v5456
      %v5473 = vmul.f32 %v4997, %v5457
      %v5474 = vmul.f32 %v5042, %v5458
      %v5475 = vmul.f32 %v5087, %v5459
      %v5476 = vmul.f32 %v5132, %v5460
      %v5477 = vmul.f32 %v5177, %v5461
      %v5478 = vmul.f32 %v5222, %v5462
      %v5479 = vmul.f32 %v5267, %v5463
      %v5480 = vmul.f32 %v5464, %v2162
      %v5481 = vmul.f32 %v5465, %v2162
      %v5482 = vmul.f32 %v5466, %v2162
      %v5483 = vmul.f32 %v5467, %v2162
      %v5484 = vmul.f32 %v5468, %v2162
      %v5485 = vmul.f32 %v5469, %v2162
      %v5486 = vmul.f32 %v5470, %v2162
      %v5487 = vmul.f32 %v5471, %v2162
      %v5488 = vmul.f32 %v5472, %v2162
      %v5489 = vmul.f32 %v5473, %v2162
      %v5490 = vmul.f32 %v5474, %v2162
      %v5491 = vmul.f32 %v5475, %v2162
      %v5492 = vmul.f32 %v5476, %v2162
      %v5493 = vmul.f32 %v5477, %v2162
      %v5494 = vmul.f32 %v5478, %v2162
      %v5495 = vmul.f32 %v5479, %v2162
      %v5496 = vsel %vm2150, %v5480, 0.0
      %5497 = vadd.xlane.f32.xlu0 %v5496
      %v5498 = vpop.xlane.xlu0 %5497
      %v5499 = vsel %vm2150, %v5481, 0.0
      %5500 = vadd.xlane.f32.xlu0 %v5499
      %v5501 = vpop.xlane.xlu0 %5500
      %v5502 = vsel %vm2150, %v5482, 0.0
      %5503 = vadd.xlane.f32.xlu0 %v5502
      %v5504 = vpop.xlane.xlu0 %5503
      %v5505 = vsel %vm2150, %v5483, 0.0
      %5506 = vadd.xlane.f32.xlu0 %v5505
      %v5507 = vpop.xlane.xlu0 %5506
      %v5508 = vsel %vm2150, %v5484, 0.0
      %5509 = vadd.xlane.f32.xlu0 %v5508
      %v5510 = vpop.xlane.xlu0 %5509
      %v5511 = vsel %vm2150, %v5485, 0.0
      %5512 = vadd.xlane.f32.xlu0 %v5511
      %v5513 = vpop.xlane.xlu0 %5512
      %v5514 = vsel %vm2150, %v5486, 0.0
      %5515 = vadd.xlane.f32.xlu0 %v5514
      %v5516 = vpop.xlane.xlu0 %5515
      %v5517 = vsel %vm2150, %v5487, 0.0
      %5518 = vadd.xlane.f32.xlu0 %v5517
      %v5519 = vpop.xlane.xlu0 %5518
      %v5520 = vsel %vm2150, %v5488, 0.0
      %5521 = vadd.xlane.f32.xlu0 %v5520
      %v5522 = vpop.xlane.xlu0 %5521
      %v5523 = vsel %vm2150, %v5489, 0.0
      %5524 = vadd.xlane.f32.xlu0 %v5523
      %v5525 = vpop.xlane.xlu0 %5524
      %v5526 = vsel %vm2150, %v5490, 0.0
      %5527 = vadd.xlane.f32.xlu0 %v5526
      %v5528 = vpop.xlane.xlu0 %5527
      %v5529 = vsel %vm2150, %v5491, 0.0
      %5530 = vadd.xlane.f32.xlu0 %v5529
      %v5531 = vpop.xlane.xlu0 %5530
      %v5532 = vsel %vm2150, %v5492, 0.0
      %5533 = vadd.xlane.f32.xlu0 %v5532
      %v5534 = vpop.xlane.xlu0 %5533
      %v5535 = vsel %vm2150, %v5493, 0.0
      %5536 = vadd.xlane.f32.xlu0 %v5535
      %v5537 = vpop.xlane.xlu0 %5536
      %v5538 = vsel %vm2150, %v5494, 0.0
      %5539 = vadd.xlane.f32.xlu0 %v5538
      %v5540 = vpop.xlane.xlu0 %5539
      %v5541 = vsel %vm2150, %v5495, 0.0
      %5542 = vadd.xlane.f32.xlu0 %v5541
      %v5543 = vpop.xlane.xlu0 %5542
      %v5560 = vlaneseq
      %v5561 = vand.u32 %v5560, 127
      %v5562 = vlaneseq
      %v5563 = vshrl.u32 %v5562, 7
      %v5564 = vsub.s32 %v5561, %v5563
      %v5565 = vrot.slane %v5498, %v5564
      %v5566 = vlaneseq
      %v5567 = vshrl.u32 %v5566, 7
      %v5568 = vsub.s32 %v5561, %v5567
      %v5569 = vrot.slane %v5501, %v5568
      %v5570 = vlaneseq
      %v5571 = vshrl.u32 %v5570, 7
      %v5572 = vsub.s32 %v5561, %v5571
      %v5573 = vrot.slane %v5504, %v5572
      %v5574 = vlaneseq
      %v5575 = vshrl.u32 %v5574, 7
      %v5576 = vsub.s32 %v5561, %v5575
      %v5577 = vrot.slane %v5507, %v5576
      %v5578 = vlaneseq
      %v5579 = vshrl.u32 %v5578, 7
      %v5580 = vsub.s32 %v5561, %v5579
      %v5581 = vrot.slane %v5510, %v5580
      %v5582 = vlaneseq
      %v5583 = vshrl.u32 %v5582, 7
      %v5584 = vsub.s32 %v5561, %v5583
      %v5585 = vrot.slane %v5513, %v5584
      %v5586 = vlaneseq
      %v5587 = vshrl.u32 %v5586, 7
      %v5588 = vsub.s32 %v5561, %v5587
      %v5589 = vrot.slane %v5516, %v5588
      %v5590 = vlaneseq
      %v5591 = vshrl.u32 %v5590, 7
      %v5592 = vsub.s32 %v5561, %v5591
      %v5593 = vrot.slane %v5519, %v5592
      %v5594 = vlaneseq
      %v5595 = vshrl.u32 %v5594, 7
      %v5596 = vsub.s32 %v5561, %v5595
      %v5597 = vrot.slane %v5522, %v5596
      %v5598 = vlaneseq
      %v5599 = vshrl.u32 %v5598, 7
      %v5600 = vsub.s32 %v5561, %v5599
      %v5601 = vrot.slane %v5525, %v5600
      %v5602 = vlaneseq
      %v5603 = vshrl.u32 %v5602, 7
      %v5604 = vsub.s32 %v5561, %v5603
      %v5605 = vrot.slane %v5528, %v5604
      %v5606 = vlaneseq
      %v5607 = vshrl.u32 %v5606, 7
      %v5608 = vsub.s32 %v5561, %v5607
      %v5609 = vrot.slane %v5531, %v5608
      %v5610 = vlaneseq
      %v5611 = vshrl.u32 %v5610, 7
      %v5612 = vsub.s32 %v5561, %v5611
      %v5613 = vrot.slane %v5534, %v5612
      %v5614 = vlaneseq
      %v5615 = vshrl.u32 %v5614, 7
      %v5616 = vsub.s32 %v5561, %v5615
      %v5617 = vrot.slane %v5537, %v5616
      %v5618 = vlaneseq
      %v5619 = vshrl.u32 %v5618, 7
      %v5620 = vsub.s32 %v5561, %v5619
      %v5621 = vrot.slane %v5540, %v5620
      %v5622 = vlaneseq
      %v5623 = vshrl.u32 %v5622, 7
      %v5624 = vsub.s32 %v5561, %v5623
      %v5625 = vrot.slane %v5543, %v5624
      %v5626 = vsel %vm2429, %v5569, %v5565
      %v5627 = vsel %vm2431, %v5573, %v5626
      %v5628 = vsel %vm2433, %v5577, %v5627
      %v5629 = vsel %vm2435, %v5581, %v5628
      %v5630 = vsel %vm2437, %v5585, %v5629
      %v5631 = vsel %vm2439, %v5589, %v5630
      %v5632 = vsel %vm2441, %v5593, %v5631
      %v5633 = vsel %vm2429, %v5601, %v5597
      %v5634 = vsel %vm2431, %v5605, %v5633
      %v5635 = vsel %vm2433, %v5609, %v5634
      %v5636 = vsel %vm2435, %v5613, %v5635
      %v5637 = vsel %vm2437, %v5617, %v5636
      %v5638 = vsel %vm2439, %v5621, %v5637
      %v5639 = vsel %vm2441, %v5625, %v5638
      %v5642 = vsel %vm3501, %v5632, 0.0
      %5643 = vadd.xlane.f32.xlu0 %v5642
      %v5644 = vpop.xlane.xlu0 %5643
      %v5645 = vsel %vm3501, %v5639, 0.0
      %5646 = vadd.xlane.f32.xlu0 %v5645
      %v5647 = vpop.xlane.xlu0 %5646
      %5648 = vst.msk [vmem:[%s453] sm:$0xff] %vm2150, %v5464
      %5649 = vst.msk [vmem:[%s453 + $0x8] sm:$0xff] %vm2150, %v5465
      %5650 = vst.msk [vmem:[%s453 + $0x10] sm:$0xff] %vm2150, %v5466
      %5651 = vst.msk [vmem:[%s453 + $0x18] sm:$0xff] %vm2150, %v5467
      %5652 = vst.msk [vmem:[%s453 + $0x20] sm:$0xff] %vm2150, %v5468
      %5653 = vst.msk [vmem:[%s453 + $0x28] sm:$0xff] %vm2150, %v5469
      %5654 = vst.msk [vmem:[%s453 + $0x30] sm:$0xff] %vm2150, %v5470
      %5655 = vst.msk [vmem:[%s453 + $0x38] sm:$0xff] %vm2150, %v5471
      %5656 = vst.msk [vmem:[%s453 + $0x40] sm:$0xff] %vm2150, %v5472
      %5657 = vst.msk [vmem:[%s453 + $0x48] sm:$0xff] %vm2150, %v5473
      %5658 = vst.msk [vmem:[%s453 + $0x50] sm:$0xff] %vm2150, %v5474
      %5659 = vst.msk [vmem:[%s453 + $0x58] sm:$0xff] %vm2150, %v5475
      %5660 = vst.msk [vmem:[%s453 + $0x60] sm:$0xff] %vm2150, %v5476
      %5661 = vst.msk [vmem:[%s453 + $0x68] sm:$0xff] %vm2150, %v5477
      %5662 = vst.msk [vmem:[%s453 + $0x70] sm:$0xff] %vm2150, %v5478
      %5663 = vst.msk [vmem:[%s453 + $0x78] sm:$0xff] %vm2150, %v5479
      %v5666 = vlaneseq
      %v5667 = vshrl.u32 %v5666, 7
      %v5668 = vsub.s32 %v5561, %v5667
      %v5669 = vrot.slane %v5644, %v5668
      %v5670 = vadd.s32 %v5561, 4294967288
      %v5671 = vlaneseq
      %v5672 = vshrl.u32 %v5671, 7
      %v5673 = vsub.s32 %v5670, %v5672
      %v5674 = vrot.slane %v5647, %v5673
      %vm5675 = vcmask 130112
      %v5676 = vsel %vm5675, %v5674, %v5669
      %vm5678 = vcmask 122880
      %5679 = vst.msk [vmem:[%s461] sm:$0x1] %vm5678, %v5676
      %s5680 = smul.u32 16, %s28
      %p5681 = scmp.lt.s32.totalorder %s27, 1
      %s5682 = scalar_select %p5681, %s27, 1
      %p5683 = scmp.lt.s32.totalorder %s5680, 63
      %s5684 = scalar_select %p5683, %s5680, 63
      %s5685 = smul.addr %s5682, 64
      %s5686 = sadd.s32 %s5684, %s5685
      %s5687 = smul.addr %s5686, 8
      %s5688 = scalar_lea.vmem %s10, %s5687
      %p5689 = scmp.lt.s32.totalorder %s27, 1
      %s5690 = scalar_select %p5689, %s27, 1
      %p5691 = scmp.lt.s32.totalorder %s28, 3
      %s5692 = scalar_select %p5691, %s28, 3
      %s5693 = smul.addr %s5690, 4
      %s5694 = sadd.s32 %s5692, %s5693
      %s5695 = scalar_lea.vmem %s11, %s5694
      // Predicated region
      $region61: #{cvml_forward.1} parent=59 // pred_check
        %p5696 = pneg %p277
      $region62: #{cvml_forward.1} parent=59 // pred_check_branch
        %5698 = sbr.rel (%p5696) target = $region64
      $region63: #{cvml_forward.1} parent=59 // pred_region
        %s5699 = smul.u32 16, %s28
      $region64: #{cvml_forward.1} parent=59 // pred_fallthru
        _
      // Predicated region
      $region65: #{cvml_forward.1} parent=59 // pred_check
        %p5700 = pneg %p305
      $region66: #{cvml_forward.1} parent=59 // pred_check_branch
        %5702 = sbr.rel (%p5700) target = $region68
      $region67: #{cvml_forward.1} parent=59 // pred_region
        _
      $region68: #{cvml_forward.1} parent=59 // pred_fallthru
        _
    $region60: #{cvml_forward.1} parent=5 // pred_fallthru
      _
    %p5703 = scmp.le.s32.totalorder 2, %s18
    // Predicated region
    $region69: #{cvml_forward.1} parent=5 // pred_check
      %p5704 = pneg %p5703
    $region70: #{cvml_forward.1} parent=5 // pred_check_branch
      %5706 = sbr.rel (%p5704) target = $region72
    $region71: #{cvml_forward.1} parent=5 // pred_region
      %s5707 = ssub.s32 %s18, 2
      // Predicated region
      $region73: #{cvml_forward.1} parent=71 // pred_check
        %p5708 = pneg %p283
      $region74: #{cvml_forward.1} parent=71 // pred_check_branch
        %5710 = sbr.rel (%p5708) target = $region76
      $region75: #{cvml_forward.1} parent=71 // pred_region
        %s5711 = smul.u32 16, %s30
        %p5712 = scmp.lt.s32.totalorder %s29, 1
        %s5713 = scalar_select %p5712, %s29, 1
        %p5714 = scmp.lt.s32.totalorder %s5711, 63
        %s5715 = scalar_select %p5714, %s5711, 63
        %s5716 = smul.addr %s5713, 64
        %s5717 = sadd.s32 %s5715, %s5716
        %s5718 = smul.addr %s5717, 8
        %s5719 = scalar_lea.vmem %s10, %s5718
      $region76: #{cvml_forward.1} parent=71 // pred_fallthru
        _
      // Predicated region
      $region77: #{cvml_forward.1} parent=71 // pred_check
        %p5720 = pneg %p311
      $region78: #{cvml_forward.1} parent=71 // pred_check_branch
        %5722 = sbr.rel (%p5720) target = $region80
      $region79: #{cvml_forward.1} parent=71 // pred_region
        %p5723 = scmp.lt.s32.totalorder %s29, 1
        %s5724 = scalar_select %p5723, %s29, 1
        %p5725 = scmp.lt.s32.totalorder %s30, 3
        %s5726 = scalar_select %p5725, %s30, 3
        %s5727 = smul.addr %s5724, 4
        %s5728 = sadd.s32 %s5726, %s5727
        %s5729 = scalar_lea.vmem %s11, %s5728
      $region80: #{cvml_forward.1} parent=71 // pred_fallthru
        _
    $region72: #{cvml_forward.1} parent=5 // pred_fallthru
      _
  $region6: #{cvml_forward.1} parent=0 // loop_footer
    %s22 = sadd.s32 1, %s18
  $region7: #{cvml_forward.1} parent=0 // loop_footer_branch
    %17 = sbr.rel target = $region3
  $region8: #{cvml_forward.1} parent=0 // loop_exit
    _

</llo_original>
